<compile_context>
chip_gen: v5e
topology: v5e:2x2
jax: 0.10.0
libtpu: 0.0.40
codegen_flags: <defaults>
</compile_context>

<pallas_src>
import functools

import jax
import jax.numpy as jnp
import numpy as np
from jax.experimental import pallas as pl
from jax.experimental.pallas import tpu as pltpu

THRESHOLD = 0.01

_IDX = [600, 601, 602, 591, 592, 593, 981, 982, 983, 987, 988, 989, 1044, 1045,
        1046, 2343, 2344, 2345, 2289, 2290, 2291, 2286, 2287, 2288, 1938, 1939,
        1940, 1947, 1948, 1949, 45, 46, 47, 39, 40, 41, 30, 31, 32, 24, 25, 26,
        924, 925, 926, 228, 229, 230, 12, 13, 14, 1575, 1576, 1577, 2229, 2230,
        2231, 3303, 3304, 3305, 3288, 3289, 3290, 3276, 3277, 3278, 3579, 3580,
        3581, 3588, 3589, 3590, 3318, 3319, 3320, 3504, 3505, 3506, 3234, 3235,
        3236, 3222, 3223, 3224, 3207, 3208, 3209, 3483, 3484, 3485, 3495, 3496,
        3497, 570, 571, 572, 324, 325, 326, 282, 283, 284, 63, 64, 65, 1629,
        1630, 1631, 1671, 1672, 1673, 1917, 1918, 1919, 2139, 2140, 2141, 2118,
        2119, 2120, 84, 85, 86, 813, 814, 815, 834, 835, 836, 1218, 1219, 1220,
        285, 286, 287, 69, 70, 71, 1632, 1633, 1634, 2508, 2509, 2510, 2124,
        2125, 2126, 78, 79, 80, 819, 820, 821]


def _loss_kernel(assign_ref, matgt_ref, nocs_ref, prior_ref, deltas_ref,
                 model_ref, mask_ref, segp_ref, seggt_ref, out_ref):
    # ---- softmax / log_softmax over the nv (lane) axis --------------------
    a = assign_ref[0]                                    # (n_pts, nv)
    m = jnp.max(a, axis=-1, keepdims=True)
    z = a - m
    ez = jnp.exp(z)
    se = jnp.sum(ez, axis=-1, keepdims=True)             # (n_pts, 1)
    inv_se = pl.reciprocal(se, approx=False)             # EUP, 1 column vreg
    soft = ez * inv_se                                   # softmax
    log_soft = z - jnp.log(se)                           # log_softmax

    # ---- deformed shape @ soft assignment + smooth-L1 "corr" --------------
    inst = prior_ref[0] + deltas_ref[0]                  # (nv, 3), never in HBM
    coords = 4.5 * jnp.dot(soft, inst,
                           preferred_element_type=jnp.float32)   # (n_pts, 3)
    diff = jnp.abs(coords - nocs_ref[0])
    less = diff * diff * (1.0 / (2.0 * THRESHOLD))
    higher = diff - THRESHOLD / 2.0
    corr_s = jnp.sum(jnp.where(diff > THRESHOLD, higher, less),
                     keepdims=True)                      # (1, 1)

    # ---- entropy of soft assignment ----------------------------------------
    ent_s = jnp.sum(-soft * log_soft, keepdims=True)     # (1, 1)

    # ---- full KL: sum(t*log t - t*log_softmax), with 0*log0 := 0 -----------
    t = matgt_ref[0]                                     # (n_pts, nv)
    safe_t = jnp.where(t > 0.0, t, 1.0)
    kl_s = jnp.sum(jnp.where(t > 0.0, t * jnp.log(safe_t), 0.0) - t * log_soft,
                   keepdims=True)                        # (1, 1)

    # ---- masked L1 between deformed shape and gt model ---------------------
    l1_s = jnp.sum(mask_ref[...] * jnp.abs(inst - model_ref[0]),
                   keepdims=True)                        # (1, 1)

    # ---- per-point segmentation cross-entropy (class axis = sublanes) ------
    logits = segp_ref[0]                                 # (C, n_pts)
    lmax = jnp.max(logits, axis=0, keepdims=True)
    lz = logits - lmax
    lse = jnp.log(jnp.sum(jnp.exp(lz), axis=0, keepdims=True))
    logp = lz - lse                                      # (C, n_pts)
    labels = seggt_ref[0]                                # (1, n_pts) int32
    cls = jax.lax.broadcasted_iota(jnp.int32, logits.shape, 0)
    seg_s = jnp.sum(jnp.where(cls == labels, -logp, 0.0),
                    keepdims=True)                       # (1, 1)

    # ---- pack 5 partial sums into one lane-dense (1, 128) store ------------
    lane = jax.lax.broadcasted_iota(jnp.int32, (1, 128), 1)
    packed = (jnp.where(lane == 0, corr_s, 0.0)
              + jnp.where(lane == 1, ent_s, 0.0)
              + jnp.where(lane == 2, kl_s, 0.0)
              + jnp.where(lane == 3, seg_s, 0.0)
              + jnp.where(lane == 4, l1_s, 0.0))
    out_ref[...] = packed.reshape(1, 1, 128)


def loss6_forward(assign_mat, deltas, seg_pred, prior, nocs, model, seg_gt,
                  mat_gt, mask, *, corr_wt=1.0, l1_wt=1.0, entropy_wt=0.001,
                  mat_wt=0.1, seg_wt=0.1):
    bs, n_pts, nv = assign_mat.shape
    num_classes = seg_pred.shape[1]
    f32 = jnp.float32

    assign_mat = assign_mat.astype(f32)
    mat_gt = mat_gt.astype(f32)
    nocs = nocs.astype(f32)
    prior = prior.astype(f32)
    deltas = deltas.astype(f32)
    model = model.astype(f32)
    seg_pred = seg_pred.astype(f32)                      # (bs, C, n_pts), native
    mask2d = mask.reshape(nv, 3).astype(f32)             # shared across batch
    seg_gt_i = seg_gt.astype(jnp.int32).reshape(bs, 1, n_pts)

    grid_spec = pltpu.PrefetchScalarGridSpec(
        num_scalar_prefetch=0,
        grid=(bs,),
        in_specs=[
            pl.BlockSpec((1, n_pts, nv), lambda b: (b, 0, 0)),            # assign
            pl.BlockSpec((1, n_pts, nv), lambda b: (b, 0, 0)),            # mat_gt
            pl.BlockSpec((1, n_pts, 3), lambda b: (b, 0, 0)),             # nocs
            pl.BlockSpec((1, nv, 3), lambda b: (b, 0, 0)),                # prior
            pl.BlockSpec((1, nv, 3), lambda b: (b, 0, 0)),                # deltas
            pl.BlockSpec((1, nv, 3), lambda b: (b, 0, 0)),                # model
            pl.BlockSpec((nv, 3), lambda b: (0, 0)),                      # mask (shared, DMA'd once)
            pl.BlockSpec((1, num_classes, n_pts), lambda b: (b, 0, 0)),   # seg_pred
            pl.BlockSpec((1, 1, n_pts), lambda b: (b, 0, 0)),             # seg_gt
        ],
        out_specs=pl.BlockSpec((1, 1, 128), lambda b: (b, 0, 0)),
    )

    packed = pl.pallas_call(
        _loss_kernel,
        out_shape=jax.ShapeDtypeStruct((bs, 1, 128), f32),
        grid_spec=grid_spec,
        compiler_params=pltpu.CompilerParams(
            dimension_semantics=("parallel",)),   # batch shards across TCs on v7x
    )(assign_mat, mat_gt, nocs, prior, deltas, model, mask2d, seg_pred,
      seg_gt_i)

    corr_sum = jnp.sum(packed[:, 0, 0])
    ent_sum = jnp.sum(packed[:, 0, 1])
    kl_sum = jnp.sum(packed[:, 0, 2])
    seg_sum = jnp.sum(packed[:, 0, 3])
    l1_sum = jnp.sum(packed[:, 0, 4])

    corr_loss = corr_wt * corr_sum / (bs * n_pts)

    # Data-dependent re-weighting (mirrors the .item() branches, starting from
    # the module's default weights at construction time).
    mat_wt_eff = jnp.where(corr_loss < 0.01, 0.001,
                 jnp.where(corr_loss < 0.1, 0.01, mat_wt))
    l1_wt_eff = jnp.where(corr_loss < 0.01, 3.0,
                jnp.where(corr_loss < 0.1, 1.0, l1_wt))
    seg_wt_eff = jnp.where(corr_loss < 0.01, seg_wt,
                 jnp.where(corr_loss < 0.1, 0.01, seg_wt))

    # NB: divided by bs*nv, matching `bs, n_pts, _ = inst_shape.shape` in PyTorch.
    kl_loss = mat_wt_eff * kl_sum / (bs * nv)
    entropy_loss = entropy_wt * ent_sum / (bs * n_pts)
    l1_loss = l1_wt_eff * l1_sum / (bs * nv * 3)
    seg_loss = seg_wt_eff * seg_sum / (bs * n_pts)
    total_loss = corr_loss + entropy_loss + l1_loss + kl_loss + seg_loss
    return total_loss, corr_loss, l1_loss, entropy_loss, kl_loss, seg_loss


def loss6_reference(assign_mat, deltas, seg_pred, prior, nocs, model, seg_gt,
                    mat_gt, mask):
    """Pure-JAX reference mirroring the PyTorch forward exactly."""
    inst = prior + deltas
    bs, nv, _ = inst.shape
    soft = jax.nn.softmax(assign_mat, axis=2)
    coords = jnp.einsum('bpn,bnc->bpc', soft, inst * 4.5,
                        precision=jax.lax.Precision.HIGHEST)
    diff = jnp.abs(coords - nocs)
    corr = jnp.where(diff > THRESHOLD, diff - THRESHOLD / 2.0,
                     diff * diff / (2.0 * THRESHOLD))
    corr_loss = 1.0 * jnp.mean(jnp.sum(corr, axis=2))
    log_assign = jax.nn.log_softmax(assign_mat, axis=2)
    mat_wt = jnp.where(corr_loss < 0.01, 0.001,
             jnp.where(corr_loss < 0.1, 0.01, 0.1))
    l1_wt = jnp.where(corr_loss < 0.01, 3.0,
            jnp.where(corr_loss < 0.1, 1.0, 1.0))
    seg_wt = jnp.where(corr_loss < 0.01, 0.1,
             jnp.where(corr_loss < 0.1, 0.01, 0.1))
    t_logt = jnp.where(mat_gt > 0,
                       mat_gt * jnp.log(jnp.where(mat_gt > 0, mat_gt, 1.0)), 0.0)
    kl = jnp.sum(t_logt - mat_gt * log_assign)
    kl_loss = mat_wt * kl / (bs * nv)
    entropy_loss = 0.001 * jnp.mean(-jnp.sum(soft * log_assign, axis=2))
    delta_y = jnp.abs(inst.reshape(-1, 3660) - model.reshape(-1, 3660))
    l1 = mask * delta_y
    l1_loss = l1_wt * (jnp.sum(l1) / l1.size)
    logp = jax.nn.log_softmax(seg_pred, axis=1)
    oh = jax.nn.one_hot(seg_gt, seg_pred.shape[1], axis=1, dtype=jnp.float32)
    seg_loss = seg_wt * jnp.mean(-jnp.sum(oh * logp, axis=1))
    total = corr_loss + entropy_loss + l1_loss + kl_loss + seg_loss
    return total, corr_loss, l1_loss, entropy_loss, kl_loss, seg_loss


if __name__ == "__main__":
    bs, n_pts, nv, num_classes = 2, 64, 1220, 6   # nv*3 == 3660 (fixed by the mask)
    key = jax.random.PRNGKey(0)
    ks = jax.random.split(key, 8)
    assign_mat = jax.random.normal(ks[0], (bs, n_pts, nv), jnp.float32)
    deltas = 0.01 * jax.random.normal(ks[1], (bs, nv, 3), jnp.float32)
    prior = 0.1 * jax.random.normal(ks[2], (bs, nv, 3), jnp.float32)
    nocs = 0.1 * jax.random.normal(ks[3], (bs, n_pts, 3), jnp.float32)
    model = 0.1 * jax.random.normal(ks[4], (bs, nv, 3), jnp.float32)
    seg_pred = jax.random.normal(ks[5], (bs, num_classes, n_pts), jnp.float32)
    seg_gt = jax.random.randint(ks[6], (bs, n_pts), 0, num_classes)
    mat_gt = jax.nn.softmax(
        jax.random.normal(ks[7], (bs, n_pts, nv), jnp.float32), axis=-1)

    mask = jnp.ones((3660,), jnp.float32).at[jnp.array(_IDX)].set(10.0)

    fwd = jax.jit(functools.partial(loss6_forward))
    outs = fwd(assign_mat, deltas, seg_pred, prior, nocs, model, seg_gt,
               mat_gt, mask)
    outs = jax.block_until_ready(outs)

    ref = jax.jit(loss6_reference)(assign_mat, deltas, seg_pred, prior, nocs,
                                   model, seg_gt, mat_gt, mask)
    ref = jax.block_until_ready(ref)

    for got, want in zip(outs, ref):
        np.testing.assert_allclose(np.asarray(got), np.asarray(want),
                                   rtol=1e-3, atol=1e-4)
    print("KERNEL_OK")
</pallas_src>

<mosaic_0001>
module attributes {stable_mosaic.version = 11 : i64} {
  func.func @_loss_kernel(%arg0: i32, %arg1: memref<1x64x1220xf32, #tpu.memory_space<vmem>>, %arg2: memref<1x64x1220xf32, #tpu.memory_space<vmem>>, %arg3: memref<1x64x3xf32, #tpu.memory_space<vmem>>, %arg4: memref<1x1220x3xf32, #tpu.memory_space<vmem>>, %arg5: memref<1x1220x3xf32, #tpu.memory_space<vmem>>, %arg6: memref<1x1220x3xf32, #tpu.memory_space<vmem>>, %arg7: memref<1220x3xf32, #tpu.memory_space<vmem>>, %arg8: memref<1x6x64xf32, #tpu.memory_space<vmem>>, %arg9: memref<1x1x64xi32, #tpu.memory_space<vmem>>, %arg10: memref<1x1x128xf32, #tpu.memory_space<vmem>>) attributes {dimension_semantics = [#tpu.dimension_semantics<parallel>], iteration_bounds = array<i64: 2>, scalar_prefetch = 0 : i64, scratch_operands = 0 : i64, tpu.core_type = #tpu.core_type<tc>, window_params = [{transform_indices = @transform_0, window_bounds = array<i64: 1, 64, 1220>}, {transform_indices = @transform_1, window_bounds = array<i64: 1, 64, 1220>}, {transform_indices = @transform_2, window_bounds = array<i64: 1, 64, 3>}, {transform_indices = @transform_3, window_bounds = array<i64: 1, 1220, 3>}, {transform_indices = @transform_4, window_bounds = array<i64: 1, 1220, 3>}, {transform_indices = @transform_5, window_bounds = array<i64: 1, 1220, 3>}, {pipeline_mode = #tpu.pipeline_mode<synchronous>, transform_indices = @transform_6, window_bounds = array<i64: 1220, 3>}, {transform_indices = @transform_7, window_bounds = array<i64: 1, 6, 64>}, {transform_indices = @transform_8, window_bounds = array<i64: 1, 1, 64>}, {transform_indices = @transform_9, window_bounds = array<i64: 1, 1, 128>}]} {
    %c0 = arith.constant 0 : index
    %c0_0 = arith.constant 0 : index
    %c0_1 = arith.constant 0 : index
    %0 = vector.load %arg1[%c0, %c0_0, %c0_1] : memref<1x64x1220xf32, #tpu.memory_space<vmem>>, vector<1x64x1220xf32>
    %1 = vector.shape_cast %0 : vector<1x64x1220xf32> to vector<64x1220xf32>
    %cst = arith.constant dense<0xFF800000> : vector<64xf32>
    %2 = vector.multi_reduction <maximumf>, %1, %cst [1] : vector<64x1220xf32> to vector<64xf32>
    %3 = vector.shape_cast %2 : vector<64xf32> to vector<64x1xf32>
    %4 = vector.broadcast %3 : vector<64x1xf32> to vector<64x1220xf32>
    %5 = arith.subf %1, %4 : vector<64x1220xf32>
    %6 = math.exp %5 : vector<64x1220xf32>
    %cst_2 = arith.constant dense<0.000000e+00> : vector<64xf32>
    %7 = vector.multi_reduction <add>, %6, %cst_2 [1] : vector<64x1220xf32> to vector<64xf32>
    %8 = vector.shape_cast %7 : vector<64xf32> to vector<64x1xf32>
    %9 = tpu.reciprocal %8 : vector<64x1xf32> -> vector<64x1xf32>
    %10 = vector.broadcast %9 : vector<64x1xf32> to vector<64x1220xf32>
    %11 = arith.mulf %6, %10 : vector<64x1220xf32>
    %12 = math.log %8 : vector<64x1xf32>
    %13 = vector.broadcast %12 : vector<64x1xf32> to vector<64x1220xf32>
    %14 = arith.subf %5, %13 : vector<64x1220xf32>
    %c0_3 = arith.constant 0 : index
    %c0_4 = arith.constant 0 : index
    %c0_5 = arith.constant 0 : index
    %15 = vector.load %arg4[%c0_3, %c0_4, %c0_5] : memref<1x1220x3xf32, #tpu.memory_space<vmem>>, vector<1x1220x3xf32>
    %16 = vector.shape_cast %15 : vector<1x1220x3xf32> to vector<1220x3xf32>
    %c0_6 = arith.constant 0 : index
    %c0_7 = arith.constant 0 : index
    %c0_8 = arith.constant 0 : index
    %17 = vector.load %arg5[%c0_6, %c0_7, %c0_8] : memref<1x1220x3xf32, #tpu.memory_space<vmem>>, vector<1x1220x3xf32>
    %18 = vector.shape_cast %17 : vector<1x1220x3xf32> to vector<1220x3xf32>
    %19 = arith.addf %16, %18 : vector<1220x3xf32>
    %cst_9 = arith.constant dense<0.000000e+00> : vector<64x3xf32>
    %20 = tpu.matmul %11, %19, %cst_9 {dimension_numbers = #tpu.dot_dimension_numbers<[1], [0], [0], [1], [0, 0, 1, 1], [], []>} : vector<64x1220xf32>, vector<1220x3xf32>, vector<64x3xf32> -> vector<64x3xf32>
    %cst_10 = arith.constant 4.500000e+00 : f32
    %21 = vector.broadcast %cst_10 : f32 to vector<64x3xf32>
    %22 = arith.mulf %21, %20 : vector<64x3xf32>
    %c0_11 = arith.constant 0 : index
    %c0_12 = arith.constant 0 : index
    %c0_13 = arith.constant 0 : index
    %23 = vector.load %arg3[%c0_11, %c0_12, %c0_13] : memref<1x64x3xf32, #tpu.memory_space<vmem>>, vector<1x64x3xf32>
    %24 = vector.shape_cast %23 : vector<1x64x3xf32> to vector<64x3xf32>
    %25 = arith.subf %22, %24 : vector<64x3xf32>
    %26 = math.absf %25 : vector<64x3xf32>
    %27 = arith.mulf %26, %26 : vector<64x3xf32>
    %cst_14 = arith.constant 5.000000e+01 : f32
    %28 = vector.broadcast %cst_14 : f32 to vector<64x3xf32>
    %29 = arith.mulf %27, %28 : vector<64x3xf32>
    %cst_15 = arith.constant 5.000000e-03 : f32
    %30 = vector.broadcast %cst_15 : f32 to vector<64x3xf32>
    %31 = arith.subf %26, %30 : vector<64x3xf32>
    %cst_16 = arith.constant 0.00999999977 : f32
    %32 = vector.broadcast %cst_16 : f32 to vector<64x3xf32>
    %33 = arith.cmpf ogt, %26, %32 : vector<64x3xf32>
    %34 = arith.select %33, %31, %29 : vector<64x3xi1>, vector<64x3xf32>
    %35 = vector.shape_cast %34 : vector<64x3xf32> to vector<1x64x3xf32>
    %cst_17 = arith.constant dense<0.000000e+00> : vector<1xf32>
    %36 = vector.multi_reduction <add>, %35, %cst_17 [1, 2] : vector<1x64x3xf32> to vector<1xf32>
    %37 = vector.shape_cast %36 : vector<1xf32> to vector<1x1x1xf32>
    %38 = vector.extract %37[0, 0, 0] : f32 from vector<1x1x1xf32>
    %39 = vector.broadcast %38 : f32 to vector<1x1xf32>
    %cst_18 = arith.constant 0.000000e+00 : f32
    %40 = vector.broadcast %cst_18 : f32 to vector<64x1220xf32>
    %41 = arith.subf %40, %11 : vector<64x1220xf32>
    %42 = arith.mulf %41, %14 : vector<64x1220xf32>
    %43 = vector.shape_cast %42 : vector<64x1220xf32> to vector<1x64x1220xf32>
    %cst_19 = arith.constant dense<0.000000e+00> : vector<1xf32>
    %44 = vector.multi_reduction <add>, %43, %cst_19 [1, 2] : vector<1x64x1220xf32> to vector<1xf32>
    %45 = vector.shape_cast %44 : vector<1xf32> to vector<1x1x1xf32>
    %46 = vector.extract %45[0, 0, 0] : f32 from vector<1x1x1xf32>
    %47 = vector.broadcast %46 : f32 to vector<1x1xf32>
    %c0_20 = arith.constant 0 : index
    %c0_21 = arith.constant 0 : index
    %c0_22 = arith.constant 0 : index
    %48 = vector.load %arg2[%c0_20, %c0_21, %c0_22] : memref<1x64x1220xf32, #tpu.memory_space<vmem>>, vector<1x64x1220xf32>
    %49 = vector.shape_cast %48 : vector<1x64x1220xf32> to vector<64x1220xf32>
    %cst_23 = arith.constant 0.000000e+00 : f32
    %50 = vector.broadcast %cst_23 : f32 to vector<64x1220xf32>
    %51 = arith.cmpf ogt, %49, %50 : vector<64x1220xf32>
    %cst_24 = arith.constant 1.000000e+00 : f32
    %52 = vector.broadcast %cst_24 : f32 to vector<64x1220xf32>
    %53 = arith.select %51, %49, %52 : vector<64x1220xi1>, vector<64x1220xf32>
    %cst_25 = arith.constant 0.000000e+00 : f32
    %54 = vector.broadcast %cst_25 : f32 to vector<64x1220xf32>
    %55 = arith.cmpf ogt, %49, %54 : vector<64x1220xf32>
    %56 = math.log %53 : vector<64x1220xf32>
    %57 = arith.mulf %49, %56 : vector<64x1220xf32>
    %cst_26 = arith.constant 0.000000e+00 : f32
    %58 = vector.broadcast %cst_26 : f32 to vector<64x1220xf32>
    %59 = arith.select %55, %57, %58 : vector<64x1220xi1>, vector<64x1220xf32>
    %60 = arith.mulf %49, %14 : vector<64x1220xf32>
    %61 = arith.subf %59, %60 : vector<64x1220xf32>
    %62 = vector.shape_cast %61 : vector<64x1220xf32> to vector<1x64x1220xf32>
    %cst_27 = arith.constant dense<0.000000e+00> : vector<1xf32>
    %63 = vector.multi_reduction <add>, %62, %cst_27 [1, 2] : vector<1x64x1220xf32> to vector<1xf32>
    %64 = vector.shape_cast %63 : vector<1xf32> to vector<1x1x1xf32>
    %65 = vector.extract %64[0, 0, 0] : f32 from vector<1x1x1xf32>
    %66 = vector.broadcast %65 : f32 to vector<1x1xf32>
    %c0_28 = arith.constant 0 : index
    %c0_29 = arith.constant 0 : index
    %67 = vector.load %arg7[%c0_28, %c0_29] : memref<1220x3xf32, #tpu.memory_space<vmem>>, vector<1220x3xf32>
    %c0_30 = arith.constant 0 : index
    %c0_31 = arith.constant 0 : index
    %c0_32 = arith.constant 0 : index
    %68 = vector.load %arg6[%c0_30, %c0_31, %c0_32] : memref<1x1220x3xf32, #tpu.memory_space<vmem>>, vector<1x1220x3xf32>
    %69 = vector.shape_cast %68 : vector<1x1220x3xf32> to vector<1220x3xf32>
    %70 = arith.subf %19, %69 : vector<1220x3xf32>
    %71 = math.absf %70 : vector<1220x3xf32>
    %72 = arith.mulf %67, %71 : vector<1220x3xf32>
    %73 = vector.shape_cast %72 : vector<1220x3xf32> to vector<1x1220x3xf32>
    %cst_33 = arith.constant dense<0.000000e+00> : vector<1xf32>
    %74 = vector.multi_reduction <add>, %73, %cst_33 [1, 2] : vector<1x1220x3xf32> to vector<1xf32>
    %75 = vector.shape_cast %74 : vector<1xf32> to vector<1x1x1xf32>
    %76 = vector.extract %75[0, 0, 0] : f32 from vector<1x1x1xf32>
    %77 = vector.broadcast %76 : f32 to vector<1x1xf32>
    %c0_34 = arith.constant 0 : index
    %c0_35 = arith.constant 0 : index
    %c0_36 = arith.constant 0 : index
    %78 = vector.load %arg8[%c0_34, %c0_35, %c0_36] : memref<1x6x64xf32, #tpu.memory_space<vmem>>, vector<1x6x64xf32>
    %79 = vector.shape_cast %78 : vector<1x6x64xf32> to vector<6x64xf32>
    %cst_37 = arith.constant dense<0xFF800000> : vector<64xf32>
    %80 = vector.multi_reduction <maximumf>, %79, %cst_37 [0] : vector<6x64xf32> to vector<64xf32>
    %81 = vector.shape_cast %80 : vector<64xf32> to vector<1x64xf32>
    %82 = vector.broadcast %81 : vector<1x64xf32> to vector<6x64xf32>
    %83 = arith.subf %79, %82 : vector<6x64xf32>
    %84 = math.exp %83 : vector<6x64xf32>
    %cst_38 = arith.constant dense<0.000000e+00> : vector<64xf32>
    %85 = vector.multi_reduction <add>, %84, %cst_38 [0] : vector<6x64xf32> to vector<64xf32>
    %86 = vector.shape_cast %85 : vector<64xf32> to vector<1x64xf32>
    %87 = math.log %86 : vector<1x64xf32>
    %88 = vector.broadcast %87 : vector<1x64xf32> to vector<6x64xf32>
    %89 = arith.subf %83, %88 : vector<6x64xf32>
    %c0_39 = arith.constant 0 : index
    %c0_40 = arith.constant 0 : index
    %c0_41 = arith.constant 0 : index
    %90 = vector.load %arg9[%c0_39, %c0_40, %c0_41] : memref<1x1x64xi32, #tpu.memory_space<vmem>>, vector<1x1x64xi32>
    %91 = vector.shape_cast %90 : vector<1x1x64xi32> to vector<1x64xi32>
    %92 = tpu.iota {dimensions = array<i32: 0>} : vector<6x64xi32>
    %93 = vector.broadcast %91 : vector<1x64xi32> to vector<6x64xi32>
    %94 = arith.cmpi eq, %92, %93 : vector<6x64xi32>
    %cst_42 = arith.constant 0.000000e+00 : f32
    %95 = vector.broadcast %cst_42 : f32 to vector<6x64xf32>
    %96 = arith.subf %95, %89 : vector<6x64xf32>
    %cst_43 = arith.constant 0.000000e+00 : f32
    %97 = vector.broadcast %cst_43 : f32 to vector<6x64xf32>
    %98 = arith.select %94, %96, %97 : vector<6x64xi1>, vector<6x64xf32>
    %99 = vector.shape_cast %98 : vector<6x64xf32> to vector<1x6x64xf32>
    %cst_44 = arith.constant dense<0.000000e+00> : vector<1xf32>
    %100 = vector.multi_reduction <add>, %99, %cst_44 [1, 2] : vector<1x6x64xf32> to vector<1xf32>
    %101 = vector.shape_cast %100 : vector<1xf32> to vector<1x1x1xf32>
    %102 = vector.extract %101[0, 0, 0] : f32 from vector<1x1x1xf32>
    %103 = vector.broadcast %102 : f32 to vector<1x1xf32>
    %104 = tpu.iota {dimensions = array<i32: 1>} : vector<1x128xi32>
    %c0_i32 = arith.constant 0 : i32
    %105 = vector.broadcast %c0_i32 : i32 to vector<1x128xi32>
    %106 = arith.cmpi eq, %104, %105 : vector<1x128xi32>
    %cst_45 = arith.constant 0.000000e+00 : f32
    %107 = vector.shape_cast %39 : vector<1x1xf32> to vector<1x1xf32>
    %108 = vector.broadcast %107 : vector<1x1xf32> to vector<1x128xf32>
    %109 = vector.broadcast %cst_45 : f32 to vector<1x128xf32>
    %110 = arith.select %106, %108, %109 : vector<1x128xi1>, vector<1x128xf32>
    %c1_i32 = arith.constant 1 : i32
    %111 = vector.broadcast %c1_i32 : i32 to vector<1x128xi32>
    %112 = arith.cmpi eq, %104, %111 : vector<1x128xi32>
    %cst_46 = arith.constant 0.000000e+00 : f32
    %113 = vector.shape_cast %47 : vector<1x1xf32> to vector<1x1xf32>
    %114 = vector.broadcast %113 : vector<1x1xf32> to vector<1x128xf32>
    %115 = vector.broadcast %cst_46 : f32 to vector<1x128xf32>
    %116 = arith.select %112, %114, %115 : vector<1x128xi1>, vector<1x128xf32>
    %117 = arith.addf %110, %116 : vector<1x128xf32>
    %c2_i32 = arith.constant 2 : i32
    %118 = vector.broadcast %c2_i32 : i32 to vector<1x128xi32>
    %119 = arith.cmpi eq, %104, %118 : vector<1x128xi32>
    %cst_47 = arith.constant 0.000000e+00 : f32
    %120 = vector.shape_cast %66 : vector<1x1xf32> to vector<1x1xf32>
    %121 = vector.broadcast %120 : vector<1x1xf32> to vector<1x128xf32>
    %122 = vector.broadcast %cst_47 : f32 to vector<1x128xf32>
    %123 = arith.select %119, %121, %122 : vector<1x128xi1>, vector<1x128xf32>
    %124 = arith.addf %117, %123 : vector<1x128xf32>
    %c3_i32 = arith.constant 3 : i32
    %125 = vector.broadcast %c3_i32 : i32 to vector<1x128xi32>
    %126 = arith.cmpi eq, %104, %125 : vector<1x128xi32>
    %cst_48 = arith.constant 0.000000e+00 : f32
    %127 = vector.shape_cast %103 : vector<1x1xf32> to vector<1x1xf32>
    %128 = vector.broadcast %127 : vector<1x1xf32> to vector<1x128xf32>
    %129 = vector.broadcast %cst_48 : f32 to vector<1x128xf32>
    %130 = arith.select %126, %128, %129 : vector<1x128xi1>, vector<1x128xf32>
    %131 = arith.addf %124, %130 : vector<1x128xf32>
    %c4_i32 = arith.constant 4 : i32
    %132 = vector.broadcast %c4_i32 : i32 to vector<1x128xi32>
    %133 = arith.cmpi eq, %104, %132 : vector<1x128xi32>
    %cst_49 = arith.constant 0.000000e+00 : f32
    %134 = vector.shape_cast %77 : vector<1x1xf32> to vector<1x1xf32>
    %135 = vector.broadcast %134 : vector<1x1xf32> to vector<1x128xf32>
    %136 = vector.broadcast %cst_49 : f32 to vector<1x128xf32>
    %137 = arith.select %133, %135, %136 : vector<1x128xi1>, vector<1x128xf32>
    %138 = arith.addf %131, %137 : vector<1x128xf32>
    %139 = vector.shape_cast %138 : vector<1x128xf32> to vector<1x1x128xf32>
    %c0_50 = arith.constant 0 : index
    %c0_51 = arith.constant 0 : index
    %c0_52 = arith.constant 0 : index
    %140 = vector.load %arg10[%c0_50, %c0_51, %c0_52] : memref<1x1x128xf32, #tpu.memory_space<vmem>>, vector<1x1x128xf32>
    tpu.vector_store %arg10[%c0_50, %c0_51, %c0_52], %139 {strides = array<i32>} : memref<1x1x128xf32, #tpu.memory_space<vmem>>, vector<1x1x128xf32>,
    return
  }
  func.func @transform_0(%arg0: i32) -> (i32, i32, i32) {
    %c0_i32 = arith.constant 0 : i32
    %c0_i32_0 = arith.constant 0 : i32
    %c0_i32_1 = arith.constant 0 : i32
    return %arg0, %c0_i32, %c0_i32_0 : i32, i32, i32
  }
  func.func @transform_1(%arg0: i32) -> (i32, i32, i32) {
    %c0_i32 = arith.constant 0 : i32
    %c0_i32_0 = arith.constant 0 : i32
    %c0_i32_1 = arith.constant 0 : i32
    return %arg0, %c0_i32, %c0_i32_0 : i32, i32, i32
  }
  func.func @transform_2(%arg0: i32) -> (i32, i32, i32) {
    %c0_i32 = arith.constant 0 : i32
    %c0_i32_0 = arith.constant 0 : i32
    %c0_i32_1 = arith.constant 0 : i32
    return %arg0, %c0_i32, %c0_i32_0 : i32, i32, i32
  }
  func.func @transform_3(%arg0: i32) -> (i32, i32, i32) {
    %c0_i32 = arith.constant 0 : i32
    %c0_i32_0 = arith.constant 0 : i32
    %c0_i32_1 = arith.constant 0 : i32
    return %arg0, %c0_i32, %c0_i32_0 : i32, i32, i32
  }
  func.func @transform_4(%arg0: i32) -> (i32, i32, i32) {
    %c0_i32 = arith.constant 0 : i32
    %c0_i32_0 = arith.constant 0 : i32
    %c0_i32_1 = arith.constant 0 : i32
    return %arg0, %c0_i32, %c0_i32_0 : i32, i32, i32
  }
  func.func @transform_5(%arg0: i32) -> (i32, i32, i32) {
    %c0_i32 = arith.constant 0 : i32
    %c0_i32_0 = arith.constant 0 : i32
    %c0_i32_1 = arith.constant 0 : i32
    return %arg0, %c0_i32, %c0_i32_0 : i32, i32, i32
  }
  func.func @transform_6(%arg0: i32) -> (i32, i32) {
    %c0_i32 = arith.constant 0 : i32
    %c0_i32_0 = arith.constant 0 : i32
    %c0_i32_1 = arith.constant 0 : i32
    return %c0_i32, %c0_i32_0 : i32, i32
  }
  func.func @transform_7(%arg0: i32) -> (i32, i32, i32) {
    %c0_i32 = arith.constant 0 : i32
    %c0_i32_0 = arith.constant 0 : i32
    %c0_i32_1 = arith.constant 0 : i32
    return %arg0, %c0_i32, %c0_i32_0 : i32, i32, i32
  }
  func.func @transform_8(%arg0: i32) -> (i32, i32, i32) {
    %c0_i32 = arith.constant 0 : i32
    %c0_i32_0 = arith.constant 0 : i32
    %c0_i32_1 = arith.constant 0 : i32
    return %arg0, %c0_i32, %c0_i32_0 : i32, i32, i32
  }
  func.func @transform_9(%arg0: i32) -> (i32, i32, i32) {
    %c0_i32 = arith.constant 0 : i32
    %c0_i32_0 = arith.constant 0 : i32
    %c0_i32_1 = arith.constant 0 : i32
    return %arg0, %c0_i32, %c0_i32_0 : i32, i32, i32
  }
}

</mosaic_0001>

<llo_original>
// kernel: loss6_forward.1
$region0: #{loss6_forward.1}
  #allocation0 [shape = 'u32[]', space=smem, size = 0x4, offset = 0x4, fixed_abs, tag = 'smem constant byte address 0x4 - core index']
  #allocation1 [shape = 'u32[72,128]{1,0:T(1,128)}', space=vmem, size = 0x9000, scoped, tag = 'internal scratch']
  %s0 = inlined_call_operand.vmem [shape: f32[2,64,1220], index: 0, kind: input, shape index: {}]
  %s1 = inlined_call_operand.vmem [shape: f32[2,64,1220], index: 1, kind: input, shape index: {}]
  %s2 = inlined_call_operand.vmem [shape: f32[2,64,3], index: 2, kind: input, shape index: {}]
  %s3 = inlined_call_operand.vmem [shape: f32[2,1220,3], index: 3, kind: input, shape index: {}]
  %s4 = inlined_call_operand.vmem [shape: f32[2,1220,3], index: 4, kind: input, shape index: {}]
  %s5 = inlined_call_operand.vmem [shape: f32[2,1220,3], index: 5, kind: input, shape index: {}]
  %s6 = inlined_call_operand.vmem [shape: f32[1220,3], index: 6, kind: input, shape index: {}]
  %s7 = inlined_call_operand.vmem [shape: f32[2,6,64], index: 7, kind: input, shape index: {}]
  %s8 = inlined_call_operand.vmem [shape: s32[2,1,64], index: 8, kind: input, shape index: {}]
  %s9 = inlined_call_operand.vmem [shape: f32[2,1,128], index: 9, kind: output, shape index: {}]
  %s10 = sld [smem:[#allocation0]]
  $region69: #{loss6_forward.1} parent=0
    _
  %s12 = ssub.s32 1, %s10
  %s13 = scalar_select 0, %s12, %s10
  loop: start=0, step=1, limit=4
  $region2: #{loss6_forward.1} parent=0 // loop_pre_header
    _
  $region3: #{loss6_forward.1} parent=0 // loop_header
    %s15 = sphi 0, %s19
    %p16 = scmp.ge.s32.totalorder %s15, 4
    %s25 = sphi 0, %s27
    %s28 = sphi 0, %s25
    %s29 = sphi 0, %s28
    %s45 = sphi 0, %s29
    %s51 = sphi 0, %s53
    %s54 = sphi 0, %s51
    %s55 = sphi 0, %s54
    %s71 = sphi 0, %s55
    %s77 = sphi 0, %s79
    %s80 = sphi 0, %s77
    %s81 = sphi 0, %s80
    %s97 = sphi 0, %s81
    %s103 = sphi 0, %s105
    %s106 = sphi 0, %s103
    %s107 = sphi 0, %s106
    %s123 = sphi 0, %s107
    %s129 = sphi 0, %s131
    %s132 = sphi 0, %s129
    %s133 = sphi 0, %s132
    %s149 = sphi 0, %s133
    %s155 = sphi 0, %s157
    %s158 = sphi 0, %s155
    %s159 = sphi 0, %s158
    %s175 = sphi 0, %s159
    %s179 = sphi 0, %s179
    %s181 = sphi 0, %s179
    %s182 = sphi 0, %s181
    %s196 = sphi 0, %s182
    %s202 = sphi 0, %s204
    %s205 = sphi 0, %s202
    %s206 = sphi 0, %s205
    %s222 = sphi 0, %s206
    %s228 = sphi 0, %s230
    %s231 = sphi 0, %s228
    %s232 = sphi 0, %s231
    %s248 = sphi 0, %s232
    %s254 = sphi 0, %s256
    %s257 = sphi 0, %s254
    %s258 = sphi 0, %s257
    %s274 = sphi 0, %s258
  $region4: #{loss6_forward.1} parent=0 // loop_header_branch
    %18 = sbr.rel (%p16) target = $region8
  $region5: #{loss6_forward.1} parent=0 // loop_body
    %s20 = ssub.s32 %s15, 1
    %s21 = ssub.s32 %s15, 2
    %s22 = sadd.s32 %s15, 1
    %s23 = ssub.s32 %s15, %s22
    %p24 = scmp.eq.s32.totalorder %s23, 0
    %s26 = sadd.s32 %s25, 1
    %s27 = scalar_select %p24, %s25, %s26
    %p30 = pneg %p24
    %p31 = scmp.eq.s32.totalorder %s15, 1
    %p32 = por %p30, %p31
    %p33 = scmp.ne.s32.totalorder %s25, %s28
    %p34 = scmp.eq.s32.totalorder %s15, 0
    %p35 = por %p33, %p34
    %p36 = scmp.ne.s32.totalorder %s25, %s28
    %p37 = scmp.eq.s32.totalorder %s20, 1
    %p38 = por %p36, %p37
    %p39 = scmp.ne.s32.totalorder %s28, %s29
    %p40 = scmp.eq.s32.totalorder %s20, 0
    %p41 = por %p39, %p40
    %p42 = scmp.ne.s32.totalorder %s28, %s29
    %p43 = scmp.eq.s32.totalorder %s21, 1
    %p44 = por %p42, %p43
    %p46 = scmp.ne.s32.totalorder %s29, %s45
    %p47 = scmp.eq.s32.totalorder %s21, 0
    %p48 = por %p46, %p47
    %s49 = ssub.s32 %s15, %s22
    %p50 = scmp.eq.s32.totalorder %s49, 0
    %s52 = sadd.s32 %s51, 1
    %s53 = scalar_select %p50, %s51, %s52
    %p56 = pneg %p50
    %p57 = scmp.eq.s32.totalorder %s15, 1
    %p58 = por %p56, %p57
    %p59 = scmp.ne.s32.totalorder %s51, %s54
    %p60 = scmp.eq.s32.totalorder %s15, 0
    %p61 = por %p59, %p60
    %p62 = scmp.ne.s32.totalorder %s51, %s54
    %p63 = scmp.eq.s32.totalorder %s20, 1
    %p64 = por %p62, %p63
    %p65 = scmp.ne.s32.totalorder %s54, %s55
    %p66 = scmp.eq.s32.totalorder %s20, 0
    %p67 = por %p65, %p66
    %p68 = scmp.ne.s32.totalorder %s54, %s55
    %p69 = scmp.eq.s32.totalorder %s21, 1
    %p70 = por %p68, %p69
    %p72 = scmp.ne.s32.totalorder %s55, %s71
    %p73 = scmp.eq.s32.totalorder %s21, 0
    %p74 = por %p72, %p73
    %s75 = ssub.s32 %s15, %s22
    %p76 = scmp.eq.s32.totalorder %s75, 0
    %s78 = sadd.s32 %s77, 1
    %s79 = scalar_select %p76, %s77, %s78
    %p82 = pneg %p76
    %p83 = scmp.eq.s32.totalorder %s15, 1
    %p84 = por %p82, %p83
    %p85 = scmp.ne.s32.totalorder %s77, %s80
    %p86 = scmp.eq.s32.totalorder %s15, 0
    %p87 = por %p85, %p86
    %p88 = scmp.ne.s32.totalorder %s77, %s80
    %p89 = scmp.eq.s32.totalorder %s20, 1
    %p90 = por %p88, %p89
    %p91 = scmp.ne.s32.totalorder %s80, %s81
    %p92 = scmp.eq.s32.totalorder %s20, 0
    %p93 = por %p91, %p92
    %p94 = scmp.ne.s32.totalorder %s80, %s81
    %p95 = scmp.eq.s32.totalorder %s21, 1
    %p96 = por %p94, %p95
    %p98 = scmp.ne.s32.totalorder %s81, %s97
    %p99 = scmp.eq.s32.totalorder %s21, 0
    %p100 = por %p98, %p99
    %s101 = ssub.s32 %s15, %s22
    %p102 = scmp.eq.s32.totalorder %s101, 0
    %s104 = sadd.s32 %s103, 1
    %s105 = scalar_select %p102, %s103, %s104
    %p108 = pneg %p102
    %p109 = scmp.eq.s32.totalorder %s15, 1
    %p110 = por %p108, %p109
    %p111 = scmp.ne.s32.totalorder %s103, %s106
    %p112 = scmp.eq.s32.totalorder %s15, 0
    %p113 = por %p111, %p112
    %p114 = scmp.ne.s32.totalorder %s103, %s106
    %p115 = scmp.eq.s32.totalorder %s20, 1
    %p116 = por %p114, %p115
    %p117 = scmp.ne.s32.totalorder %s106, %s107
    %p118 = scmp.eq.s32.totalorder %s20, 0
    %p119 = por %p117, %p118
    %p120 = scmp.ne.s32.totalorder %s106, %s107
    %p121 = scmp.eq.s32.totalorder %s21, 1
    %p122 = por %p120, %p121
    %p124 = scmp.ne.s32.totalorder %s107, %s123
    %p125 = scmp.eq.s32.totalorder %s21, 0
    %p126 = por %p124, %p125
    %s127 = ssub.s32 %s15, %s22
    %p128 = scmp.eq.s32.totalorder %s127, 0
    %s130 = sadd.s32 %s129, 1
    %s131 = scalar_select %p128, %s129, %s130
    %p134 = pneg %p128
    %p135 = scmp.eq.s32.totalorder %s15, 1
    %p136 = por %p134, %p135
    %p137 = scmp.ne.s32.totalorder %s129, %s132
    %p138 = scmp.eq.s32.totalorder %s15, 0
    %p139 = por %p137, %p138
    %p140 = scmp.ne.s32.totalorder %s129, %s132
    %p141 = scmp.eq.s32.totalorder %s20, 1
    %p142 = por %p140, %p141
    %p143 = scmp.ne.s32.totalorder %s132, %s133
    %p144 = scmp.eq.s32.totalorder %s20, 0
    %p145 = por %p143, %p144
    %p146 = scmp.ne.s32.totalorder %s132, %s133
    %p147 = scmp.eq.s32.totalorder %s21, 1
    %p148 = por %p146, %p147
    %p150 = scmp.ne.s32.totalorder %s133, %s149
    %p151 = scmp.eq.s32.totalorder %s21, 0
    %p152 = por %p150, %p151
    %s153 = ssub.s32 %s15, %s22
    %p154 = scmp.eq.s32.totalorder %s153, 0
    %s156 = sadd.s32 %s155, 1
    %s157 = scalar_select %p154, %s155, %s156
    %p160 = pneg %p154
    %p161 = scmp.eq.s32.totalorder %s15, 1
    %p162 = por %p160, %p161
    %p163 = scmp.ne.s32.totalorder %s155, %s158
    %p164 = scmp.eq.s32.totalorder %s15, 0
    %p165 = por %p163, %p164
    %p166 = scmp.ne.s32.totalorder %s155, %s158
    %p167 = scmp.eq.s32.totalorder %s20, 1
    %p168 = por %p166, %p167
    %p169 = scmp.ne.s32.totalorder %s158, %s159
    %p170 = scmp.eq.s32.totalorder %s20, 0
    %p171 = por %p169, %p170
    %p172 = scmp.ne.s32.totalorder %s158, %s159
    %p173 = scmp.eq.s32.totalorder %s21, 1
    %p174 = por %p172, %p173
    %p176 = scmp.ne.s32.totalorder %s159, %s175
    %p177 = scmp.eq.s32.totalorder %s21, 0
    %p178 = por %p176, %p177
    %s180 = sadd.s32 %s179, 1
    %p183 = scmp.eq.s32.totalorder %s15, 1
    %p184 = scmp.ne.s32.totalorder %s179, %s181
    %p185 = scmp.eq.s32.totalorder %s15, 0
    %p186 = por %p184, %p185
    %p187 = scmp.ne.s32.totalorder %s179, %s181
    %p188 = scmp.eq.s32.totalorder %s20, 1
    %p189 = por %p187, %p188
    %p190 = scmp.ne.s32.totalorder %s181, %s182
    %p191 = scmp.eq.s32.totalorder %s20, 0
    %p192 = por %p190, %p191
    %p193 = scmp.ne.s32.totalorder %s181, %s182
    %p194 = scmp.eq.s32.totalorder %s21, 1
    %p195 = por %p193, %p194
    %p197 = scmp.ne.s32.totalorder %s182, %s196
    %p198 = scmp.eq.s32.totalorder %s21, 0
    %p199 = por %p197, %p198
    %s200 = ssub.s32 %s15, %s22
    %p201 = scmp.eq.s32.totalorder %s200, 0
    %s203 = sadd.s32 %s202, 1
    %s204 = scalar_select %p201, %s202, %s203
    %p207 = pneg %p201
    %p208 = scmp.eq.s32.totalorder %s15, 1
    %p209 = por %p207, %p208
    %p210 = scmp.ne.s32.totalorder %s202, %s205
    %p211 = scmp.eq.s32.totalorder %s15, 0
    %p212 = por %p210, %p211
    %p213 = scmp.ne.s32.totalorder %s202, %s205
    %p214 = scmp.eq.s32.totalorder %s20, 1
    %p215 = por %p213, %p214
    %p216 = scmp.ne.s32.totalorder %s205, %s206
    %p217 = scmp.eq.s32.totalorder %s20, 0
    %p218 = por %p216, %p217
    %p219 = scmp.ne.s32.totalorder %s205, %s206
    %p220 = scmp.eq.s32.totalorder %s21, 1
    %p221 = por %p219, %p220
    %p223 = scmp.ne.s32.totalorder %s206, %s222
    %p224 = scmp.eq.s32.totalorder %s21, 0
    %p225 = por %p223, %p224
    %s226 = ssub.s32 %s15, %s22
    %p227 = scmp.eq.s32.totalorder %s226, 0
    %s229 = sadd.s32 %s228, 1
    %s230 = scalar_select %p227, %s228, %s229
    %p233 = pneg %p227
    %p234 = scmp.eq.s32.totalorder %s15, 1
    %p235 = por %p233, %p234
    %p236 = scmp.ne.s32.totalorder %s228, %s231
    %p237 = scmp.eq.s32.totalorder %s15, 0
    %p238 = por %p236, %p237
    %p239 = scmp.ne.s32.totalorder %s228, %s231
    %p240 = scmp.eq.s32.totalorder %s20, 1
    %p241 = por %p239, %p240
    %p242 = scmp.ne.s32.totalorder %s231, %s232
    %p243 = scmp.eq.s32.totalorder %s20, 0
    %p244 = por %p242, %p243
    %p245 = scmp.ne.s32.totalorder %s231, %s232
    %p246 = scmp.eq.s32.totalorder %s21, 1
    %p247 = por %p245, %p246
    %p249 = scmp.ne.s32.totalorder %s232, %s248
    %p250 = scmp.eq.s32.totalorder %s21, 0
    %p251 = por %p249, %p250
    %s252 = ssub.s32 %s15, %s22
    %p253 = scmp.eq.s32.totalorder %s252, 0
    %s255 = sadd.s32 %s254, 1
    %s256 = scalar_select %p253, %s254, %s255
    %p259 = pneg %p253
    %p260 = scmp.eq.s32.totalorder %s15, 1
    %p261 = por %p259, %p260
    %p262 = scmp.ne.s32.totalorder %s254, %s257
    %p263 = scmp.eq.s32.totalorder %s15, 0
    %p264 = por %p262, %p263
    %p265 = scmp.ne.s32.totalorder %s254, %s257
    %p266 = scmp.eq.s32.totalorder %s20, 1
    %p267 = por %p265, %p266
    %p268 = scmp.ne.s32.totalorder %s257, %s258
    %p269 = scmp.eq.s32.totalorder %s20, 0
    %p270 = por %p268, %p269
    %p271 = scmp.ne.s32.totalorder %s257, %s258
    %p272 = scmp.eq.s32.totalorder %s21, 1
    %p273 = por %p271, %p272
    %p275 = scmp.ne.s32.totalorder %s258, %s274
    %p276 = scmp.eq.s32.totalorder %s21, 0
    %p277 = por %p275, %p276
    %p278 = scmp.le.s32.totalorder 1, %s15
    %p279 = scmp.lt.s32.totalorder %s15, 3
    %p280 = pnand %p278, %p279
    %p281 = pneg %p280
    // Predicated region
    $region9: #{loss6_forward.1} parent=5 // pred_check
      _
    $region10: #{loss6_forward.1} parent=5 // pred_check_branch
      %283 = sbr.rel (%p280) target = $region12
    $region11: #{loss6_forward.1} parent=5 // pred_region
      %s284 = ssub.s32 %s15, 1
      // Predicated region
      $region13: #{loss6_forward.1} parent=11 // pred_check
        %p285 = pneg %p192
      $region14: #{loss6_forward.1} parent=11 // pred_check_branch
        %287 = sbr.rel (%p285) target = $region16
      $region15: #{loss6_forward.1} parent=11 // pred_region
        _
      $region16: #{loss6_forward.1} parent=11 // pred_fallthru
        _
    $region12: #{loss6_forward.1} parent=5 // pred_fallthru
      _
    %p288 = scmp.lt.s32.totalorder %s15, 2
    // Predicated region
    $region17: #{loss6_forward.1} parent=5 // pred_check
      %p289 = pneg %p288
    $region18: #{loss6_forward.1} parent=5 // pred_check_branch
      %291 = sbr.rel (%p289) target = $region20
    $region19: #{loss6_forward.1} parent=5 // pred_region
      // Predicated region
      $region21: #{loss6_forward.1} parent=19 // pred_check
        %p292 = pneg %p35
      $region22: #{loss6_forward.1} parent=19 // pred_check_branch
        %294 = sbr.rel (%p292) target = $region24
      $region23: #{loss6_forward.1} parent=19 // pred_region
        %p295 = scmp.lt.s32.totalorder %s15, 1
        %s296 = scalar_select %p295, %s15, 1
        %s297 = smul.addr %s296, 80
        %s298 = smul.addr %s297, 8
        %s299 = scalar_lea.vmem %s0, %s298
      $region24: #{loss6_forward.1} parent=19 // pred_fallthru
        _
      // Predicated region
      $region25: #{loss6_forward.1} parent=19 // pred_check
        %p300 = pneg %p61
      $region26: #{loss6_forward.1} parent=19 // pred_check_branch
        %302 = sbr.rel (%p300) target = $region28
      $region27: #{loss6_forward.1} parent=19 // pred_region
        %p303 = scmp.lt.s32.totalorder %s15, 1
        %s304 = scalar_select %p303, %s15, 1
        %s305 = smul.addr %s304, 80
        %s306 = smul.addr %s305, 8
        %s307 = scalar_lea.vmem %s1, %s306
      $region28: #{loss6_forward.1} parent=19 // pred_fallthru
        _
      // Predicated region
      $region29: #{loss6_forward.1} parent=19 // pred_check
        %p308 = pneg %p87
      $region30: #{loss6_forward.1} parent=19 // pred_check_branch
        %310 = sbr.rel (%p308) target = $region32
      $region31: #{loss6_forward.1} parent=19 // pred_region
        %p311 = scmp.lt.s32.totalorder %s15, 1
        %s312 = scalar_select %p311, %s15, 1
        %s313 = smul.addr %s312, 8
        %s314 = smul.addr %s313, 8
        %s315 = scalar_lea.vmem %s2, %s314
      $region32: #{loss6_forward.1} parent=19 // pred_fallthru
        _
      // Predicated region
      $region33: #{loss6_forward.1} parent=19 // pred_check
        %p316 = pneg %p113
      $region34: #{loss6_forward.1} parent=19 // pred_check_branch
        %318 = sbr.rel (%p316) target = $region36
      $region35: #{loss6_forward.1} parent=19 // pred_region
        %p319 = scmp.lt.s32.totalorder %s15, 1
        %s320 = scalar_select %p319, %s15, 1
        %s321 = smul.addr %s320, 153
        %s322 = smul.addr %s321, 8
        %s323 = scalar_lea.vmem %s3, %s322
      $region36: #{loss6_forward.1} parent=19 // pred_fallthru
        _
      // Predicated region
      $region37: #{loss6_forward.1} parent=19 // pred_check
        %p324 = pneg %p139
      $region38: #{loss6_forward.1} parent=19 // pred_check_branch
        %326 = sbr.rel (%p324) target = $region40
      $region39: #{loss6_forward.1} parent=19 // pred_region
        %p327 = scmp.lt.s32.totalorder %s15, 1
        %s328 = scalar_select %p327, %s15, 1
        %s329 = smul.addr %s328, 153
        %s330 = smul.addr %s329, 8
        %s331 = scalar_lea.vmem %s4, %s330
      $region40: #{loss6_forward.1} parent=19 // pred_fallthru
        _
      // Predicated region
      $region41: #{loss6_forward.1} parent=19 // pred_check
        %p332 = pneg %p165
      $region42: #{loss6_forward.1} parent=19 // pred_check_branch
        %334 = sbr.rel (%p332) target = $region44
      $region43: #{loss6_forward.1} parent=19 // pred_region
        %p335 = scmp.lt.s32.totalorder %s15, 1
        %s336 = scalar_select %p335, %s15, 1
        %s337 = smul.addr %s336, 153
        %s338 = smul.addr %s337, 8
        %s339 = scalar_lea.vmem %s5, %s338
      $region44: #{loss6_forward.1} parent=19 // pred_fallthru
        _
      // Predicated region
      $region45: #{loss6_forward.1} parent=19 // pred_check
        %p340 = pneg %p212
      $region46: #{loss6_forward.1} parent=19 // pred_check_branch
        %342 = sbr.rel (%p340) target = $region48
      $region47: #{loss6_forward.1} parent=19 // pred_region
        %p343 = scmp.lt.s32.totalorder %s15, 1
        %s344 = scalar_select %p343, %s15, 1
        %s345 = smul.addr %s344, 8
        %s346 = scalar_lea.vmem %s7, %s345
      $region48: #{loss6_forward.1} parent=19 // pred_fallthru
        _
      // Predicated region
      $region49: #{loss6_forward.1} parent=19 // pred_check
        %p347 = pneg %p238
      $region50: #{loss6_forward.1} parent=19 // pred_check_branch
        %349 = sbr.rel (%p347) target = $region52
      $region51: #{loss6_forward.1} parent=19 // pred_region
        %p350 = scmp.lt.s32.totalorder %s15, 1
        %s351 = scalar_select %p350, %s15, 1
        %s352 = scalar_lea.vmem %s8, %s351
      $region52: #{loss6_forward.1} parent=19 // pred_fallthru
        _
    $region20: #{loss6_forward.1} parent=5 // pred_fallthru
      _
    %p353 = scmp.le.s32.totalorder 1, %s15
    %p354 = scmp.lt.s32.totalorder %s15, 3
    %p355 = pnand %p353, %p354
    %p356 = pneg %p355
    // Predicated region
    $region53: #{loss6_forward.1} parent=5 // pred_check
      _
    $region54: #{loss6_forward.1} parent=5 // pred_check_branch
      %358 = sbr.rel (%p355) target = $region56
    $region55: #{loss6_forward.1} parent=5 // pred_region
      %s359 = ssub.s32 %s15, 1
      %p360 = scmp.lt.s32.totalorder %s20, 1
      %s361 = scalar_select %p360, %s20, 1
      %s362 = smul.addr %s361, 80
      %s363 = smul.addr %s362, 8
      %s364 = scalar_lea.vmem %s0, %s363
      %p365 = pneg %p41
      %p366 = pneg %p38
      %p367 = scmp.lt.s32.totalorder %s20, 1
      %s368 = scalar_select %p367, %s20, 1
      %s369 = smul.addr %s368, 80
      %s370 = smul.addr %s369, 8
      %s371 = scalar_lea.vmem %s1, %s370
      %p372 = pneg %p67
      %p373 = pneg %p64
      %p374 = scmp.lt.s32.totalorder %s20, 1
      %s375 = scalar_select %p374, %s20, 1
      %s376 = smul.addr %s375, 8
      %s377 = smul.addr %s376, 8
      %s378 = scalar_lea.vmem %s2, %s377
      %p379 = pneg %p93
      %p380 = pneg %p90
      %p381 = scmp.lt.s32.totalorder %s20, 1
      %s382 = scalar_select %p381, %s20, 1
      %s383 = smul.addr %s382, 153
      %s384 = smul.addr %s383, 8
      %s385 = scalar_lea.vmem %s3, %s384
      %p386 = pneg %p119
      %p387 = pneg %p116
      %p388 = scmp.lt.s32.totalorder %s20, 1
      %s389 = scalar_select %p388, %s20, 1
      %s390 = smul.addr %s389, 153
      %s391 = smul.addr %s390, 8
      %s392 = scalar_lea.vmem %s4, %s391
      %p393 = pneg %p145
      %p394 = pneg %p142
      %p395 = scmp.lt.s32.totalorder %s20, 1
      %s396 = scalar_select %p395, %s20, 1
      %s397 = smul.addr %s396, 153
      %s398 = smul.addr %s397, 8
      %s399 = scalar_lea.vmem %s5, %s398
      %p400 = pneg %p171
      %p401 = pneg %p168
      %p402 = pneg %p192
      %p403 = pneg %p189
      %p404 = scmp.lt.s32.totalorder %s20, 1
      %s405 = scalar_select %p404, %s20, 1
      %s406 = smul.addr %s405, 8
      %s407 = scalar_lea.vmem %s7, %s406
      %p408 = pneg %p218
      %p409 = pneg %p215
      %p410 = scmp.lt.s32.totalorder %s20, 1
      %s411 = scalar_select %p410, %s20, 1
      %s412 = scalar_lea.vmem %s8, %s411
      %p413 = pneg %p244
      %p414 = pneg %p241
      %p415 = pneg %p270
      %p416 = pneg %p267
      %p417 = scmp.lt.s32.totalorder %s20, 1
      %s418 = scalar_select %p417, %s20, 1
      %s419 = scalar_lea.vmem %s9, %s418
      %p420 = scmp.lt.s32.totalorder %s20, 1
      %s421 = scalar_select %p420, %s20, 1
      %s422 = smul.addr %s421, 80
      %s423 = smul.addr %s422, 8
      %s424 = scalar_lea.vmem %s0, %s423
      %p425 = scmp.lt.s32.totalorder %s20, 1
      %s426 = scalar_select %p425, %s20, 1
      %s427 = smul.addr %s426, 80
      %s428 = smul.addr %s427, 8
      %s429 = scalar_lea.vmem %s1, %s428
      %p430 = scmp.lt.s32.totalorder %s20, 1
      %s431 = scalar_select %p430, %s20, 1
      %s432 = smul.addr %s431, 8
      %s433 = smul.addr %s432, 8
      %s434 = scalar_lea.vmem %s2, %s433
      %p435 = scmp.lt.s32.totalorder %s20, 1
      %s436 = scalar_select %p435, %s20, 1
      %s437 = smul.addr %s436, 153
      %s438 = smul.addr %s437, 8
      %s439 = scalar_lea.vmem %s3, %s438
      %p440 = scmp.lt.s32.totalorder %s20, 1
      %s441 = scalar_select %p440, %s20, 1
      %s442 = smul.addr %s441, 153
      %s443 = smul.addr %s442, 8
      %s444 = scalar_lea.vmem %s4, %s443
      %p445 = scmp.lt.s32.totalorder %s20, 1
      %s446 = scalar_select %p445, %s20, 1
      %s447 = smul.addr %s446, 153
      %s448 = smul.addr %s447, 8
      %s449 = scalar_lea.vmem %s5, %s448
      %p450 = scmp.lt.s32.totalorder %s20, 1
      %s451 = scalar_select %p450, %s20, 1
      %s452 = smul.addr %s451, 8
      %s453 = scalar_lea.vmem %s7, %s452
      %p454 = scmp.lt.s32.totalorder %s20, 1
      %s455 = scalar_select %p454, %s20, 1
      %s456 = scalar_lea.vmem %s8, %s455
      %p457 = scmp.lt.s32.totalorder %s20, 1
      %s458 = scalar_select %p457, %s20, 1
      %s459 = scalar_lea.vmem %s9, %s458
      %v460 = vld [vmem:[%s424] sm:$0xff]
      %v461 = vld [vmem:[%s424 + $0x8] sm:$0xff]
      %v462 = vld [vmem:[%s424 + $0x10] sm:$0xff]
      %v463 = vld [vmem:[%s424 + $0x18] sm:$0xff]
      %v464 = vld [vmem:[%s424 + $0x20] sm:$0xff]
      %v465 = vld [vmem:[%s424 + $0x28] sm:$0xff]
      %v466 = vld [vmem:[%s424 + $0x30] sm:$0xff]
      %v467 = vld [vmem:[%s424 + $0x38] sm:$0xff]
      %v468 = vld [vmem:[%s424 + $0x40] sm:$0xff]
      %v469 = vld [vmem:[%s424 + $0x48] sm:$0xff]
      %v470 = vld [vmem:[%s424 + $0x50] sm:$0xff]
      %v471 = vld [vmem:[%s424 + $0x58] sm:$0xff]
      %v472 = vld [vmem:[%s424 + $0x60] sm:$0xff]
      %v473 = vld [vmem:[%s424 + $0x68] sm:$0xff]
      %v474 = vld [vmem:[%s424 + $0x70] sm:$0xff]
      %v475 = vld [vmem:[%s424 + $0x78] sm:$0xff]
      %v476 = vld [vmem:[%s424 + $0x80] sm:$0xff]
      %v477 = vld [vmem:[%s424 + $0x88] sm:$0xff]
      %v478 = vld [vmem:[%s424 + $0x90] sm:$0xff]
      %v479 = vld [vmem:[%s424 + $0x98] sm:$0xff]
      %v480 = vld [vmem:[%s424 + $0xa0] sm:$0xff]
      %v481 = vld [vmem:[%s424 + $0xa8] sm:$0xff]
      %v482 = vld [vmem:[%s424 + $0xb0] sm:$0xff]
      %v483 = vld [vmem:[%s424 + $0xb8] sm:$0xff]
      %v484 = vld [vmem:[%s424 + $0xc0] sm:$0xff]
      %v485 = vld [vmem:[%s424 + $0xc8] sm:$0xff]
      %v486 = vld [vmem:[%s424 + $0xd0] sm:$0xff]
      %v487 = vld [vmem:[%s424 + $0xd8] sm:$0xff]
      %v488 = vld [vmem:[%s424 + $0xe0] sm:$0xff]
      %v489 = vld [vmem:[%s424 + $0xe8] sm:$0xff]
      %v490 = vld [vmem:[%s424 + $0xf0] sm:$0xff]
      %v491 = vld [vmem:[%s424 + $0xf8] sm:$0xff]
      %v492 = vld [vmem:[%s424 + $0x100] sm:$0xff]
      %v493 = vld [vmem:[%s424 + $0x108] sm:$0xff]
      %v494 = vld [vmem:[%s424 + $0x110] sm:$0xff]
      %v495 = vld [vmem:[%s424 + $0x118] sm:$0xff]
      %v496 = vld [vmem:[%s424 + $0x120] sm:$0xff]
      %v497 = vld [vmem:[%s424 + $0x128] sm:$0xff]
      %v498 = vld [vmem:[%s424 + $0x130] sm:$0xff]
      %v499 = vld [vmem:[%s424 + $0x138] sm:$0xff]
      %v500 = vld [vmem:[%s424 + $0x140] sm:$0xff]
      %v501 = vld [vmem:[%s424 + $0x148] sm:$0xff]
      %v502 = vld [vmem:[%s424 + $0x150] sm:$0xff]
      %v503 = vld [vmem:[%s424 + $0x158] sm:$0xff]
      %v504 = vld [vmem:[%s424 + $0x160] sm:$0xff]
      %v505 = vld [vmem:[%s424 + $0x168] sm:$0xff]
      %v506 = vld [vmem:[%s424 + $0x170] sm:$0xff]
      %v507 = vld [vmem:[%s424 + $0x178] sm:$0xff]
      %v508 = vld [vmem:[%s424 + $0x180] sm:$0xff]
      %v509 = vld [vmem:[%s424 + $0x188] sm:$0xff]
      %v510 = vld [vmem:[%s424 + $0x190] sm:$0xff]
      %v511 = vld [vmem:[%s424 + $0x198] sm:$0xff]
      %v512 = vld [vmem:[%s424 + $0x1a0] sm:$0xff]
      %v513 = vld [vmem:[%s424 + $0x1a8] sm:$0xff]
      %v514 = vld [vmem:[%s424 + $0x1b0] sm:$0xff]
      %v515 = vld [vmem:[%s424 + $0x1b8] sm:$0xff]
      %v516 = vld [vmem:[%s424 + $0x1c0] sm:$0xff]
      %v517 = vld [vmem:[%s424 + $0x1c8] sm:$0xff]
      %v518 = vld [vmem:[%s424 + $0x1d0] sm:$0xff]
      %v519 = vld [vmem:[%s424 + $0x1d8] sm:$0xff]
      %v520 = vld [vmem:[%s424 + $0x1e0] sm:$0xff]
      %v521 = vld [vmem:[%s424 + $0x1e8] sm:$0xff]
      %v522 = vld [vmem:[%s424 + $0x1f0] sm:$0xff]
      %v523 = vld [vmem:[%s424 + $0x1f8] sm:$0xff]
      %v524 = vld [vmem:[%s424 + $0x200] sm:$0xff]
      %v525 = vld [vmem:[%s424 + $0x208] sm:$0xff]
      %v526 = vld [vmem:[%s424 + $0x210] sm:$0xff]
      %v527 = vld [vmem:[%s424 + $0x218] sm:$0xff]
      %v528 = vld [vmem:[%s424 + $0x220] sm:$0xff]
      %v529 = vld [vmem:[%s424 + $0x228] sm:$0xff]
      %v530 = vld [vmem:[%s424 + $0x230] sm:$0xff]
      %v531 = vld [vmem:[%s424 + $0x238] sm:$0xff]
      %v532 = vld [vmem:[%s424 + $0x240] sm:$0xff]
      %v533 = vld [vmem:[%s424 + $0x248] sm:$0xff]
      %v534 = vld [vmem:[%s424 + $0x250] sm:$0xff]
      %v535 = vld [vmem:[%s424 + $0x258] sm:$0xff]
      %v536 = vld [vmem:[%s424 + $0x260] sm:$0xff]
      %v537 = vld [vmem:[%s424 + $0x268] sm:$0xff]
      %v538 = vld [vmem:[%s424 + $0x270] sm:$0xff]
      %v539 = vld [vmem:[%s424 + $0x278] sm:$0xff]
      %v540 = vmax.f32 %v460, %v461
      %v541 = vmax.f32 %v540, %v462
      %v542 = vmax.f32 %v541, %v463
      %v543 = vmax.f32 %v542, %v464
      %v544 = vmax.f32 %v543, %v465
      %v545 = vmax.f32 %v544, %v466
      %v546 = vmax.f32 %v545, %v467
      %v547 = vmax.f32 %v546, %v468
      %vm548 = vcmask 556032
      %v549 = vsel %vm548, %v469, -inf
      %v550 = vmax.f32 %v547, %v549
      %551 = vmax.xlane.f32.xlu0 %v550
      %v552 = vpop.xlane.xlu0 %551
      %v553 = vmax.f32 %v470, %v471
      %v554 = vmax.f32 %v553, %v472
      %v555 = vmax.f32 %v554, %v473
      %v556 = vmax.f32 %v555, %v474
      %v557 = vmax.f32 %v556, %v475
      %v558 = vmax.f32 %v557, %v476
      %v559 = vmax.f32 %v558, %v477
      %v560 = vmax.f32 %v559, %v478
      %v561 = vsel %vm548, %v479, -inf
      %v562 = vmax.f32 %v560, %v561
      %563 = vmax.xlane.f32.xlu0 %v562
      %v564 = vpop.xlane.xlu0 %563
      %v565 = vmax.f32 %v480, %v481
      %v566 = vmax.f32 %v565, %v482
      %v567 = vmax.f32 %v566, %v483
      %v568 = vmax.f32 %v567, %v484
      %v569 = vmax.f32 %v568, %v485
      %v570 = vmax.f32 %v569, %v486
      %v571 = vmax.f32 %v570, %v487
      %v572 = vmax.f32 %v571, %v488
      %v573 = vsel %vm548, %v489, -inf
      %v574 = vmax.f32 %v572, %v573
      %575 = vmax.xlane.f32.xlu0 %v574
      %v576 = vpop.xlane.xlu0 %575
      %v577 = vmax.f32 %v490, %v491
      %v578 = vmax.f32 %v577, %v492
      %v579 = vmax.f32 %v578, %v493
      %v580 = vmax.f32 %v579, %v494
      %v581 = vmax.f32 %v580, %v495
      %v582 = vmax.f32 %v581, %v496
      %v583 = vmax.f32 %v582, %v497
      %v584 = vmax.f32 %v583, %v498
      %v585 = vsel %vm548, %v499, -inf
      %v586 = vmax.f32 %v584, %v585
      %587 = vmax.xlane.f32.xlu0 %v586
      %v588 = vpop.xlane.xlu0 %587
      %v589 = vmax.f32 %v500, %v501
      %v590 = vmax.f32 %v589, %v502
      %v591 = vmax.f32 %v590, %v503
      %v592 = vmax.f32 %v591, %v504
      %v593 = vmax.f32 %v592, %v505
      %v594 = vmax.f32 %v593, %v506
      %v595 = vmax.f32 %v594, %v507
      %v596 = vmax.f32 %v595, %v508
      %v597 = vsel %vm548, %v509, -inf
      %v598 = vmax.f32 %v596, %v597
      %599 = vmax.xlane.f32.xlu0 %v598
      %v600 = vpop.xlane.xlu0 %599
      %v601 = vmax.f32 %v510, %v511
      %v602 = vmax.f32 %v601, %v512
      %v603 = vmax.f32 %v602, %v513
      %v604 = vmax.f32 %v603, %v514
      %v605 = vmax.f32 %v604, %v515
      %v606 = vmax.f32 %v605, %v516
      %v607 = vmax.f32 %v606, %v517
      %v608 = vmax.f32 %v607, %v518
      %v609 = vsel %vm548, %v519, -inf
      %v610 = vmax.f32 %v608, %v609
      %611 = vmax.xlane.f32.xlu0 %v610
      %v612 = vpop.xlane.xlu0 %611
      %v613 = vmax.f32 %v520, %v521
      %v614 = vmax.f32 %v613, %v522
      %v615 = vmax.f32 %v614, %v523
      %v616 = vmax.f32 %v615, %v524
      %v617 = vmax.f32 %v616, %v525
      %v618 = vmax.f32 %v617, %v526
      %v619 = vmax.f32 %v618, %v527
      %v620 = vmax.f32 %v619, %v528
      %v621 = vsel %vm548, %v529, -inf
      %v622 = vmax.f32 %v620, %v621
      %623 = vmax.xlane.f32.xlu0 %v622
      %v624 = vpop.xlane.xlu0 %623
      %v625 = vmax.f32 %v530, %v531
      %v626 = vmax.f32 %v625, %v532
      %v627 = vmax.f32 %v626, %v533
      %v628 = vmax.f32 %v627, %v534
      %v629 = vmax.f32 %v628, %v535
      %v630 = vmax.f32 %v629, %v536
      %v631 = vmax.f32 %v630, %v537
      %v632 = vmax.f32 %v631, %v538
      %v633 = vsel %vm548, %v539, -inf
      %v634 = vmax.f32 %v632, %v633
      %635 = vmax.xlane.f32.xlu0 %v634
      %v636 = vpop.xlane.xlu0 %635
      %v637 = vsub.f32 %v460, %v552
      %v638 = vsub.f32 %v461, %v552
      %v639 = vsub.f32 %v462, %v552
      %v640 = vsub.f32 %v463, %v552
      %v641 = vsub.f32 %v464, %v552
      %v642 = vsub.f32 %v465, %v552
      %v643 = vsub.f32 %v466, %v552
      %v644 = vsub.f32 %v467, %v552
      %v645 = vsub.f32 %v468, %v552
      %v646 = vsub.f32 %v469, %v552
      %v647 = vsub.f32 %v470, %v564
      %v648 = vsub.f32 %v471, %v564
      %v649 = vsub.f32 %v472, %v564
      %v650 = vsub.f32 %v473, %v564
      %v651 = vsub.f32 %v474, %v564
      %v652 = vsub.f32 %v475, %v564
      %v653 = vsub.f32 %v476, %v564
      %v654 = vsub.f32 %v477, %v564
      %v655 = vsub.f32 %v478, %v564
      %v656 = vsub.f32 %v479, %v564
      %v657 = vsub.f32 %v480, %v576
      %v658 = vsub.f32 %v481, %v576
      %v659 = vsub.f32 %v482, %v576
      %v660 = vsub.f32 %v483, %v576
      %v661 = vsub.f32 %v484, %v576
      %v662 = vsub.f32 %v485, %v576
      %v663 = vsub.f32 %v486, %v576
      %v664 = vsub.f32 %v487, %v576
      %v665 = vsub.f32 %v488, %v576
      %v666 = vsub.f32 %v489, %v576
      %v667 = vsub.f32 %v490, %v588
      %v668 = vsub.f32 %v491, %v588
      %v669 = vsub.f32 %v492, %v588
      %v670 = vsub.f32 %v493, %v588
      %v671 = vsub.f32 %v494, %v588
      %v672 = vsub.f32 %v495, %v588
      %v673 = vsub.f32 %v496, %v588
      %v674 = vsub.f32 %v497, %v588
      %v675 = vsub.f32 %v498, %v588
      %v676 = vsub.f32 %v499, %v588
      %v677 = vsub.f32 %v500, %v600
      %v678 = vsub.f32 %v501, %v600
      %v679 = vsub.f32 %v502, %v600
      %v680 = vsub.f32 %v503, %v600
      %v681 = vsub.f32 %v504, %v600
      %v682 = vsub.f32 %v505, %v600
      %v683 = vsub.f32 %v506, %v600
      %v684 = vsub.f32 %v507, %v600
      %v685 = vsub.f32 %v508, %v600
      %v686 = vsub.f32 %v509, %v600
      %v687 = vsub.f32 %v510, %v612
      %v688 = vsub.f32 %v511, %v612
      %v689 = vsub.f32 %v512, %v612
      %v690 = vsub.f32 %v513, %v612
      %v691 = vsub.f32 %v514, %v612
      %v692 = vsub.f32 %v515, %v612
      %v693 = vsub.f32 %v516, %v612
      %v694 = vsub.f32 %v517, %v612
      %v695 = vsub.f32 %v518, %v612
      %v696 = vsub.f32 %v519, %v612
      %v697 = vsub.f32 %v520, %v624
      %v698 = vsub.f32 %v521, %v624
      %v699 = vsub.f32 %v522, %v624
      %v700 = vsub.f32 %v523, %v624
      %v701 = vsub.f32 %v524, %v624
      %v702 = vsub.f32 %v525, %v624
      %v703 = vsub.f32 %v526, %v624
      %v704 = vsub.f32 %v527, %v624
      %v705 = vsub.f32 %v528, %v624
      %v706 = vsub.f32 %v529, %v624
      %v707 = vsub.f32 %v530, %v636
      %v708 = vsub.f32 %v531, %v636
      %v709 = vsub.f32 %v532, %v636
      %v710 = vsub.f32 %v533, %v636
      %v711 = vsub.f32 %v534, %v636
      %v712 = vsub.f32 %v535, %v636
      %v713 = vsub.f32 %v536, %v636
      %v714 = vsub.f32 %v537, %v636
      %v715 = vsub.f32 %v538, %v636
      %v716 = vsub.f32 %v539, %v636
      %v717 = vmul.f32 %v637, 1.442695
      %v718 = vpow.pop %v717
      %v719 = vmul.f32 %v638, 1.442695
      %v720 = vpow.pop %v719
      %v721 = vmul.f32 %v639, 1.442695
      %v722 = vpow.pop %v721
      %v723 = vmul.f32 %v640, 1.442695
      %v724 = vpow.pop %v723
      %v725 = vmul.f32 %v641, 1.442695
      %v726 = vpow.pop %v725
      %v727 = vmul.f32 %v642, 1.442695
      %v728 = vpow.pop %v727
      %v729 = vmul.f32 %v643, 1.442695
      %v730 = vpow.pop %v729
      %v731 = vmul.f32 %v644, 1.442695
      %v732 = vpow.pop %v731
      %v733 = vmul.f32 %v645, 1.442695
      %v734 = vpow.pop %v733
      %v735 = vmul.f32 %v646, 1.442695
      %v736 = vpow.pop %v735
      %v737 = vmul.f32 %v647, 1.442695
      %v738 = vpow.pop %v737
      %v739 = vmul.f32 %v648, 1.442695
      %v740 = vpow.pop %v739
      %v741 = vmul.f32 %v649, 1.442695
      %v742 = vpow.pop %v741
      %v743 = vmul.f32 %v650, 1.442695
      %v744 = vpow.pop %v743
      %v745 = vmul.f32 %v651, 1.442695
      %v746 = vpow.pop %v745
      %v747 = vmul.f32 %v652, 1.442695
      %v748 = vpow.pop %v747
      %v749 = vmul.f32 %v653, 1.442695
      %v750 = vpow.pop %v749
      %v751 = vmul.f32 %v654, 1.442695
      %v752 = vpow.pop %v751
      %v753 = vmul.f32 %v655, 1.442695
      %v754 = vpow.pop %v753
      %v755 = vmul.f32 %v656, 1.442695
      %v756 = vpow.pop %v755
      %v757 = vmul.f32 %v657, 1.442695
      %v758 = vpow.pop %v757
      %v759 = vmul.f32 %v658, 1.442695
      %v760 = vpow.pop %v759
      %v761 = vmul.f32 %v659, 1.442695
      %v762 = vpow.pop %v761
      %v763 = vmul.f32 %v660, 1.442695
      %v764 = vpow.pop %v763
      %v765 = vmul.f32 %v661, 1.442695
      %v766 = vpow.pop %v765
      %v767 = vmul.f32 %v662, 1.442695
      %v768 = vpow.pop %v767
      %v769 = vmul.f32 %v663, 1.442695
      %v770 = vpow.pop %v769
      %v771 = vmul.f32 %v664, 1.442695
      %v772 = vpow.pop %v771
      %v773 = vmul.f32 %v665, 1.442695
      %v774 = vpow.pop %v773
      %v775 = vmul.f32 %v666, 1.442695
      %v776 = vpow.pop %v775
      %v777 = vmul.f32 %v667, 1.442695
      %v778 = vpow.pop %v777
      %v779 = vmul.f32 %v668, 1.442695
      %v780 = vpow.pop %v779
      %v781 = vmul.f32 %v669, 1.442695
      %v782 = vpow.pop %v781
      %v783 = vmul.f32 %v670, 1.442695
      %v784 = vpow.pop %v783
      %v785 = vmul.f32 %v671, 1.442695
      %v786 = vpow.pop %v785
      %v787 = vmul.f32 %v672, 1.442695
      %v788 = vpow.pop %v787
      %v789 = vmul.f32 %v673, 1.442695
      %v790 = vpow.pop %v789
      %v791 = vmul.f32 %v674, 1.442695
      %v792 = vpow.pop %v791
      %v793 = vmul.f32 %v675, 1.442695
      %v794 = vpow.pop %v793
      %v795 = vmul.f32 %v676, 1.442695
      %v796 = vpow.pop %v795
      %v797 = vmul.f32 %v677, 1.442695
      %v798 = vpow.pop %v797
      %v799 = vmul.f32 %v678, 1.442695
      %v800 = vpow.pop %v799
      %v801 = vmul.f32 %v679, 1.442695
      %v802 = vpow.pop %v801
      %v803 = vmul.f32 %v680, 1.442695
      %v804 = vpow.pop %v803
      %v805 = vmul.f32 %v681, 1.442695
      %v806 = vpow.pop %v805
      %v807 = vmul.f32 %v682, 1.442695
      %v808 = vpow.pop %v807
      %v809 = vmul.f32 %v683, 1.442695
      %v810 = vpow.pop %v809
      %v811 = vmul.f32 %v684, 1.442695
      %v812 = vpow.pop %v811
      %v813 = vmul.f32 %v685, 1.442695
      %v814 = vpow.pop %v813
      %v815 = vmul.f32 %v686, 1.442695
      %v816 = vpow.pop %v815
      %v817 = vmul.f32 %v687, 1.442695
      %v818 = vpow.pop %v817
      %v819 = vmul.f32 %v688, 1.442695
      %v820 = vpow.pop %v819
      %v821 = vmul.f32 %v689, 1.442695
      %v822 = vpow.pop %v821
      %v823 = vmul.f32 %v690, 1.442695
      %v824 = vpow.pop %v823
      %v825 = vmul.f32 %v691, 1.442695
      %v826 = vpow.pop %v825
      %v827 = vmul.f32 %v692, 1.442695
      %v828 = vpow.pop %v827
      %v829 = vmul.f32 %v693, 1.442695
      %v830 = vpow.pop %v829
      %v831 = vmul.f32 %v694, 1.442695
      %v832 = vpow.pop %v831
      %v833 = vmul.f32 %v695, 1.442695
      %v834 = vpow.pop %v833
      %v835 = vmul.f32 %v696, 1.442695
      %v836 = vpow.pop %v835
      %v837 = vmul.f32 %v697, 1.442695
      %v838 = vpow.pop %v837
      %v839 = vmul.f32 %v698, 1.442695
      %v840 = vpow.pop %v839
      %v841 = vmul.f32 %v699, 1.442695
      %v842 = vpow.pop %v841
      %v843 = vmul.f32 %v700, 1.442695
      %v844 = vpow.pop %v843
      %v845 = vmul.f32 %v701, 1.442695
      %v846 = vpow.pop %v845
      %v847 = vmul.f32 %v702, 1.442695
      %v848 = vpow.pop %v847
      %v849 = vmul.f32 %v703, 1.442695
      %v850 = vpow.pop %v849
      %v851 = vmul.f32 %v704, 1.442695
      %v852 = vpow.pop %v851
      %v853 = vmul.f32 %v705, 1.442695
      %v854 = vpow.pop %v853
      %v855 = vmul.f32 %v706, 1.442695
      %v856 = vpow.pop %v855
      %v857 = vmul.f32 %v707, 1.442695
      %v858 = vpow.pop %v857
      %v859 = vmul.f32 %v708, 1.442695
      %v860 = vpow.pop %v859
      %v861 = vmul.f32 %v709, 1.442695
      %v862 = vpow.pop %v861
      %v863 = vmul.f32 %v710, 1.442695
      %v864 = vpow.pop %v863
      %v865 = vmul.f32 %v711, 1.442695
      %v866 = vpow.pop %v865
      %v867 = vmul.f32 %v712, 1.442695
      %v868 = vpow.pop %v867
      %v869 = vmul.f32 %v713, 1.442695
      %v870 = vpow.pop %v869
      %v871 = vmul.f32 %v714, 1.442695
      %v872 = vpow.pop %v871
      %v873 = vmul.f32 %v715, 1.442695
      %v874 = vpow.pop %v873
      %v875 = vmul.f32 %v716, 1.442695
      %v876 = vpow.pop %v875
      %v877 = vadd.f32 %v718, %v720
      %v878 = vadd.f32 %v877, %v722
      %v879 = vadd.f32 %v878, %v724
      %v880 = vadd.f32 %v879, %v726
      %v881 = vadd.f32 %v880, %v728
      %v882 = vadd.f32 %v881, %v730
      %v883 = vadd.f32 %v882, %v732
      %v884 = vadd.f32 %v883, %v734
      %v885 = vsel %vm548, %v736, 0.0
      %v886 = vadd.f32 %v884, %v885
      %887 = vadd.xlane.f32.xlu0 %v886
      %v888 = vpop.xlane.xlu0 %887
      %v889 = vadd.f32 %v738, %v740
      %v890 = vadd.f32 %v889, %v742
      %v891 = vadd.f32 %v890, %v744
      %v892 = vadd.f32 %v891, %v746
      %v893 = vadd.f32 %v892, %v748
      %v894 = vadd.f32 %v893, %v750
      %v895 = vadd.f32 %v894, %v752
      %v896 = vadd.f32 %v895, %v754
      %v897 = vsel %vm548, %v756, 0.0
      %v898 = vadd.f32 %v896, %v897
      %899 = vadd.xlane.f32.xlu0 %v898
      %v900 = vpop.xlane.xlu0 %899
      %v901 = vadd.f32 %v758, %v760
      %v902 = vadd.f32 %v901, %v762
      %v903 = vadd.f32 %v902, %v764
      %v904 = vadd.f32 %v903, %v766
      %v905 = vadd.f32 %v904, %v768
      %v906 = vadd.f32 %v905, %v770
      %v907 = vadd.f32 %v906, %v772
      %v908 = vadd.f32 %v907, %v774
      %v909 = vsel %vm548, %v776, 0.0
      %v910 = vadd.f32 %v908, %v909
      %911 = vadd.xlane.f32.xlu0 %v910
      %v912 = vpop.xlane.xlu0 %911
      %v913 = vadd.f32 %v778, %v780
      %v914 = vadd.f32 %v913, %v782
      %v915 = vadd.f32 %v914, %v784
      %v916 = vadd.f32 %v915, %v786
      %v917 = vadd.f32 %v916, %v788
      %v918 = vadd.f32 %v917, %v790
      %v919 = vadd.f32 %v918, %v792
      %v920 = vadd.f32 %v919, %v794
      %v921 = vsel %vm548, %v796, 0.0
      %v922 = vadd.f32 %v920, %v921
      %923 = vadd.xlane.f32.xlu0 %v922
      %v924 = vpop.xlane.xlu0 %923
      %v925 = vadd.f32 %v798, %v800
      %v926 = vadd.f32 %v925, %v802
      %v927 = vadd.f32 %v926, %v804
      %v928 = vadd.f32 %v927, %v806
      %v929 = vadd.f32 %v928, %v808
      %v930 = vadd.f32 %v929, %v810
      %v931 = vadd.f32 %v930, %v812
      %v932 = vadd.f32 %v931, %v814
      %v933 = vsel %vm548, %v816, 0.0
      %v934 = vadd.f32 %v932, %v933
      %935 = vadd.xlane.f32.xlu0 %v934
      %v936 = vpop.xlane.xlu0 %935
      %v937 = vadd.f32 %v818, %v820
      %v938 = vadd.f32 %v937, %v822
      %v939 = vadd.f32 %v938, %v824
      %v940 = vadd.f32 %v939, %v826
      %v941 = vadd.f32 %v940, %v828
      %v942 = vadd.f32 %v941, %v830
      %v943 = vadd.f32 %v942, %v832
      %v944 = vadd.f32 %v943, %v834
      %v945 = vsel %vm548, %v836, 0.0
      %v946 = vadd.f32 %v944, %v945
      %947 = vadd.xlane.f32.xlu0 %v946
      %v948 = vpop.xlane.xlu0 %947
      %v949 = vadd.f32 %v838, %v840
      %v950 = vadd.f32 %v949, %v842
      %v951 = vadd.f32 %v950, %v844
      %v952 = vadd.f32 %v951, %v846
      %v953 = vadd.f32 %v952, %v848
      %v954 = vadd.f32 %v953, %v850
      %v955 = vadd.f32 %v954, %v852
      %v956 = vadd.f32 %v955, %v854
      %v957 = vsel %vm548, %v856, 0.0
      %v958 = vadd.f32 %v956, %v957
      %959 = vadd.xlane.f32.xlu0 %v958
      %v960 = vpop.xlane.xlu0 %959
      %v961 = vadd.f32 %v858, %v860
      %v962 = vadd.f32 %v961, %v862
      %v963 = vadd.f32 %v962, %v864
      %v964 = vadd.f32 %v963, %v866
      %v965 = vadd.f32 %v964, %v868
      %v966 = vadd.f32 %v965, %v870
      %v967 = vadd.f32 %v966, %v872
      %v968 = vadd.f32 %v967, %v874
      %v969 = vsel %vm548, %v876, 0.0
      %v970 = vadd.f32 %v968, %v969
      %971 = vadd.xlane.f32.xlu0 %v970
      %v972 = vpop.xlane.xlu0 %971
      %v973 = vrcp.pop %v888
      %v974 = vmul.f32 %v888, %v973
      %v975 = vsub.f32 1.0, %v974
      %v976 = vmul.f32 %v973, %v975
      %v977 = vadd.f32 %v973, %v976
      %vm978 = vweird.f32 %v888
      %vm979 = vweird.f32 %v973
      %vm980 = vmor %vm978, %vm979
      %v981 = vsel %vm980, %v973, %v977
      %v982 = vand.u32 2147483647, %v888
      %vm983 = vcmp.eq.f32.partialorder %v982, 8.507059e+37
      %v984 = vand.u32 %v888, 2147483648
      %v985 = vor.u32 1.1754944e-38, %v984
      %v986 = vsel %vm983, %v985, %v981
      %v987 = vrcp.pop %v900
      %v988 = vmul.f32 %v900, %v987
      %v989 = vsub.f32 1.0, %v988
      %v990 = vmul.f32 %v987, %v989
      %v991 = vadd.f32 %v987, %v990
      %vm992 = vweird.f32 %v900
      %vm993 = vweird.f32 %v987
      %vm994 = vmor %vm992, %vm993
      %v995 = vsel %vm994, %v987, %v991
      %v996 = vand.u32 2147483647, %v900
      %vm997 = vcmp.eq.f32.partialorder %v996, 8.507059e+37
      %v998 = vand.u32 %v900, 2147483648
      %v999 = vor.u32 1.1754944e-38, %v998
      %v1000 = vsel %vm997, %v999, %v995
      %v1001 = vrcp.pop %v912
      %v1002 = vmul.f32 %v912, %v1001
      %v1003 = vsub.f32 1.0, %v1002
      %v1004 = vmul.f32 %v1001, %v1003
      %v1005 = vadd.f32 %v1001, %v1004
      %vm1006 = vweird.f32 %v912
      %vm1007 = vweird.f32 %v1001
      %vm1008 = vmor %vm1006, %vm1007
      %v1009 = vsel %vm1008, %v1001, %v1005
      %v1010 = vand.u32 2147483647, %v912
      %vm1011 = vcmp.eq.f32.partialorder %v1010, 8.507059e+37
      %v1012 = vand.u32 %v912, 2147483648
      %v1013 = vor.u32 1.1754944e-38, %v1012
      %v1014 = vsel %vm1011, %v1013, %v1009
      %v1015 = vrcp.pop %v924
      %v1016 = vmul.f32 %v924, %v1015
      %v1017 = vsub.f32 1.0, %v1016
      %v1018 = vmul.f32 %v1015, %v1017
      %v1019 = vadd.f32 %v1015, %v1018
      %vm1020 = vweird.f32 %v924
      %vm1021 = vweird.f32 %v1015
      %vm1022 = vmor %vm1020, %vm1021
      %v1023 = vsel %vm1022, %v1015, %v1019
      %v1024 = vand.u32 2147483647, %v924
      %vm1025 = vcmp.eq.f32.partialorder %v1024, 8.507059e+37
      %v1026 = vand.u32 %v924, 2147483648
      %v1027 = vor.u32 1.1754944e-38, %v1026
      %v1028 = vsel %vm1025, %v1027, %v1023
      %v1029 = vrcp.pop %v936
      %v1030 = vmul.f32 %v936, %v1029
      %v1031 = vsub.f32 1.0, %v1030
      %v1032 = vmul.f32 %v1029, %v1031
      %v1033 = vadd.f32 %v1029, %v1032
      %vm1034 = vweird.f32 %v936
      %vm1035 = vweird.f32 %v1029
      %vm1036 = vmor %vm1034, %vm1035
      %v1037 = vsel %vm1036, %v1029, %v1033
      %v1038 = vand.u32 2147483647, %v936
      %vm1039 = vcmp.eq.f32.partialorder %v1038, 8.507059e+37
      %v1040 = vand.u32 %v936, 2147483648
      %v1041 = vor.u32 1.1754944e-38, %v1040
      %v1042 = vsel %vm1039, %v1041, %v1037
      %v1043 = vrcp.pop %v948
      %v1044 = vmul.f32 %v948, %v1043
      %v1045 = vsub.f32 1.0, %v1044
      %v1046 = vmul.f32 %v1043, %v1045
      %v1047 = vadd.f32 %v1043, %v1046
      %vm1048 = vweird.f32 %v948
      %vm1049 = vweird.f32 %v1043
      %vm1050 = vmor %vm1048, %vm1049
      %v1051 = vsel %vm1050, %v1043, %v1047
      %v1052 = vand.u32 2147483647, %v948
      %vm1053 = vcmp.eq.f32.partialorder %v1052, 8.507059e+37
      %v1054 = vand.u32 %v948, 2147483648
      %v1055 = vor.u32 1.1754944e-38, %v1054
      %v1056 = vsel %vm1053, %v1055, %v1051
      %v1057 = vrcp.pop %v960
      %v1058 = vmul.f32 %v960, %v1057
      %v1059 = vsub.f32 1.0, %v1058
      %v1060 = vmul.f32 %v1057, %v1059
      %v1061 = vadd.f32 %v1057, %v1060
      %vm1062 = vweird.f32 %v960
      %vm1063 = vweird.f32 %v1057
      %vm1064 = vmor %vm1062, %vm1063
      %v1065 = vsel %vm1064, %v1057, %v1061
      %v1066 = vand.u32 2147483647, %v960
      %vm1067 = vcmp.eq.f32.partialorder %v1066, 8.507059e+37
      %v1068 = vand.u32 %v960, 2147483648
      %v1069 = vor.u32 1.1754944e-38, %v1068
      %v1070 = vsel %vm1067, %v1069, %v1065
      %v1071 = vrcp.pop %v972
      %v1072 = vmul.f32 %v972, %v1071
      %v1073 = vsub.f32 1.0, %v1072
      %v1074 = vmul.f32 %v1071, %v1073
      %v1075 = vadd.f32 %v1071, %v1074
      %vm1076 = vweird.f32 %v972
      %vm1077 = vweird.f32 %v1071
      %vm1078 = vmor %vm1076, %vm1077
      %v1079 = vsel %vm1078, %v1071, %v1075
      %v1080 = vand.u32 2147483647, %v972
      %vm1081 = vcmp.eq.f32.partialorder %v1080, 8.507059e+37
      %v1082 = vand.u32 %v972, 2147483648
      %v1083 = vor.u32 1.1754944e-38, %v1082
      %v1084 = vsel %vm1081, %v1083, %v1079
      %v1085 = vmul.f32 %v718, %v986
      %v1086 = vmul.f32 %v720, %v986
      %v1087 = vmul.f32 %v722, %v986
      %v1088 = vmul.f32 %v724, %v986
      %v1089 = vmul.f32 %v726, %v986
      %v1090 = vmul.f32 %v728, %v986
      %v1091 = vmul.f32 %v730, %v986
      %v1092 = vmul.f32 %v732, %v986
      %v1093 = vmul.f32 %v734, %v986
      %v1094 = vmul.f32 %v736, %v986
      %v1095 = vmul.f32 %v738, %v1000
      %v1096 = vmul.f32 %v740, %v1000
      %v1097 = vmul.f32 %v742, %v1000
      %v1098 = vmul.f32 %v744, %v1000
      %v1099 = vmul.f32 %v746, %v1000
      %v1100 = vmul.f32 %v748, %v1000
      %v1101 = vmul.f32 %v750, %v1000
      %v1102 = vmul.f32 %v752, %v1000
      %v1103 = vmul.f32 %v754, %v1000
      %v1104 = vmul.f32 %v756, %v1000
      %v1105 = vmul.f32 %v758, %v1014
      %v1106 = vmul.f32 %v760, %v1014
      %v1107 = vmul.f32 %v762, %v1014
      %v1108 = vmul.f32 %v764, %v1014
      %v1109 = vmul.f32 %v766, %v1014
      %v1110 = vmul.f32 %v768, %v1014
      %v1111 = vmul.f32 %v770, %v1014
      %v1112 = vmul.f32 %v772, %v1014
      %v1113 = vmul.f32 %v774, %v1014
      %v1114 = vmul.f32 %v776, %v1014
      %v1115 = vmul.f32 %v778, %v1028
      %v1116 = vmul.f32 %v780, %v1028
      %v1117 = vmul.f32 %v782, %v1028
      %v1118 = vmul.f32 %v784, %v1028
      %v1119 = vmul.f32 %v786, %v1028
      %v1120 = vmul.f32 %v788, %v1028
      %v1121 = vmul.f32 %v790, %v1028
      %v1122 = vmul.f32 %v792, %v1028
      %v1123 = vmul.f32 %v794, %v1028
      %v1124 = vmul.f32 %v796, %v1028
      %v1125 = vmul.f32 %v798, %v1042
      %v1126 = vmul.f32 %v800, %v1042
      %v1127 = vmul.f32 %v802, %v1042
      %v1128 = vmul.f32 %v804, %v1042
      %v1129 = vmul.f32 %v806, %v1042
      %v1130 = vmul.f32 %v808, %v1042
      %v1131 = vmul.f32 %v810, %v1042
      %v1132 = vmul.f32 %v812, %v1042
      %v1133 = vmul.f32 %v814, %v1042
      %v1134 = vmul.f32 %v816, %v1042
      %v1135 = vmul.f32 %v818, %v1056
      %v1136 = vmul.f32 %v820, %v1056
      %v1137 = vmul.f32 %v822, %v1056
      %v1138 = vmul.f32 %v824, %v1056
      %v1139 = vmul.f32 %v826, %v1056
      %v1140 = vmul.f32 %v828, %v1056
      %v1141 = vmul.f32 %v830, %v1056
      %v1142 = vmul.f32 %v832, %v1056
      %v1143 = vmul.f32 %v834, %v1056
      %v1144 = vmul.f32 %v836, %v1056
      %v1145 = vmul.f32 %v838, %v1070
      %v1146 = vmul.f32 %v840, %v1070
      %v1147 = vmul.f32 %v842, %v1070
      %v1148 = vmul.f32 %v844, %v1070
      %v1149 = vmul.f32 %v846, %v1070
      %v1150 = vmul.f32 %v848, %v1070
      %v1151 = vmul.f32 %v850, %v1070
      %v1152 = vmul.f32 %v852, %v1070
      %v1153 = vmul.f32 %v854, %v1070
      %v1154 = vmul.f32 %v856, %v1070
      %v1155 = vmul.f32 %v858, %v1084
      %v1156 = vmul.f32 %v860, %v1084
      %v1157 = vmul.f32 %v862, %v1084
      %v1158 = vmul.f32 %v864, %v1084
      %v1159 = vmul.f32 %v866, %v1084
      %v1160 = vmul.f32 %v868, %v1084
      %v1161 = vmul.f32 %v870, %v1084
      %v1162 = vmul.f32 %v872, %v1084
      %v1163 = vmul.f32 %v874, %v1084
      %v1164 = vmul.f32 %v876, %v1084
      %v1165 = vlog2.pop %v888
      %v1166 = vmul.f32 %v1165, 0.6931472
      %v1167 = vlog2.pop %v900
      %v1168 = vmul.f32 %v1167, 0.6931472
      %v1169 = vlog2.pop %v912
      %v1170 = vmul.f32 %v1169, 0.6931472
      %v1171 = vlog2.pop %v924
      %v1172 = vmul.f32 %v1171, 0.6931472
      %v1173 = vlog2.pop %v936
      %v1174 = vmul.f32 %v1173, 0.6931472
      %v1175 = vlog2.pop %v948
      %v1176 = vmul.f32 %v1175, 0.6931472
      %v1177 = vlog2.pop %v960
      %v1178 = vmul.f32 %v1177, 0.6931472
      %v1179 = vlog2.pop %v972
      %v1180 = vmul.f32 %v1179, 0.6931472
      %v1181 = vsub.f32 %v637, %v1166
      %v1182 = vsub.f32 %v638, %v1166
      %v1183 = vsub.f32 %v639, %v1166
      %v1184 = vsub.f32 %v640, %v1166
      %v1185 = vsub.f32 %v641, %v1166
      %v1186 = vsub.f32 %v642, %v1166
      %v1187 = vsub.f32 %v643, %v1166
      %v1188 = vsub.f32 %v644, %v1166
      %v1189 = vsub.f32 %v645, %v1166
      %v1190 = vsub.f32 %v646, %v1166
      %v1191 = vsub.f32 %v647, %v1168
      %v1192 = vsub.f32 %v648, %v1168
      %v1193 = vsub.f32 %v649, %v1168
      %v1194 = vsub.f32 %v650, %v1168
      %v1195 = vsub.f32 %v651, %v1168
      %v1196 = vsub.f32 %v652, %v1168
      %v1197 = vsub.f32 %v653, %v1168
      %v1198 = vsub.f32 %v654, %v1168
      %v1199 = vsub.f32 %v655, %v1168
      %v1200 = vsub.f32 %v656, %v1168
      %v1201 = vsub.f32 %v657, %v1170
      %v1202 = vsub.f32 %v658, %v1170
      %v1203 = vsub.f32 %v659, %v1170
      %v1204 = vsub.f32 %v660, %v1170
      %v1205 = vsub.f32 %v661, %v1170
      %v1206 = vsub.f32 %v662, %v1170
      %v1207 = vsub.f32 %v663, %v1170
      %v1208 = vsub.f32 %v664, %v1170
      %v1209 = vsub.f32 %v665, %v1170
      %v1210 = vsub.f32 %v666, %v1170
      %v1211 = vsub.f32 %v667, %v1172
      %v1212 = vsub.f32 %v668, %v1172
      %v1213 = vsub.f32 %v669, %v1172
      %v1214 = vsub.f32 %v670, %v1172
      %v1215 = vsub.f32 %v671, %v1172
      %v1216 = vsub.f32 %v672, %v1172
      %v1217 = vsub.f32 %v673, %v1172
      %v1218 = vsub.f32 %v674, %v1172
      %v1219 = vsub.f32 %v675, %v1172
      %v1220 = vsub.f32 %v676, %v1172
      %v1221 = vsub.f32 %v677, %v1174
      %v1222 = vsub.f32 %v678, %v1174
      %v1223 = vsub.f32 %v679, %v1174
      %v1224 = vsub.f32 %v680, %v1174
      %v1225 = vsub.f32 %v681, %v1174
      %v1226 = vsub.f32 %v682, %v1174
      %v1227 = vsub.f32 %v683, %v1174
      %v1228 = vsub.f32 %v684, %v1174
      %v1229 = vsub.f32 %v685, %v1174
      %v1230 = vsub.f32 %v686, %v1174
      %v1231 = vsub.f32 %v687, %v1176
      %v1232 = vsub.f32 %v688, %v1176
      %v1233 = vsub.f32 %v689, %v1176
      %v1234 = vsub.f32 %v690, %v1176
      %v1235 = vsub.f32 %v691, %v1176
      %v1236 = vsub.f32 %v692, %v1176
      %v1237 = vsub.f32 %v693, %v1176
      %v1238 = vsub.f32 %v694, %v1176
      %v1239 = vsub.f32 %v695, %v1176
      %v1240 = vsub.f32 %v696, %v1176
      %v1241 = vsub.f32 %v697, %v1178
      %v1242 = vsub.f32 %v698, %v1178
      %v1243 = vsub.f32 %v699, %v1178
      %v1244 = vsub.f32 %v700, %v1178
      %v1245 = vsub.f32 %v701, %v1178
      %v1246 = vsub.f32 %v702, %v1178
      %v1247 = vsub.f32 %v703, %v1178
      %v1248 = vsub.f32 %v704, %v1178
      %v1249 = vsub.f32 %v705, %v1178
      %v1250 = vsub.f32 %v706, %v1178
      %v1251 = vsub.f32 %v707, %v1180
      %v1252 = vsub.f32 %v708, %v1180
      %v1253 = vsub.f32 %v709, %v1180
      %v1254 = vsub.f32 %v710, %v1180
      %v1255 = vsub.f32 %v711, %v1180
      %v1256 = vsub.f32 %v712, %v1180
      %v1257 = vsub.f32 %v713, %v1180
      %v1258 = vsub.f32 %v714, %v1180
      %v1259 = vsub.f32 %v715, %v1180
      %v1260 = vsub.f32 %v716, %v1180
      %v1261 = vld [vmem:[%s439] sm:$0xff]
      %v1262 = vld [vmem:[%s439 + $0x8] sm:$0xff]
      %v1263 = vld [vmem:[%s439 + $0x10] sm:$0xff]
      %v1264 = vld [vmem:[%s439 + $0x18] sm:$0xff]
      %v1265 = vld [vmem:[%s439 + $0x20] sm:$0xff]
      %v1266 = vld [vmem:[%s439 + $0x28] sm:$0xff]
      %v1267 = vld [vmem:[%s439 + $0x30] sm:$0xff]
      %v1268 = vld [vmem:[%s439 + $0x38] sm:$0xff]
      %v1269 = vld [vmem:[%s439 + $0x40] sm:$0xff]
      %v1270 = vld [vmem:[%s439 + $0x48] sm:$0xff]
      %v1271 = vld [vmem:[%s439 + $0x50] sm:$0xff]
      %v1272 = vld [vmem:[%s439 + $0x58] sm:$0xff]
      %v1273 = vld [vmem:[%s439 + $0x60] sm:$0xff]
      %v1274 = vld [vmem:[%s439 + $0x68] sm:$0xff]
      %v1275 = vld [vmem:[%s439 + $0x70] sm:$0xff]
      %v1276 = vld [vmem:[%s439 + $0x78] sm:$0xff]
      %v1277 = vld [vmem:[%s439 + $0x80] sm:$0xff]
      %v1278 = vld [vmem:[%s439 + $0x88] sm:$0xff]
      %v1279 = vld [vmem:[%s439 + $0x90] sm:$0xff]
      %v1280 = vld [vmem:[%s439 + $0x98] sm:$0xff]
      %v1281 = vld [vmem:[%s439 + $0xa0] sm:$0xff]
      %v1282 = vld [vmem:[%s439 + $0xa8] sm:$0xff]
      %v1283 = vld [vmem:[%s439 + $0xb0] sm:$0xff]
      %v1284 = vld [vmem:[%s439 + $0xb8] sm:$0xff]
      %v1285 = vld [vmem:[%s439 + $0xc0] sm:$0xff]
      %v1286 = vld [vmem:[%s439 + $0xc8] sm:$0xff]
      %v1287 = vld [vmem:[%s439 + $0xd0] sm:$0xff]
      %v1288 = vld [vmem:[%s439 + $0xd8] sm:$0xff]
      %v1289 = vld [vmem:[%s439 + $0xe0] sm:$0xff]
      %v1290 = vld [vmem:[%s439 + $0xe8] sm:$0xff]
      %v1291 = vld [vmem:[%s439 + $0xf0] sm:$0xff]
      %v1292 = vld [vmem:[%s439 + $0xf8] sm:$0xff]
      %v1293 = vld [vmem:[%s439 + $0x100] sm:$0xff]
      %v1294 = vld [vmem:[%s439 + $0x108] sm:$0xff]
      %v1295 = vld [vmem:[%s439 + $0x110] sm:$0xff]
      %v1296 = vld [vmem:[%s439 + $0x118] sm:$0xff]
      %v1297 = vld [vmem:[%s439 + $0x120] sm:$0xff]
      %v1298 = vld [vmem:[%s439 + $0x128] sm:$0xff]
      %v1299 = vld [vmem:[%s439 + $0x130] sm:$0xff]
      %v1300 = vld [vmem:[%s439 + $0x138] sm:$0xff]
      %v1301 = vld [vmem:[%s439 + $0x140] sm:$0xff]
      %v1302 = vld [vmem:[%s439 + $0x148] sm:$0xff]
      %v1303 = vld [vmem:[%s439 + $0x150] sm:$0xff]
      %v1304 = vld [vmem:[%s439 + $0x158] sm:$0xff]
      %v1305 = vld [vmem:[%s439 + $0x160] sm:$0xff]
      %v1306 = vld [vmem:[%s439 + $0x168] sm:$0xff]
      %v1307 = vld [vmem:[%s439 + $0x170] sm:$0xff]
      %v1308 = vld [vmem:[%s439 + $0x178] sm:$0xff]
      %v1309 = vld [vmem:[%s439 + $0x180] sm:$0xff]
      %v1310 = vld [vmem:[%s439 + $0x188] sm:$0xff]
      %v1311 = vld [vmem:[%s439 + $0x190] sm:$0xff]
      %v1312 = vld [vmem:[%s439 + $0x198] sm:$0xff]
      %v1313 = vld [vmem:[%s439 + $0x1a0] sm:$0xff]
      %v1314 = vld [vmem:[%s439 + $0x1a8] sm:$0xff]
      %v1315 = vld [vmem:[%s439 + $0x1b0] sm:$0xff]
      %v1316 = vld [vmem:[%s439 + $0x1b8] sm:$0xff]
      %v1317 = vld [vmem:[%s439 + $0x1c0] sm:$0xff]
      %v1318 = vld [vmem:[%s439 + $0x1c8] sm:$0xff]
      %v1319 = vld [vmem:[%s439 + $0x1d0] sm:$0xff]
      %v1320 = vld [vmem:[%s439 + $0x1d8] sm:$0xff]
      %v1321 = vld [vmem:[%s439 + $0x1e0] sm:$0xff]
      %v1322 = vld [vmem:[%s439 + $0x1e8] sm:$0xff]
      %v1323 = vld [vmem:[%s439 + $0x1f0] sm:$0xff]
      %v1324 = vld [vmem:[%s439 + $0x1f8] sm:$0xff]
      %v1325 = vld [vmem:[%s439 + $0x200] sm:$0xff]
      %v1326 = vld [vmem:[%s439 + $0x208] sm:$0xff]
      %v1327 = vld [vmem:[%s439 + $0x210] sm:$0xff]
      %v1328 = vld [vmem:[%s439 + $0x218] sm:$0xff]
      %v1329 = vld [vmem:[%s439 + $0x220] sm:$0xff]
      %v1330 = vld [vmem:[%s439 + $0x228] sm:$0xff]
      %v1331 = vld [vmem:[%s439 + $0x230] sm:$0xff]
      %v1332 = vld [vmem:[%s439 + $0x238] sm:$0xff]
      %v1333 = vld [vmem:[%s439 + $0x240] sm:$0xff]
      %v1334 = vld [vmem:[%s439 + $0x248] sm:$0xff]
      %v1335 = vld [vmem:[%s439 + $0x250] sm:$0xff]
      %v1336 = vld [vmem:[%s439 + $0x258] sm:$0xff]
      %v1337 = vld [vmem:[%s439 + $0x260] sm:$0xff]
      %v1338 = vld [vmem:[%s439 + $0x268] sm:$0xff]
      %v1339 = vld [vmem:[%s439 + $0x270] sm:$0xff]
      %v1340 = vld [vmem:[%s439 + $0x278] sm:$0xff]
      %v1341 = vld [vmem:[%s439 + $0x280] sm:$0xff]
      %v1342 = vld [vmem:[%s439 + $0x288] sm:$0xff]
      %v1343 = vld [vmem:[%s439 + $0x290] sm:$0xff]
      %v1344 = vld [vmem:[%s439 + $0x298] sm:$0xff]
      %v1345 = vld [vmem:[%s439 + $0x2a0] sm:$0xff]
      %v1346 = vld [vmem:[%s439 + $0x2a8] sm:$0xff]
      %v1347 = vld [vmem:[%s439 + $0x2b0] sm:$0xff]
      %v1348 = vld [vmem:[%s439 + $0x2b8] sm:$0xff]
      %v1349 = vld [vmem:[%s439 + $0x2c0] sm:$0xff]
      %v1350 = vld [vmem:[%s439 + $0x2c8] sm:$0xff]
      %v1351 = vld [vmem:[%s439 + $0x2d0] sm:$0xff]
      %v1352 = vld [vmem:[%s439 + $0x2d8] sm:$0xff]
      %v1353 = vld [vmem:[%s439 + $0x2e0] sm:$0xff]
      %v1354 = vld [vmem:[%s439 + $0x2e8] sm:$0xff]
      %v1355 = vld [vmem:[%s439 + $0x2f0] sm:$0xff]
      %v1356 = vld [vmem:[%s439 + $0x2f8] sm:$0xff]
      %v1357 = vld [vmem:[%s439 + $0x300] sm:$0xff]
      %v1358 = vld [vmem:[%s439 + $0x308] sm:$0xff]
      %v1359 = vld [vmem:[%s439 + $0x310] sm:$0xff]
      %v1360 = vld [vmem:[%s439 + $0x318] sm:$0xff]
      %v1361 = vld [vmem:[%s439 + $0x320] sm:$0xff]
      %v1362 = vld [vmem:[%s439 + $0x328] sm:$0xff]
      %v1363 = vld [vmem:[%s439 + $0x330] sm:$0xff]
      %v1364 = vld [vmem:[%s439 + $0x338] sm:$0xff]
      %v1365 = vld [vmem:[%s439 + $0x340] sm:$0xff]
      %v1366 = vld [vmem:[%s439 + $0x348] sm:$0xff]
      %v1367 = vld [vmem:[%s439 + $0x350] sm:$0xff]
      %v1368 = vld [vmem:[%s439 + $0x358] sm:$0xff]
      %v1369 = vld [vmem:[%s439 + $0x360] sm:$0xff]
      %v1370 = vld [vmem:[%s439 + $0x368] sm:$0xff]
      %v1371 = vld [vmem:[%s439 + $0x370] sm:$0xff]
      %v1372 = vld [vmem:[%s439 + $0x378] sm:$0xff]
      %v1373 = vld [vmem:[%s439 + $0x380] sm:$0xff]
      %v1374 = vld [vmem:[%s439 + $0x388] sm:$0xff]
      %v1375 = vld [vmem:[%s439 + $0x390] sm:$0xff]
      %v1376 = vld [vmem:[%s439 + $0x398] sm:$0xff]
      %v1377 = vld [vmem:[%s439 + $0x3a0] sm:$0xff]
      %v1378 = vld [vmem:[%s439 + $0x3a8] sm:$0xff]
      %v1379 = vld [vmem:[%s439 + $0x3b0] sm:$0xff]
      %v1380 = vld [vmem:[%s439 + $0x3b8] sm:$0xff]
      %v1381 = vld [vmem:[%s439 + $0x3c0] sm:$0xff]
      %v1382 = vld [vmem:[%s439 + $0x3c8] sm:$0xff]
      %v1383 = vld [vmem:[%s439 + $0x3d0] sm:$0xff]
      %v1384 = vld [vmem:[%s439 + $0x3d8] sm:$0xff]
      %v1385 = vld [vmem:[%s439 + $0x3e0] sm:$0xff]
      %v1386 = vld [vmem:[%s439 + $0x3e8] sm:$0xff]
      %v1387 = vld [vmem:[%s439 + $0x3f0] sm:$0xff]
      %v1388 = vld [vmem:[%s439 + $0x3f8] sm:$0xff]
      %v1389 = vld [vmem:[%s439 + $0x400] sm:$0xff]
      %v1390 = vld [vmem:[%s439 + $0x408] sm:$0xff]
      %v1391 = vld [vmem:[%s439 + $0x410] sm:$0xff]
      %v1392 = vld [vmem:[%s439 + $0x418] sm:$0xff]
      %v1393 = vld [vmem:[%s439 + $0x420] sm:$0xff]
      %v1394 = vld [vmem:[%s439 + $0x428] sm:$0xff]
      %v1395 = vld [vmem:[%s439 + $0x430] sm:$0xff]
      %v1396 = vld [vmem:[%s439 + $0x438] sm:$0xff]
      %v1397 = vld [vmem:[%s439 + $0x440] sm:$0xff]
      %v1398 = vld [vmem:[%s439 + $0x448] sm:$0xff]
      %v1399 = vld [vmem:[%s439 + $0x450] sm:$0xff]
      %v1400 = vld [vmem:[%s439 + $0x458] sm:$0xff]
      %v1401 = vld [vmem:[%s439 + $0x460] sm:$0xff]
      %v1402 = vld [vmem:[%s439 + $0x468] sm:$0xff]
      %v1403 = vld [vmem:[%s439 + $0x470] sm:$0xff]
      %v1404 = vld [vmem:[%s439 + $0x478] sm:$0xff]
      %v1405 = vld [vmem:[%s439 + $0x480] sm:$0xff]
      %v1406 = vld [vmem:[%s439 + $0x488] sm:$0xff]
      %v1407 = vld [vmem:[%s439 + $0x490] sm:$0xff]
      %v1408 = vld [vmem:[%s439 + $0x498] sm:$0xff]
      %v1409 = vld [vmem:[%s439 + $0x4a0] sm:$0xff]
      %v1410 = vld [vmem:[%s439 + $0x4a8] sm:$0xff]
      %v1411 = vld [vmem:[%s439 + $0x4b0] sm:$0xff]
      %v1412 = vld [vmem:[%s439 + $0x4b8] sm:$0xff]
      %v1413 = vld [vmem:[%s439 + $0x4c0] sm:$0xf]
      %v1414 = vld [vmem:[%s444] sm:$0xff]
      %v1415 = vld [vmem:[%s444 + $0x8] sm:$0xff]
      %v1416 = vld [vmem:[%s444 + $0x10] sm:$0xff]
      %v1417 = vld [vmem:[%s444 + $0x18] sm:$0xff]
      %v1418 = vld [vmem:[%s444 + $0x20] sm:$0xff]
      %v1419 = vld [vmem:[%s444 + $0x28] sm:$0xff]
      %v1420 = vld [vmem:[%s444 + $0x30] sm:$0xff]
      %v1421 = vld [vmem:[%s444 + $0x38] sm:$0xff]
      %v1422 = vld [vmem:[%s444 + $0x40] sm:$0xff]
      %v1423 = vld [vmem:[%s444 + $0x48] sm:$0xff]
      %v1424 = vld [vmem:[%s444 + $0x50] sm:$0xff]
      %v1425 = vld [vmem:[%s444 + $0x58] sm:$0xff]
      %v1426 = vld [vmem:[%s444 + $0x60] sm:$0xff]
      %v1427 = vld [vmem:[%s444 + $0x68] sm:$0xff]
      %v1428 = vld [vmem:[%s444 + $0x70] sm:$0xff]
      %v1429 = vld [vmem:[%s444 + $0x78] sm:$0xff]
      %v1430 = vld [vmem:[%s444 + $0x80] sm:$0xff]
      %v1431 = vld [vmem:[%s444 + $0x88] sm:$0xff]
      %v1432 = vld [vmem:[%s444 + $0x90] sm:$0xff]
      %v1433 = vld [vmem:[%s444 + $0x98] sm:$0xff]
      %v1434 = vld [vmem:[%s444 + $0xa0] sm:$0xff]
      %v1435 = vld [vmem:[%s444 + $0xa8] sm:$0xff]
      %v1436 = vld [vmem:[%s444 + $0xb0] sm:$0xff]
      %v1437 = vld [vmem:[%s444 + $0xb8] sm:$0xff]
      %v1438 = vld [vmem:[%s444 + $0xc0] sm:$0xff]
      %v1439 = vld [vmem:[%s444 + $0xc8] sm:$0xff]
      %v1440 = vld [vmem:[%s444 + $0xd0] sm:$0xff]
      %v1441 = vld [vmem:[%s444 + $0xd8] sm:$0xff]
      %v1442 = vld [vmem:[%s444 + $0xe0] sm:$0xff]
      %v1443 = vld [vmem:[%s444 + $0xe8] sm:$0xff]
      %v1444 = vld [vmem:[%s444 + $0xf0] sm:$0xff]
      %v1445 = vld [vmem:[%s444 + $0xf8] sm:$0xff]
      %v1446 = vld [vmem:[%s444 + $0x100] sm:$0xff]
      %v1447 = vld [vmem:[%s444 + $0x108] sm:$0xff]
      %v1448 = vld [vmem:[%s444 + $0x110] sm:$0xff]
      %v1449 = vld [vmem:[%s444 + $0x118] sm:$0xff]
      %v1450 = vld [vmem:[%s444 + $0x120] sm:$0xff]
      %v1451 = vld [vmem:[%s444 + $0x128] sm:$0xff]
      %v1452 = vld [vmem:[%s444 + $0x130] sm:$0xff]
      %v1453 = vld [vmem:[%s444 + $0x138] sm:$0xff]
      %v1454 = vld [vmem:[%s444 + $0x140] sm:$0xff]
      %v1455 = vld [vmem:[%s444 + $0x148] sm:$0xff]
      %v1456 = vld [vmem:[%s444 + $0x150] sm:$0xff]
      %v1457 = vld [vmem:[%s444 + $0x158] sm:$0xff]
      %v1458 = vld [vmem:[%s444 + $0x160] sm:$0xff]
      %v1459 = vld [vmem:[%s444 + $0x168] sm:$0xff]
      %v1460 = vld [vmem:[%s444 + $0x170] sm:$0xff]
      %v1461 = vld [vmem:[%s444 + $0x178] sm:$0xff]
      %v1462 = vld [vmem:[%s444 + $0x180] sm:$0xff]
      %v1463 = vld [vmem:[%s444 + $0x188] sm:$0xff]
      %v1464 = vld [vmem:[%s444 + $0x190] sm:$0xff]
      %v1465 = vld [vmem:[%s444 + $0x198] sm:$0xff]
      %v1466 = vld [vmem:[%s444 + $0x1a0] sm:$0xff]
      %v1467 = vld [vmem:[%s444 + $0x1a8] sm:$0xff]
      %v1468 = vld [vmem:[%s444 + $0x1b0] sm:$0xff]
      %v1469 = vld [vmem:[%s444 + $0x1b8] sm:$0xff]
      %v1470 = vld [vmem:[%s444 + $0x1c0] sm:$0xff]
      %v1471 = vld [vmem:[%s444 + $0x1c8] sm:$0xff]
      %v1472 = vld [vmem:[%s444 + $0x1d0] sm:$0xff]
      %v1473 = vld [vmem:[%s444 + $0x1d8] sm:$0xff]
      %v1474 = vld [vmem:[%s444 + $0x1e0] sm:$0xff]
      %v1475 = vld [vmem:[%s444 + $0x1e8] sm:$0xff]
      %v1476 = vld [vmem:[%s444 + $0x1f0] sm:$0xff]
      %v1477 = vld [vmem:[%s444 + $0x1f8] sm:$0xff]
      %v1478 = vld [vmem:[%s444 + $0x200] sm:$0xff]
      %v1479 = vld [vmem:[%s444 + $0x208] sm:$0xff]
      %v1480 = vld [vmem:[%s444 + $0x210] sm:$0xff]
      %v1481 = vld [vmem:[%s444 + $0x218] sm:$0xff]
      %v1482 = vld [vmem:[%s444 + $0x220] sm:$0xff]
      %v1483 = vld [vmem:[%s444 + $0x228] sm:$0xff]
      %v1484 = vld [vmem:[%s444 + $0x230] sm:$0xff]
      %v1485 = vld [vmem:[%s444 + $0x238] sm:$0xff]
      %v1486 = vld [vmem:[%s444 + $0x240] sm:$0xff]
      %v1487 = vld [vmem:[%s444 + $0x248] sm:$0xff]
      %v1488 = vld [vmem:[%s444 + $0x250] sm:$0xff]
      %v1489 = vld [vmem:[%s444 + $0x258] sm:$0xff]
      %v1490 = vld [vmem:[%s444 + $0x260] sm:$0xff]
      %v1491 = vld [vmem:[%s444 + $0x268] sm:$0xff]
      %v1492 = vld [vmem:[%s444 + $0x270] sm:$0xff]
      %v1493 = vld [vmem:[%s444 + $0x278] sm:$0xff]
      %v1494 = vld [vmem:[%s444 + $0x280] sm:$0xff]
      %v1495 = vld [vmem:[%s444 + $0x288] sm:$0xff]
      %v1496 = vld [vmem:[%s444 + $0x290] sm:$0xff]
      %v1497 = vld [vmem:[%s444 + $0x298] sm:$0xff]
      %v1498 = vld [vmem:[%s444 + $0x2a0] sm:$0xff]
      %v1499 = vld [vmem:[%s444 + $0x2a8] sm:$0xff]
      %v1500 = vld [vmem:[%s444 + $0x2b0] sm:$0xff]
      %v1501 = vld [vmem:[%s444 + $0x2b8] sm:$0xff]
      %v1502 = vld [vmem:[%s444 + $0x2c0] sm:$0xff]
      %v1503 = vld [vmem:[%s444 + $0x2c8] sm:$0xff]
      %v1504 = vld [vmem:[%s444 + $0x2d0] sm:$0xff]
      %v1505 = vld [vmem:[%s444 + $0x2d8] sm:$0xff]
      %v1506 = vld [vmem:[%s444 + $0x2e0] sm:$0xff]
      %v1507 = vld [vmem:[%s444 + $0x2e8] sm:$0xff]
      %v1508 = vld [vmem:[%s444 + $0x2f0] sm:$0xff]
      %v1509 = vld [vmem:[%s444 + $0x2f8] sm:$0xff]
      %v1510 = vld [vmem:[%s444 + $0x300] sm:$0xff]
      %v1511 = vld [vmem:[%s444 + $0x308] sm:$0xff]
      %v1512 = vld [vmem:[%s444 + $0x310] sm:$0xff]
      %v1513 = vld [vmem:[%s444 + $0x318] sm:$0xff]
      %v1514 = vld [vmem:[%s444 + $0x320] sm:$0xff]
      %v1515 = vld [vmem:[%s444 + $0x328] sm:$0xff]
      %v1516 = vld [vmem:[%s444 + $0x330] sm:$0xff]
      %v1517 = vld [vmem:[%s444 + $0x338] sm:$0xff]
      %v1518 = vld [vmem:[%s444 + $0x340] sm:$0xff]
      %v1519 = vld [vmem:[%s444 + $0x348] sm:$0xff]
      %v1520 = vld [vmem:[%s444 + $0x350] sm:$0xff]
      %v1521 = vld [vmem:[%s444 + $0x358] sm:$0xff]
      %v1522 = vld [vmem:[%s444 + $0x360] sm:$0xff]
      %v1523 = vld [vmem:[%s444 + $0x368] sm:$0xff]
      %v1524 = vld [vmem:[%s444 + $0x370] sm:$0xff]
      %v1525 = vld [vmem:[%s444 + $0x378] sm:$0xff]
      %v1526 = vld [vmem:[%s444 + $0x380] sm:$0xff]
      %v1527 = vld [vmem:[%s444 + $0x388] sm:$0xff]
      %v1528 = vld [vmem:[%s444 + $0x390] sm:$0xff]
      %v1529 = vld [vmem:[%s444 + $0x398] sm:$0xff]
      %v1530 = vld [vmem:[%s444 + $0x3a0] sm:$0xff]
      %v1531 = vld [vmem:[%s444 + $0x3a8] sm:$0xff]
      %v1532 = vld [vmem:[%s444 + $0x3b0] sm:$0xff]
      %v1533 = vld [vmem:[%s444 + $0x3b8] sm:$0xff]
      %v1534 = vld [vmem:[%s444 + $0x3c0] sm:$0xff]
      %v1535 = vld [vmem:[%s444 + $0x3c8] sm:$0xff]
      %v1536 = vld [vmem:[%s444 + $0x3d0] sm:$0xff]
      %v1537 = vld [vmem:[%s444 + $0x3d8] sm:$0xff]
      %v1538 = vld [vmem:[%s444 + $0x3e0] sm:$0xff]
      %v1539 = vld [vmem:[%s444 + $0x3e8] sm:$0xff]
      %v1540 = vld [vmem:[%s444 + $0x3f0] sm:$0xff]
      %v1541 = vld [vmem:[%s444 + $0x3f8] sm:$0xff]
      %v1542 = vld [vmem:[%s444 + $0x400] sm:$0xff]
      %v1543 = vld [vmem:[%s444 + $0x408] sm:$0xff]
      %v1544 = vld [vmem:[%s444 + $0x410] sm:$0xff]
      %v1545 = vld [vmem:[%s444 + $0x418] sm:$0xff]
      %v1546 = vld [vmem:[%s444 + $0x420] sm:$0xff]
      %v1547 = vld [vmem:[%s444 + $0x428] sm:$0xff]
      %v1548 = vld [vmem:[%s444 + $0x430] sm:$0xff]
      %v1549 = vld [vmem:[%s444 + $0x438] sm:$0xff]
      %v1550 = vld [vmem:[%s444 + $0x440] sm:$0xff]
      %v1551 = vld [vmem:[%s444 + $0x448] sm:$0xff]
      %v1552 = vld [vmem:[%s444 + $0x450] sm:$0xff]
      %v1553 = vld [vmem:[%s444 + $0x458] sm:$0xff]
      %v1554 = vld [vmem:[%s444 + $0x460] sm:$0xff]
      %v1555 = vld [vmem:[%s444 + $0x468] sm:$0xff]
      %v1556 = vld [vmem:[%s444 + $0x470] sm:$0xff]
      %v1557 = vld [vmem:[%s444 + $0x478] sm:$0xff]
      %v1558 = vld [vmem:[%s444 + $0x480] sm:$0xff]
      %v1559 = vld [vmem:[%s444 + $0x488] sm:$0xff]
      %v1560 = vld [vmem:[%s444 + $0x490] sm:$0xff]
      %v1561 = vld [vmem:[%s444 + $0x498] sm:$0xff]
      %v1562 = vld [vmem:[%s444 + $0x4a0] sm:$0xff]
      %v1563 = vld [vmem:[%s444 + $0x4a8] sm:$0xff]
      %v1564 = vld [vmem:[%s444 + $0x4b0] sm:$0xff]
      %v1565 = vld [vmem:[%s444 + $0x4b8] sm:$0xff]
      %v1566 = vld [vmem:[%s444 + $0x4c0] sm:$0xf]
      %v1567 = vadd.f32 %v1261, %v1414
      %v1568 = vadd.f32 %v1262, %v1415
      %v1569 = vadd.f32 %v1263, %v1416
      %v1570 = vadd.f32 %v1264, %v1417
      %v1571 = vadd.f32 %v1265, %v1418
      %v1572 = vadd.f32 %v1266, %v1419
      %v1573 = vadd.f32 %v1267, %v1420
      %v1574 = vadd.f32 %v1268, %v1421
      %v1575 = vadd.f32 %v1269, %v1422
      %v1576 = vadd.f32 %v1270, %v1423
      %v1577 = vadd.f32 %v1271, %v1424
      %v1578 = vadd.f32 %v1272, %v1425
      %v1579 = vadd.f32 %v1273, %v1426
      %v1580 = vadd.f32 %v1274, %v1427
      %v1581 = vadd.f32 %v1275, %v1428
      %v1582 = vadd.f32 %v1276, %v1429
      %v1583 = vadd.f32 %v1277, %v1430
      %v1584 = vadd.f32 %v1278, %v1431
      %v1585 = vadd.f32 %v1279, %v1432
      %v1586 = vadd.f32 %v1280, %v1433
      %v1587 = vadd.f32 %v1281, %v1434
      %v1588 = vadd.f32 %v1282, %v1435
      %v1589 = vadd.f32 %v1283, %v1436
      %v1590 = vadd.f32 %v1284, %v1437
      %v1591 = vadd.f32 %v1285, %v1438
      %v1592 = vadd.f32 %v1286, %v1439
      %v1593 = vadd.f32 %v1287, %v1440
      %v1594 = vadd.f32 %v1288, %v1441
      %v1595 = vadd.f32 %v1289, %v1442
      %v1596 = vadd.f32 %v1290, %v1443
      %v1597 = vadd.f32 %v1291, %v1444
      %v1598 = vadd.f32 %v1292, %v1445
      %v1599 = vadd.f32 %v1293, %v1446
      %v1600 = vadd.f32 %v1294, %v1447
      %v1601 = vadd.f32 %v1295, %v1448
      %v1602 = vadd.f32 %v1296, %v1449
      %v1603 = vadd.f32 %v1297, %v1450
      %v1604 = vadd.f32 %v1298, %v1451
      %v1605 = vadd.f32 %v1299, %v1452
      %v1606 = vadd.f32 %v1300, %v1453
      %v1607 = vadd.f32 %v1301, %v1454
      %v1608 = vadd.f32 %v1302, %v1455
      %v1609 = vadd.f32 %v1303, %v1456
      %v1610 = vadd.f32 %v1304, %v1457
      %v1611 = vadd.f32 %v1305, %v1458
      %v1612 = vadd.f32 %v1306, %v1459
      %v1613 = vadd.f32 %v1307, %v1460
      %v1614 = vadd.f32 %v1308, %v1461
      %v1615 = vadd.f32 %v1309, %v1462
      %v1616 = vadd.f32 %v1310, %v1463
      %v1617 = vadd.f32 %v1311, %v1464
      %v1618 = vadd.f32 %v1312, %v1465
      %v1619 = vadd.f32 %v1313, %v1466
      %v1620 = vadd.f32 %v1314, %v1467
      %v1621 = vadd.f32 %v1315, %v1468
      %v1622 = vadd.f32 %v1316, %v1469
      %v1623 = vadd.f32 %v1317, %v1470
      %v1624 = vadd.f32 %v1318, %v1471
      %v1625 = vadd.f32 %v1319, %v1472
      %v1626 = vadd.f32 %v1320, %v1473
      %v1627 = vadd.f32 %v1321, %v1474
      %v1628 = vadd.f32 %v1322, %v1475
      %v1629 = vadd.f32 %v1323, %v1476
      %v1630 = vadd.f32 %v1324, %v1477
      %v1631 = vadd.f32 %v1325, %v1478
      %v1632 = vadd.f32 %v1326, %v1479
      %v1633 = vadd.f32 %v1327, %v1480
      %v1634 = vadd.f32 %v1328, %v1481
      %v1635 = vadd.f32 %v1329, %v1482
      %v1636 = vadd.f32 %v1330, %v1483
      %v1637 = vadd.f32 %v1331, %v1484
      %v1638 = vadd.f32 %v1332, %v1485
      %v1639 = vadd.f32 %v1333, %v1486
      %v1640 = vadd.f32 %v1334, %v1487
      %v1641 = vadd.f32 %v1335, %v1488
      %v1642 = vadd.f32 %v1336, %v1489
      %v1643 = vadd.f32 %v1337, %v1490
      %v1644 = vadd.f32 %v1338, %v1491
      %v1645 = vadd.f32 %v1339, %v1492
      %v1646 = vadd.f32 %v1340, %v1493
      %v1647 = vadd.f32 %v1341, %v1494
      %v1648 = vadd.f32 %v1342, %v1495
      %v1649 = vadd.f32 %v1343, %v1496
      %v1650 = vadd.f32 %v1344, %v1497
      %v1651 = vadd.f32 %v1345, %v1498
      %v1652 = vadd.f32 %v1346, %v1499
      %v1653 = vadd.f32 %v1347, %v1500
      %v1654 = vadd.f32 %v1348, %v1501
      %v1655 = vadd.f32 %v1349, %v1502
      %v1656 = vadd.f32 %v1350, %v1503
      %v1657 = vadd.f32 %v1351, %v1504
      %v1658 = vadd.f32 %v1352, %v1505
      %v1659 = vadd.f32 %v1353, %v1506
      %v1660 = vadd.f32 %v1354, %v1507
      %v1661 = vadd.f32 %v1355, %v1508
      %v1662 = vadd.f32 %v1356, %v1509
      %v1663 = vadd.f32 %v1357, %v1510
      %v1664 = vadd.f32 %v1358, %v1511
      %v1665 = vadd.f32 %v1359, %v1512
      %v1666 = vadd.f32 %v1360, %v1513
      %v1667 = vadd.f32 %v1361, %v1514
      %v1668 = vadd.f32 %v1362, %v1515
      %v1669 = vadd.f32 %v1363, %v1516
      %v1670 = vadd.f32 %v1364, %v1517
      %v1671 = vadd.f32 %v1365, %v1518
      %v1672 = vadd.f32 %v1366, %v1519
      %v1673 = vadd.f32 %v1367, %v1520
      %v1674 = vadd.f32 %v1368, %v1521
      %v1675 = vadd.f32 %v1369, %v1522
      %v1676 = vadd.f32 %v1370, %v1523
      %v1677 = vadd.f32 %v1371, %v1524
      %v1678 = vadd.f32 %v1372, %v1525
      %v1679 = vadd.f32 %v1373, %v1526
      %v1680 = vadd.f32 %v1374, %v1527
      %v1681 = vadd.f32 %v1375, %v1528
      %v1682 = vadd.f32 %v1376, %v1529
      %v1683 = vadd.f32 %v1377, %v1530
      %v1684 = vadd.f32 %v1378, %v1531
      %v1685 = vadd.f32 %v1379, %v1532
      %v1686 = vadd.f32 %v1380, %v1533
      %v1687 = vadd.f32 %v1381, %v1534
      %v1688 = vadd.f32 %v1382, %v1535
      %v1689 = vadd.f32 %v1383, %v1536
      %v1690 = vadd.f32 %v1384, %v1537
      %v1691 = vadd.f32 %v1385, %v1538
      %v1692 = vadd.f32 %v1386, %v1539
      %v1693 = vadd.f32 %v1387, %v1540
      %v1694 = vadd.f32 %v1388, %v1541
      %v1695 = vadd.f32 %v1389, %v1542
      %v1696 = vadd.f32 %v1390, %v1543
      %v1697 = vadd.f32 %v1391, %v1544
      %v1698 = vadd.f32 %v1392, %v1545
      %v1699 = vadd.f32 %v1393, %v1546
      %v1700 = vadd.f32 %v1394, %v1547
      %v1701 = vadd.f32 %v1395, %v1548
      %v1702 = vadd.f32 %v1396, %v1549
      %v1703 = vadd.f32 %v1397, %v1550
      %v1704 = vadd.f32 %v1398, %v1551
      %v1705 = vadd.f32 %v1399, %v1552
      %v1706 = vadd.f32 %v1400, %v1553
      %v1707 = vadd.f32 %v1401, %v1554
      %v1708 = vadd.f32 %v1402, %v1555
      %v1709 = vadd.f32 %v1403, %v1556
      %v1710 = vadd.f32 %v1404, %v1557
      %v1711 = vadd.f32 %v1405, %v1558
      %v1712 = vadd.f32 %v1406, %v1559
      %v1713 = vadd.f32 %v1407, %v1560
      %v1714 = vadd.f32 %v1408, %v1561
      %v1715 = vadd.f32 %v1409, %v1562
      %v1716 = vadd.f32 %v1410, %v1563
      %v1717 = vadd.f32 %v1411, %v1564
      %v1718 = vadd.f32 %v1412, %v1565
      %v1719 = vadd.f32 %v1413, %v1566
      %v1721 = vsel %vm548, %v1094, 0
      %v1724 = vsel %vm548, %v1104, 0
      %v1727 = vsel %vm548, %v1114, 0
      %v1730 = vsel %vm548, %v1124, 0
      %v1733 = vsel %vm548, %v1134, 0
      %v1736 = vsel %vm548, %v1144, 0
      %v1739 = vsel %vm548, %v1154, 0
      %v1742 = vsel %vm548, %v1164, 0
      %vm1744 = vcmask 1043456
      %v1746 = vsel %vm1744, %v1719, 0
      %1748 = vmatpush.msra.mxu0 %v1582
      %1749 = vmatpush.msra.mxu0 %v1581
      %1750 = vmatpush.msra.mxu0 %v1580
      %1751 = vmatpush.msra.mxu0 %v1579
      %1752 = vmatpush.msra.mxu0 %v1578
      %1753 = vmatpush.msra.mxu0 %v1577
      %1754 = vmatpush.msra.mxu0 %v1576
      %1755 = vmatpush.msra.mxu0 %v1575
      %1756 = vmatpush.msra.mxu0 %v1574
      %1757 = vmatpush.msra.mxu0 %v1573
      %1758 = vmatpush.msra.mxu0 %v1572
      %1759 = vmatpush.msra.mxu0 %v1571
      %1760 = vmatpush.msra.mxu0 %v1570
      %1761 = vmatpush.msra.mxu0 %v1569
      %1762 = vmatpush.msra.mxu0 %v1568
      %1763 = vmatpush.msra.mxu0 %v1567
      %1764 = vmatmul.f32.gmra.mxu0 %v1085
      %v1765 = vpop.f32.mrf.mxu0
      %v1766 = vadd.f32 0.0, %v1765
      %1767 = vmatmul.f32.gmra.mxu0 %v1095
      %v1768 = vpop.f32.mrf.mxu0
      %v1769 = vadd.f32 0.0, %v1768
      %1770 = vmatmul.f32.gmra.mxu0 %v1105
      %v1771 = vpop.f32.mrf.mxu0
      %v1772 = vadd.f32 0.0, %v1771
      %1773 = vmatmul.f32.gmra.mxu0 %v1115
      %v1774 = vpop.f32.mrf.mxu0
      %v1775 = vadd.f32 0.0, %v1774
      %1776 = vmatmul.f32.gmra.mxu0 %v1125
      %v1777 = vpop.f32.mrf.mxu0
      %v1778 = vadd.f32 0.0, %v1777
      %1779 = vmatmul.f32.gmra.mxu0 %v1135
      %v1780 = vpop.f32.mrf.mxu0
      %v1781 = vadd.f32 0.0, %v1780
      %1782 = vmatmul.f32.gmra.mxu0 %v1145
      %v1783 = vpop.f32.mrf.mxu0
      %v1784 = vadd.f32 0.0, %v1783
      %1785 = vmatmul.f32.gmra.mxu0 %v1155
      %v1786 = vpop.f32.mrf.mxu0
      %v1787 = vadd.f32 0.0, %v1786
      %1788 = vdwg.mxu0
      %1789 = vmatpush.msra.mxu0 %v1598
      %1790 = vmatpush.msra.mxu0 %v1597
      %1791 = vmatpush.msra.mxu0 %v1596
      %1792 = vmatpush.msra.mxu0 %v1595
      %1793 = vmatpush.msra.mxu0 %v1594
      %1794 = vmatpush.msra.mxu0 %v1593
      %1795 = vmatpush.msra.mxu0 %v1592
      %1796 = vmatpush.msra.mxu0 %v1591
      %1797 = vmatpush.msra.mxu0 %v1590
      %1798 = vmatpush.msra.mxu0 %v1589
      %1799 = vmatpush.msra.mxu0 %v1588
      %1800 = vmatpush.msra.mxu0 %v1587
      %1801 = vmatpush.msra.mxu0 %v1586
      %1802 = vmatpush.msra.mxu0 %v1585
      %1803 = vmatpush.msra.mxu0 %v1584
      %1804 = vmatpush.msra.mxu0 %v1583
      %1805 = vmatmul.f32.gmra.mxu0 %v1086
      %v1806 = vpop.f32.mrf.mxu0
      %v1807 = vadd.f32 %v1766, %v1806
      %1808 = vmatmul.f32.gmra.mxu0 %v1096
      %v1809 = vpop.f32.mrf.mxu0
      %v1810 = vadd.f32 %v1769, %v1809
      %1811 = vmatmul.f32.gmra.mxu0 %v1106
      %v1812 = vpop.f32.mrf.mxu0
      %v1813 = vadd.f32 %v1772, %v1812
      %1814 = vmatmul.f32.gmra.mxu0 %v1116
      %v1815 = vpop.f32.mrf.mxu0
      %v1816 = vadd.f32 %v1775, %v1815
      %1817 = vmatmul.f32.gmra.mxu0 %v1126
      %v1818 = vpop.f32.mrf.mxu0
      %v1819 = vadd.f32 %v1778, %v1818
      %1820 = vmatmul.f32.gmra.mxu0 %v1136
      %v1821 = vpop.f32.mrf.mxu0
      %v1822 = vadd.f32 %v1781, %v1821
      %1823 = vmatmul.f32.gmra.mxu0 %v1146
      %v1824 = vpop.f32.mrf.mxu0
      %v1825 = vadd.f32 %v1784, %v1824
      %1826 = vmatmul.f32.gmra.mxu0 %v1156
      %v1827 = vpop.f32.mrf.mxu0
      %v1828 = vadd.f32 %v1787, %v1827
      %1829 = vdwg.mxu0
      %1830 = vmatpush.msra.mxu0 %v1614
      %1831 = vmatpush.msra.mxu0 %v1613
      %1832 = vmatpush.msra.mxu0 %v1612
      %1833 = vmatpush.msra.mxu0 %v1611
      %1834 = vmatpush.msra.mxu0 %v1610
      %1835 = vmatpush.msra.mxu0 %v1609
      %1836 = vmatpush.msra.mxu0 %v1608
      %1837 = vmatpush.msra.mxu0 %v1607
      %1838 = vmatpush.msra.mxu0 %v1606
      %1839 = vmatpush.msra.mxu0 %v1605
      %1840 = vmatpush.msra.mxu0 %v1604
      %1841 = vmatpush.msra.mxu0 %v1603
      %1842 = vmatpush.msra.mxu0 %v1602
      %1843 = vmatpush.msra.mxu0 %v1601
      %1844 = vmatpush.msra.mxu0 %v1600
      %1845 = vmatpush.msra.mxu0 %v1599
      %1846 = vmatmul.f32.gmra.mxu0 %v1087
      %v1847 = vpop.f32.mrf.mxu0
      %v1848 = vadd.f32 %v1807, %v1847
      %1849 = vmatmul.f32.gmra.mxu0 %v1097
      %v1850 = vpop.f32.mrf.mxu0
      %v1851 = vadd.f32 %v1810, %v1850
      %1852 = vmatmul.f32.gmra.mxu0 %v1107
      %v1853 = vpop.f32.mrf.mxu0
      %v1854 = vadd.f32 %v1813, %v1853
      %1855 = vmatmul.f32.gmra.mxu0 %v1117
      %v1856 = vpop.f32.mrf.mxu0
      %v1857 = vadd.f32 %v1816, %v1856
      %1858 = vmatmul.f32.gmra.mxu0 %v1127
      %v1859 = vpop.f32.mrf.mxu0
      %v1860 = vadd.f32 %v1819, %v1859
      %1861 = vmatmul.f32.gmra.mxu0 %v1137
      %v1862 = vpop.f32.mrf.mxu0
      %v1863 = vadd.f32 %v1822, %v1862
      %1864 = vmatmul.f32.gmra.mxu0 %v1147
      %v1865 = vpop.f32.mrf.mxu0
      %v1866 = vadd.f32 %v1825, %v1865
      %1867 = vmatmul.f32.gmra.mxu0 %v1157
      %v1868 = vpop.f32.mrf.mxu0
      %v1869 = vadd.f32 %v1828, %v1868
      %1870 = vdwg.mxu0
      %1871 = vmatpush.msra.mxu0 %v1630
      %1872 = vmatpush.msra.mxu0 %v1629
      %1873 = vmatpush.msra.mxu0 %v1628
      %1874 = vmatpush.msra.mxu0 %v1627
      %1875 = vmatpush.msra.mxu0 %v1626
      %1876 = vmatpush.msra.mxu0 %v1625
      %1877 = vmatpush.msra.mxu0 %v1624
      %1878 = vmatpush.msra.mxu0 %v1623
      %1879 = vmatpush.msra.mxu0 %v1622
      %1880 = vmatpush.msra.mxu0 %v1621
      %1881 = vmatpush.msra.mxu0 %v1620
      %1882 = vmatpush.msra.mxu0 %v1619
      %1883 = vmatpush.msra.mxu0 %v1618
      %1884 = vmatpush.msra.mxu0 %v1617
      %1885 = vmatpush.msra.mxu0 %v1616
      %1886 = vmatpush.msra.mxu0 %v1615
      %1887 = vmatmul.f32.gmra.mxu0 %v1088
      %v1888 = vpop.f32.mrf.mxu0
      %v1889 = vadd.f32 %v1848, %v1888
      %1890 = vmatmul.f32.gmra.mxu0 %v1098
      %v1891 = vpop.f32.mrf.mxu0
      %v1892 = vadd.f32 %v1851, %v1891
      %1893 = vmatmul.f32.gmra.mxu0 %v1108
      %v1894 = vpop.f32.mrf.mxu0
      %v1895 = vadd.f32 %v1854, %v1894
      %1896 = vmatmul.f32.gmra.mxu0 %v1118
      %v1897 = vpop.f32.mrf.mxu0
      %v1898 = vadd.f32 %v1857, %v1897
      %1899 = vmatmul.f32.gmra.mxu0 %v1128
      %v1900 = vpop.f32.mrf.mxu0
      %v1901 = vadd.f32 %v1860, %v1900
      %1902 = vmatmul.f32.gmra.mxu0 %v1138
      %v1903 = vpop.f32.mrf.mxu0
      %v1904 = vadd.f32 %v1863, %v1903
      %1905 = vmatmul.f32.gmra.mxu0 %v1148
      %v1906 = vpop.f32.mrf.mxu0
      %v1907 = vadd.f32 %v1866, %v1906
      %1908 = vmatmul.f32.gmra.mxu0 %v1158
      %v1909 = vpop.f32.mrf.mxu0
      %v1910 = vadd.f32 %v1869, %v1909
      %1911 = vdwg.mxu0
      %1912 = vmatpush.msra.mxu0 %v1646
      %1913 = vmatpush.msra.mxu0 %v1645
      %1914 = vmatpush.msra.mxu0 %v1644
      %1915 = vmatpush.msra.mxu0 %v1643
      %1916 = vmatpush.msra.mxu0 %v1642
      %1917 = vmatpush.msra.mxu0 %v1641
      %1918 = vmatpush.msra.mxu0 %v1640
      %1919 = vmatpush.msra.mxu0 %v1639
      %1920 = vmatpush.msra.mxu0 %v1638
      %1921 = vmatpush.msra.mxu0 %v1637
      %1922 = vmatpush.msra.mxu0 %v1636
      %1923 = vmatpush.msra.mxu0 %v1635
      %1924 = vmatpush.msra.mxu0 %v1634
      %1925 = vmatpush.msra.mxu0 %v1633
      %1926 = vmatpush.msra.mxu0 %v1632
      %1927 = vmatpush.msra.mxu0 %v1631
      %1928 = vmatmul.f32.gmra.mxu0 %v1089
      %v1929 = vpop.f32.mrf.mxu0
      %v1930 = vadd.f32 %v1889, %v1929
      %1931 = vmatmul.f32.gmra.mxu0 %v1099
      %v1932 = vpop.f32.mrf.mxu0
      %v1933 = vadd.f32 %v1892, %v1932
      %1934 = vmatmul.f32.gmra.mxu0 %v1109
      %v1935 = vpop.f32.mrf.mxu0
      %v1936 = vadd.f32 %v1895, %v1935
      %1937 = vmatmul.f32.gmra.mxu0 %v1119
      %v1938 = vpop.f32.mrf.mxu0
      %v1939 = vadd.f32 %v1898, %v1938
      %1940 = vmatmul.f32.gmra.mxu0 %v1129
      %v1941 = vpop.f32.mrf.mxu0
      %v1942 = vadd.f32 %v1901, %v1941
      %1943 = vmatmul.f32.gmra.mxu0 %v1139
      %v1944 = vpop.f32.mrf.mxu0
      %v1945 = vadd.f32 %v1904, %v1944
      %1946 = vmatmul.f32.gmra.mxu0 %v1149
      %v1947 = vpop.f32.mrf.mxu0
      %v1948 = vadd.f32 %v1907, %v1947
      %1949 = vmatmul.f32.gmra.mxu0 %v1159
      %v1950 = vpop.f32.mrf.mxu0
      %v1951 = vadd.f32 %v1910, %v1950
      %1952 = vdwg.mxu0
      %1953 = vmatpush.msra.mxu0 %v1662
      %1954 = vmatpush.msra.mxu0 %v1661
      %1955 = vmatpush.msra.mxu0 %v1660
      %1956 = vmatpush.msra.mxu0 %v1659
      %1957 = vmatpush.msra.mxu0 %v1658
      %1958 = vmatpush.msra.mxu0 %v1657
      %1959 = vmatpush.msra.mxu0 %v1656
      %1960 = vmatpush.msra.mxu0 %v1655
      %1961 = vmatpush.msra.mxu0 %v1654
      %1962 = vmatpush.msra.mxu0 %v1653
      %1963 = vmatpush.msra.mxu0 %v1652
      %1964 = vmatpush.msra.mxu0 %v1651
      %1965 = vmatpush.msra.mxu0 %v1650
      %1966 = vmatpush.msra.mxu0 %v1649
      %1967 = vmatpush.msra.mxu0 %v1648
      %1968 = vmatpush.msra.mxu0 %v1647
      %1969 = vmatmul.f32.gmra.mxu0 %v1090
      %v1970 = vpop.f32.mrf.mxu0
      %v1971 = vadd.f32 %v1930, %v1970
      %1972 = vmatmul.f32.gmra.mxu0 %v1100
      %v1973 = vpop.f32.mrf.mxu0
      %v1974 = vadd.f32 %v1933, %v1973
      %1975 = vmatmul.f32.gmra.mxu0 %v1110
      %v1976 = vpop.f32.mrf.mxu0
      %v1977 = vadd.f32 %v1936, %v1976
      %1978 = vmatmul.f32.gmra.mxu0 %v1120
      %v1979 = vpop.f32.mrf.mxu0
      %v1980 = vadd.f32 %v1939, %v1979
      %1981 = vmatmul.f32.gmra.mxu0 %v1130
      %v1982 = vpop.f32.mrf.mxu0
      %v1983 = vadd.f32 %v1942, %v1982
      %1984 = vmatmul.f32.gmra.mxu0 %v1140
      %v1985 = vpop.f32.mrf.mxu0
      %v1986 = vadd.f32 %v1945, %v1985
      %1987 = vmatmul.f32.gmra.mxu0 %v1150
      %v1988 = vpop.f32.mrf.mxu0
      %v1989 = vadd.f32 %v1948, %v1988
      %1990 = vmatmul.f32.gmra.mxu0 %v1160
      %v1991 = vpop.f32.mrf.mxu0
      %v1992 = vadd.f32 %v1951, %v1991
      %1993 = vdwg.mxu0
      %1994 = vmatpush.msra.mxu0 %v1678
      %1995 = vmatpush.msra.mxu0 %v1677
      %1996 = vmatpush.msra.mxu0 %v1676
      %1997 = vmatpush.msra.mxu0 %v1675
      %1998 = vmatpush.msra.mxu0 %v1674
      %1999 = vmatpush.msra.mxu0 %v1673
      %2000 = vmatpush.msra.mxu0 %v1672
      %2001 = vmatpush.msra.mxu0 %v1671
      %2002 = vmatpush.msra.mxu0 %v1670
      %2003 = vmatpush.msra.mxu0 %v1669
      %2004 = vmatpush.msra.mxu0 %v1668
      %2005 = vmatpush.msra.mxu0 %v1667
      %2006 = vmatpush.msra.mxu0 %v1666
      %2007 = vmatpush.msra.mxu0 %v1665
      %2008 = vmatpush.msra.mxu0 %v1664
      %2009 = vmatpush.msra.mxu0 %v1663
      %2010 = vmatmul.f32.gmra.mxu0 %v1091
      %v2011 = vpop.f32.mrf.mxu0
      %v2012 = vadd.f32 %v1971, %v2011
      %2013 = vmatmul.f32.gmra.mxu0 %v1101
      %v2014 = vpop.f32.mrf.mxu0
      %v2015 = vadd.f32 %v1974, %v2014
      %2016 = vmatmul.f32.gmra.mxu0 %v1111
      %v2017 = vpop.f32.mrf.mxu0
      %v2018 = vadd.f32 %v1977, %v2017
      %2019 = vmatmul.f32.gmra.mxu0 %v1121
      %v2020 = vpop.f32.mrf.mxu0
      %v2021 = vadd.f32 %v1980, %v2020
      %2022 = vmatmul.f32.gmra.mxu0 %v1131
      %v2023 = vpop.f32.mrf.mxu0
      %v2024 = vadd.f32 %v1983, %v2023
      %2025 = vmatmul.f32.gmra.mxu0 %v1141
      %v2026 = vpop.f32.mrf.mxu0
      %v2027 = vadd.f32 %v1986, %v2026
      %2028 = vmatmul.f32.gmra.mxu0 %v1151
      %v2029 = vpop.f32.mrf.mxu0
      %v2030 = vadd.f32 %v1989, %v2029
      %2031 = vmatmul.f32.gmra.mxu0 %v1161
      %v2032 = vpop.f32.mrf.mxu0
      %v2033 = vadd.f32 %v1992, %v2032
      %2034 = vdwg.mxu0
      %2035 = vmatpush.msra.mxu0 %v1694
      %2036 = vmatpush.msra.mxu0 %v1693
      %2037 = vmatpush.msra.mxu0 %v1692
      %2038 = vmatpush.msra.mxu0 %v1691
      %2039 = vmatpush.msra.mxu0 %v1690
      %2040 = vmatpush.msra.mxu0 %v1689
      %2041 = vmatpush.msra.mxu0 %v1688
      %2042 = vmatpush.msra.mxu0 %v1687
      %2043 = vmatpush.msra.mxu0 %v1686
      %2044 = vmatpush.msra.mxu0 %v1685
      %2045 = vmatpush.msra.mxu0 %v1684
      %2046 = vmatpush.msra.mxu0 %v1683
      %2047 = vmatpush.msra.mxu0 %v1682
      %2048 = vmatpush.msra.mxu0 %v1681
      %2049 = vmatpush.msra.mxu0 %v1680
      %2050 = vmatpush.msra.mxu0 %v1679
      %2051 = vmatmul.f32.gmra.mxu0 %v1092
      %v2052 = vpop.f32.mrf.mxu0
      %v2053 = vadd.f32 %v2012, %v2052
      %2054 = vmatmul.f32.gmra.mxu0 %v1102
      %v2055 = vpop.f32.mrf.mxu0
      %v2056 = vadd.f32 %v2015, %v2055
      %2057 = vmatmul.f32.gmra.mxu0 %v1112
      %v2058 = vpop.f32.mrf.mxu0
      %v2059 = vadd.f32 %v2018, %v2058
      %2060 = vmatmul.f32.gmra.mxu0 %v1122
      %v2061 = vpop.f32.mrf.mxu0
      %v2062 = vadd.f32 %v2021, %v2061
      %2063 = vmatmul.f32.gmra.mxu0 %v1132
      %v2064 = vpop.f32.mrf.mxu0
      %v2065 = vadd.f32 %v2024, %v2064
      %2066 = vmatmul.f32.gmra.mxu0 %v1142
      %v2067 = vpop.f32.mrf.mxu0
      %v2068 = vadd.f32 %v2027, %v2067
      %2069 = vmatmul.f32.gmra.mxu0 %v1152
      %v2070 = vpop.f32.mrf.mxu0
      %v2071 = vadd.f32 %v2030, %v2070
      %2072 = vmatmul.f32.gmra.mxu0 %v1162
      %v2073 = vpop.f32.mrf.mxu0
      %v2074 = vadd.f32 %v2033, %v2073
      %2075 = vdwg.mxu0
      %2076 = vmatpush.msra.mxu0 %v1710
      %2077 = vmatpush.msra.mxu0 %v1709
      %2078 = vmatpush.msra.mxu0 %v1708
      %2079 = vmatpush.msra.mxu0 %v1707
      %2080 = vmatpush.msra.mxu0 %v1706
      %2081 = vmatpush.msra.mxu0 %v1705
      %2082 = vmatpush.msra.mxu0 %v1704
      %2083 = vmatpush.msra.mxu0 %v1703
      %2084 = vmatpush.msra.mxu0 %v1702
      %2085 = vmatpush.msra.mxu0 %v1701
      %2086 = vmatpush.msra.mxu0 %v1700
      %2087 = vmatpush.msra.mxu0 %v1699
      %2088 = vmatpush.msra.mxu0 %v1698
      %2089 = vmatpush.msra.mxu0 %v1697
      %2090 = vmatpush.msra.mxu0 %v1696
      %2091 = vmatpush.msra.mxu0 %v1695
      %2092 = vmatmul.f32.gmra.mxu0 %v1093
      %v2093 = vpop.f32.mrf.mxu0
      %v2094 = vadd.f32 %v2053, %v2093
      %2095 = vmatmul.f32.gmra.mxu0 %v1103
      %v2096 = vpop.f32.mrf.mxu0
      %v2097 = vadd.f32 %v2056, %v2096
      %2098 = vmatmul.f32.gmra.mxu0 %v1113
      %v2099 = vpop.f32.mrf.mxu0
      %v2100 = vadd.f32 %v2059, %v2099
      %2101 = vmatmul.f32.gmra.mxu0 %v1123
      %v2102 = vpop.f32.mrf.mxu0
      %v2103 = vadd.f32 %v2062, %v2102
      %2104 = vmatmul.f32.gmra.mxu0 %v1133
      %v2105 = vpop.f32.mrf.mxu0
      %v2106 = vadd.f32 %v2065, %v2105
      %2107 = vmatmul.f32.gmra.mxu0 %v1143
      %v2108 = vpop.f32.mrf.mxu0
      %v2109 = vadd.f32 %v2068, %v2108
      %2110 = vmatmul.f32.gmra.mxu0 %v1153
      %v2111 = vpop.f32.mrf.mxu0
      %v2112 = vadd.f32 %v2071, %v2111
      %2113 = vmatmul.f32.gmra.mxu0 %v1163
      %v2114 = vpop.f32.mrf.mxu0
      %v2115 = vadd.f32 %v2074, %v2114
      %2116 = vdwg.mxu0
      %2117 = vmatpush.msra.mxu0 0.0
      %2118 = vmatpush.msra.mxu0 0.0
      %2119 = vmatpush.msra.mxu0 0.0
      %2120 = vmatpush.msra.mxu0 0.0
      %2121 = vmatpush.msra.mxu0 0.0
      %2122 = vmatpush.msra.mxu0 0.0
      %2123 = vmatpush.msra.mxu0 0.0
      %2124 = vmatpush.msra.mxu0 %v1746
      %2125 = vmatpush.msra.mxu0 %v1718
      %2126 = vmatpush.msra.mxu0 %v1717
      %2127 = vmatpush.msra.mxu0 %v1716
      %2128 = vmatpush.msra.mxu0 %v1715
      %2129 = vmatpush.msra.mxu0 %v1714
      %2130 = vmatpush.msra.mxu0 %v1713
      %2131 = vmatpush.msra.mxu0 %v1712
      %2132 = vmatpush.msra.mxu0 %v1711
      %2133 = vmatmul.f32.gmra.mxu0 %v1721
      %v2134 = vpop.f32.mrf.mxu0
      %v2135 = vadd.f32 %v2094, %v2134
      %2136 = vmatmul.f32.gmra.mxu0 %v1724
      %v2137 = vpop.f32.mrf.mxu0
      %v2138 = vadd.f32 %v2097, %v2137
      %2139 = vmatmul.f32.gmra.mxu0 %v1727
      %v2140 = vpop.f32.mrf.mxu0
      %v2141 = vadd.f32 %v2100, %v2140
      %2142 = vmatmul.f32.gmra.mxu0 %v1730
      %v2143 = vpop.f32.mrf.mxu0
      %v2144 = vadd.f32 %v2103, %v2143
      %2145 = vmatmul.f32.gmra.mxu0 %v1733
      %v2146 = vpop.f32.mrf.mxu0
      %v2147 = vadd.f32 %v2106, %v2146
      %2148 = vmatmul.f32.gmra.mxu0 %v1736
      %v2149 = vpop.f32.mrf.mxu0
      %v2150 = vadd.f32 %v2109, %v2149
      %2151 = vmatmul.f32.gmra.mxu0 %v1739
      %v2152 = vpop.f32.mrf.mxu0
      %v2153 = vadd.f32 %v2112, %v2152
      %2154 = vmatmul.f32.gmra.mxu0 %v1742
      %v2155 = vpop.f32.mrf.mxu0
      %v2156 = vadd.f32 %v2115, %v2155
      %2157 = vdwg.mxu0
      %v2158 = vmul.f32 %v2135, 4.5
      %v2159 = vmul.f32 %v2138, 4.5
      %v2160 = vmul.f32 %v2141, 4.5
      %v2161 = vmul.f32 %v2144, 4.5
      %v2162 = vmul.f32 %v2147, 4.5
      %v2163 = vmul.f32 %v2150, 4.5
      %v2164 = vmul.f32 %v2153, 4.5
      %v2165 = vmul.f32 %v2156, 4.5
      %v2166 = vld [vmem:[%s434] sm:$0xff]
      %v2167 = vld [vmem:[%s434 + $0x8] sm:$0xff]
      %v2168 = vld [vmem:[%s434 + $0x10] sm:$0xff]
      %v2169 = vld [vmem:[%s434 + $0x18] sm:$0xff]
      %v2170 = vld [vmem:[%s434 + $0x20] sm:$0xff]
      %v2171 = vld [vmem:[%s434 + $0x28] sm:$0xff]
      %v2172 = vld [vmem:[%s434 + $0x30] sm:$0xff]
      %v2173 = vld [vmem:[%s434 + $0x38] sm:$0xff]
      %v2174 = vsub.f32 %v2158, %v2166
      %v2175 = vsub.f32 %v2159, %v2167
      %v2176 = vsub.f32 %v2160, %v2168
      %v2177 = vsub.f32 %v2161, %v2169
      %v2178 = vsub.f32 %v2162, %v2170
      %v2179 = vsub.f32 %v2163, %v2171
      %v2180 = vsub.f32 %v2164, %v2172
      %v2181 = vsub.f32 %v2165, %v2173
      %v2182 = vand.u32 2147483647, %v2174
      %v2183 = vand.u32 2147483647, %v2175
      %v2184 = vand.u32 2147483647, %v2176
      %v2185 = vand.u32 2147483647, %v2177
      %v2186 = vand.u32 2147483647, %v2178
      %v2187 = vand.u32 2147483647, %v2179
      %v2188 = vand.u32 2147483647, %v2180
      %v2189 = vand.u32 2147483647, %v2181
      %v2190 = vmul.f32 %v2182, %v2182
      %v2191 = vmul.f32 %v2183, %v2183
      %v2192 = vmul.f32 %v2184, %v2184
      %v2193 = vmul.f32 %v2185, %v2185
      %v2194 = vmul.f32 %v2186, %v2186
      %v2195 = vmul.f32 %v2187, %v2187
      %v2196 = vmul.f32 %v2188, %v2188
      %v2197 = vmul.f32 %v2189, %v2189
      %v2198 = vmul.f32 %v2190, 50.0
      %v2199 = vmul.f32 %v2191, 50.0
      %v2200 = vmul.f32 %v2192, 50.0
      %v2201 = vmul.f32 %v2193, 50.0
      %v2202 = vmul.f32 %v2194, 50.0
      %v2203 = vmul.f32 %v2195, 50.0
      %v2204 = vmul.f32 %v2196, 50.0
      %v2205 = vmul.f32 %v2197, 50.0
      %v2206 = vsub.f32 %v2182, 0.005
      %v2207 = vsub.f32 %v2183, 0.005
      %v2208 = vsub.f32 %v2184, 0.005
      %v2209 = vsub.f32 %v2185, 0.005
      %v2210 = vsub.f32 %v2186, 0.005
      %v2211 = vsub.f32 %v2187, 0.005
      %v2212 = vsub.f32 %v2188, 0.005
      %v2213 = vsub.f32 %v2189, 0.005
      %vm2214 = vcmp.gt.f32.partialorder %v2182, 0.01
      %vm2215 = vcmp.gt.f32.partialorder %v2183, 0.01
      %vm2216 = vcmp.gt.f32.partialorder %v2184, 0.01
      %vm2217 = vcmp.gt.f32.partialorder %v2185, 0.01
      %vm2218 = vcmp.gt.f32.partialorder %v2186, 0.01
      %vm2219 = vcmp.gt.f32.partialorder %v2187, 0.01
      %vm2220 = vcmp.gt.f32.partialorder %v2188, 0.01
      %vm2221 = vcmp.gt.f32.partialorder %v2189, 0.01
      %v2222 = vsel %vm2214, %v2206, %v2198
      %v2223 = vsel %vm2215, %v2207, %v2199
      %v2224 = vsel %vm2216, %v2208, %v2200
      %v2225 = vsel %vm2217, %v2209, %v2201
      %v2226 = vsel %vm2218, %v2210, %v2202
      %v2227 = vsel %vm2219, %v2211, %v2203
      %v2228 = vsel %vm2220, %v2212, %v2204
      %v2229 = vsel %vm2221, %v2213, %v2205
      %vm2230 = vcmask 23552
      %v2231 = vsel %vm2230, %v2222, 0.0
      %v2232 = vsel %vm2230, %v2223, 0.0
      %v2233 = vadd.f32 %v2231, %v2232
      %v2234 = vsel %vm2230, %v2224, 0.0
      %v2235 = vadd.f32 %v2233, %v2234
      %v2236 = vsel %vm2230, %v2225, 0.0
      %v2237 = vadd.f32 %v2235, %v2236
      %v2238 = vsel %vm2230, %v2226, 0.0
      %v2239 = vadd.f32 %v2237, %v2238
      %v2240 = vsel %vm2230, %v2227, 0.0
      %v2241 = vadd.f32 %v2239, %v2240
      %v2242 = vsel %vm2230, %v2228, 0.0
      %v2243 = vadd.f32 %v2241, %v2242
      %v2244 = vsel %vm2230, %v2229, 0.0
      %v2245 = vadd.f32 %v2243, %v2244
      %2246 = vadd.xlane.f32.xlu0 %v2245
      %v2247 = vpop.xlane.xlu0 %2246
      %v2248 = vrot.slane %v2247, 4
      %v2249 = vadd.f32 %v2247, %v2248
      %v2250 = vrot.slane %v2249, 2
      %v2251 = vadd.f32 %v2249, %v2250
      %v2252 = vrot.slane %v2251, 1
      %v2253 = vadd.f32 %v2251, %v2252
      %s2254 = vtos %v2253
      %v2255 = vsub.f32 0.0, %v1085
      %v2256 = vsub.f32 0.0, %v1086
      %v2257 = vsub.f32 0.0, %v1087
      %v2258 = vsub.f32 0.0, %v1088
      %v2259 = vsub.f32 0.0, %v1089
      %v2260 = vsub.f32 0.0, %v1090
      %v2261 = vsub.f32 0.0, %v1091
      %v2262 = vsub.f32 0.0, %v1092
      %v2263 = vsub.f32 0.0, %v1093
      %v2264 = vsub.f32 0.0, %v1094
      %v2265 = vsub.f32 0.0, %v1095
      %v2266 = vsub.f32 0.0, %v1096
      %v2267 = vsub.f32 0.0, %v1097
      %v2268 = vsub.f32 0.0, %v1098
      %v2269 = vsub.f32 0.0, %v1099
      %v2270 = vsub.f32 0.0, %v1100
      %v2271 = vsub.f32 0.0, %v1101
      %v2272 = vsub.f32 0.0, %v1102
      %v2273 = vsub.f32 0.0, %v1103
      %v2274 = vsub.f32 0.0, %v1104
      %v2275 = vsub.f32 0.0, %v1105
      %v2276 = vsub.f32 0.0, %v1106
      %v2277 = vsub.f32 0.0, %v1107
      %v2278 = vsub.f32 0.0, %v1108
      %v2279 = vsub.f32 0.0, %v1109
      %v2280 = vsub.f32 0.0, %v1110
      %v2281 = vsub.f32 0.0, %v1111
      %v2282 = vsub.f32 0.0, %v1112
      %v2283 = vsub.f32 0.0, %v1113
      %v2284 = vsub.f32 0.0, %v1114
      %v2285 = vsub.f32 0.0, %v1115
      %v2286 = vsub.f32 0.0, %v1116
      %v2287 = vsub.f32 0.0, %v1117
      %v2288 = vsub.f32 0.0, %v1118
      %v2289 = vsub.f32 0.0, %v1119
      %v2290 = vsub.f32 0.0, %v1120
      %v2291 = vsub.f32 0.0, %v1121
      %v2292 = vsub.f32 0.0, %v1122
      %v2293 = vsub.f32 0.0, %v1123
      %v2294 = vsub.f32 0.0, %v1124
      %v2295 = vsub.f32 0.0, %v1125
      %v2296 = vsub.f32 0.0, %v1126
      %v2297 = vsub.f32 0.0, %v1127
      %v2298 = vsub.f32 0.0, %v1128
      %v2299 = vsub.f32 0.0, %v1129
      %v2300 = vsub.f32 0.0, %v1130
      %v2301 = vsub.f32 0.0, %v1131
      %v2302 = vsub.f32 0.0, %v1132
      %v2303 = vsub.f32 0.0, %v1133
      %v2304 = vsub.f32 0.0, %v1134
      %v2305 = vsub.f32 0.0, %v1135
      %v2306 = vsub.f32 0.0, %v1136
      %v2307 = vsub.f32 0.0, %v1137
      %v2308 = vsub.f32 0.0, %v1138
      %v2309 = vsub.f32 0.0, %v1139
      %v2310 = vsub.f32 0.0, %v1140
      %v2311 = vsub.f32 0.0, %v1141
      %v2312 = vsub.f32 0.0, %v1142
      %v2313 = vsub.f32 0.0, %v1143
      %v2314 = vsub.f32 0.0, %v1144
      %v2315 = vsub.f32 0.0, %v1145
      %v2316 = vsub.f32 0.0, %v1146
      %v2317 = vsub.f32 0.0, %v1147
      %v2318 = vsub.f32 0.0, %v1148
      %v2319 = vsub.f32 0.0, %v1149
      %v2320 = vsub.f32 0.0, %v1150
      %v2321 = vsub.f32 0.0, %v1151
      %v2322 = vsub.f32 0.0, %v1152
      %v2323 = vsub.f32 0.0, %v1153
      %v2324 = vsub.f32 0.0, %v1154
      %v2325 = vsub.f32 0.0, %v1155
      %v2326 = vsub.f32 0.0, %v1156
      %v2327 = vsub.f32 0.0, %v1157
      %v2328 = vsub.f32 0.0, %v1158
      %v2329 = vsub.f32 0.0, %v1159
      %v2330 = vsub.f32 0.0, %v1160
      %v2331 = vsub.f32 0.0, %v1161
      %v2332 = vsub.f32 0.0, %v1162
      %v2333 = vsub.f32 0.0, %v1163
      %v2334 = vsub.f32 0.0, %v1164
      %v2335 = vmul.f32 %v2255, %v1181
      %v2336 = vmul.f32 %v2256, %v1182
      %v2337 = vmul.f32 %v2257, %v1183
      %v2338 = vmul.f32 %v2258, %v1184
      %v2339 = vmul.f32 %v2259, %v1185
      %v2340 = vmul.f32 %v2260, %v1186
      %v2341 = vmul.f32 %v2261, %v1187
      %v2342 = vmul.f32 %v2262, %v1188
      %v2343 = vmul.f32 %v2263, %v1189
      %v2344 = vmul.f32 %v2264, %v1190
      %v2345 = vmul.f32 %v2265, %v1191
      %v2346 = vmul.f32 %v2266, %v1192
      %v2347 = vmul.f32 %v2267, %v1193
      %v2348 = vmul.f32 %v2268, %v1194
      %v2349 = vmul.f32 %v2269, %v1195
      %v2350 = vmul.f32 %v2270, %v1196
      %v2351 = vmul.f32 %v2271, %v1197
      %v2352 = vmul.f32 %v2272, %v1198
      %v2353 = vmul.f32 %v2273, %v1199
      %v2354 = vmul.f32 %v2274, %v1200
      %v2355 = vmul.f32 %v2275, %v1201
      %v2356 = vmul.f32 %v2276, %v1202
      %v2357 = vmul.f32 %v2277, %v1203
      %v2358 = vmul.f32 %v2278, %v1204
      %v2359 = vmul.f32 %v2279, %v1205
      %v2360 = vmul.f32 %v2280, %v1206
      %v2361 = vmul.f32 %v2281, %v1207
      %v2362 = vmul.f32 %v2282, %v1208
      %v2363 = vmul.f32 %v2283, %v1209
      %v2364 = vmul.f32 %v2284, %v1210
      %v2365 = vmul.f32 %v2285, %v1211
      %v2366 = vmul.f32 %v2286, %v1212
      %v2367 = vmul.f32 %v2287, %v1213
      %v2368 = vmul.f32 %v2288, %v1214
      %v2369 = vmul.f32 %v2289, %v1215
      %v2370 = vmul.f32 %v2290, %v1216
      %v2371 = vmul.f32 %v2291, %v1217
      %v2372 = vmul.f32 %v2292, %v1218
      %v2373 = vmul.f32 %v2293, %v1219
      %v2374 = vmul.f32 %v2294, %v1220
      %v2375 = vmul.f32 %v2295, %v1221
      %v2376 = vmul.f32 %v2296, %v1222
      %v2377 = vmul.f32 %v2297, %v1223
      %v2378 = vmul.f32 %v2298, %v1224
      %v2379 = vmul.f32 %v2299, %v1225
      %v2380 = vmul.f32 %v2300, %v1226
      %v2381 = vmul.f32 %v2301, %v1227
      %v2382 = vmul.f32 %v2302, %v1228
      %v2383 = vmul.f32 %v2303, %v1229
      %v2384 = vmul.f32 %v2304, %v1230
      %v2385 = vmul.f32 %v2305, %v1231
      %v2386 = vmul.f32 %v2306, %v1232
      %v2387 = vmul.f32 %v2307, %v1233
      %v2388 = vmul.f32 %v2308, %v1234
      %v2389 = vmul.f32 %v2309, %v1235
      %v2390 = vmul.f32 %v2310, %v1236
      %v2391 = vmul.f32 %v2311, %v1237
      %v2392 = vmul.f32 %v2312, %v1238
      %v2393 = vmul.f32 %v2313, %v1239
      %v2394 = vmul.f32 %v2314, %v1240
      %v2395 = vmul.f32 %v2315, %v1241
      %v2396 = vmul.f32 %v2316, %v1242
      %v2397 = vmul.f32 %v2317, %v1243
      %v2398 = vmul.f32 %v2318, %v1244
      %v2399 = vmul.f32 %v2319, %v1245
      %v2400 = vmul.f32 %v2320, %v1246
      %v2401 = vmul.f32 %v2321, %v1247
      %v2402 = vmul.f32 %v2322, %v1248
      %v2403 = vmul.f32 %v2323, %v1249
      %v2404 = vmul.f32 %v2324, %v1250
      %v2405 = vmul.f32 %v2325, %v1251
      %v2406 = vmul.f32 %v2326, %v1252
      %v2407 = vmul.f32 %v2327, %v1253
      %v2408 = vmul.f32 %v2328, %v1254
      %v2409 = vmul.f32 %v2329, %v1255
      %v2410 = vmul.f32 %v2330, %v1256
      %v2411 = vmul.f32 %v2331, %v1257
      %v2412 = vmul.f32 %v2332, %v1258
      %v2413 = vmul.f32 %v2333, %v1259
      %v2414 = vmul.f32 %v2334, %v1260
      %v2415 = vadd.f32 %v2335, %v2336
      %v2416 = vadd.f32 %v2415, %v2337
      %v2417 = vadd.f32 %v2416, %v2338
      %v2418 = vadd.f32 %v2417, %v2339
      %v2419 = vadd.f32 %v2418, %v2340
      %v2420 = vadd.f32 %v2419, %v2341
      %v2421 = vadd.f32 %v2420, %v2342
      %v2422 = vadd.f32 %v2421, %v2343
      %v2423 = vsel %vm548, %v2344, 0.0
      %v2424 = vadd.f32 %v2422, %v2423
      %v2425 = vadd.f32 %v2424, %v2345
      %v2426 = vadd.f32 %v2425, %v2346
      %v2427 = vadd.f32 %v2426, %v2347
      %v2428 = vadd.f32 %v2427, %v2348
      %v2429 = vadd.f32 %v2428, %v2349
      %v2430 = vadd.f32 %v2429, %v2350
      %v2431 = vadd.f32 %v2430, %v2351
      %v2432 = vadd.f32 %v2431, %v2352
      %v2433 = vadd.f32 %v2432, %v2353
      %v2434 = vsel %vm548, %v2354, 0.0
      %v2435 = vadd.f32 %v2433, %v2434
      %v2436 = vadd.f32 %v2435, %v2355
      %v2437 = vadd.f32 %v2436, %v2356
      %v2438 = vadd.f32 %v2437, %v2357
      %v2439 = vadd.f32 %v2438, %v2358
      %v2440 = vadd.f32 %v2439, %v2359
      %v2441 = vadd.f32 %v2440, %v2360
      %v2442 = vadd.f32 %v2441, %v2361
      %v2443 = vadd.f32 %v2442, %v2362
      %v2444 = vadd.f32 %v2443, %v2363
      %v2445 = vsel %vm548, %v2364, 0.0
      %v2446 = vadd.f32 %v2444, %v2445
      %v2447 = vadd.f32 %v2446, %v2365
      %v2448 = vadd.f32 %v2447, %v2366
      %v2449 = vadd.f32 %v2448, %v2367
      %v2450 = vadd.f32 %v2449, %v2368
      %v2451 = vadd.f32 %v2450, %v2369
      %v2452 = vadd.f32 %v2451, %v2370
      %v2453 = vadd.f32 %v2452, %v2371
      %v2454 = vadd.f32 %v2453, %v2372
      %v2455 = vadd.f32 %v2454, %v2373
      %v2456 = vsel %vm548, %v2374, 0.0
      %v2457 = vadd.f32 %v2455, %v2456
      %v2458 = vadd.f32 %v2457, %v2375
      %v2459 = vadd.f32 %v2458, %v2376
      %v2460 = vadd.f32 %v2459, %v2377
      %v2461 = vadd.f32 %v2460, %v2378
      %v2462 = vadd.f32 %v2461, %v2379
      %v2463 = vadd.f32 %v2462, %v2380
      %v2464 = vadd.f32 %v2463, %v2381
      %v2465 = vadd.f32 %v2464, %v2382
      %v2466 = vadd.f32 %v2465, %v2383
      %v2467 = vsel %vm548, %v2384, 0.0
      %v2468 = vadd.f32 %v2466, %v2467
      %v2469 = vadd.f32 %v2468, %v2385
      %v2470 = vadd.f32 %v2469, %v2386
      %v2471 = vadd.f32 %v2470, %v2387
      %v2472 = vadd.f32 %v2471, %v2388
      %v2473 = vadd.f32 %v2472, %v2389
      %v2474 = vadd.f32 %v2473, %v2390
      %v2475 = vadd.f32 %v2474, %v2391
      %v2476 = vadd.f32 %v2475, %v2392
      %v2477 = vadd.f32 %v2476, %v2393
      %v2478 = vsel %vm548, %v2394, 0.0
      %v2479 = vadd.f32 %v2477, %v2478
      %v2480 = vadd.f32 %v2479, %v2395
      %v2481 = vadd.f32 %v2480, %v2396
      %v2482 = vadd.f32 %v2481, %v2397
      %v2483 = vadd.f32 %v2482, %v2398
      %v2484 = vadd.f32 %v2483, %v2399
      %v2485 = vadd.f32 %v2484, %v2400
      %v2486 = vadd.f32 %v2485, %v2401
      %v2487 = vadd.f32 %v2486, %v2402
      %v2488 = vadd.f32 %v2487, %v2403
      %v2489 = vsel %vm548, %v2404, 0.0
      %v2490 = vadd.f32 %v2488, %v2489
      %v2491 = vadd.f32 %v2490, %v2405
      %v2492 = vadd.f32 %v2491, %v2406
      %v2493 = vadd.f32 %v2492, %v2407
      %v2494 = vadd.f32 %v2493, %v2408
      %v2495 = vadd.f32 %v2494, %v2409
      %v2496 = vadd.f32 %v2495, %v2410
      %v2497 = vadd.f32 %v2496, %v2411
      %v2498 = vadd.f32 %v2497, %v2412
      %v2499 = vadd.f32 %v2498, %v2413
      %v2500 = vsel %vm548, %v2414, 0.0
      %v2501 = vadd.f32 %v2499, %v2500
      %2502 = vadd.xlane.f32.xlu0 %v2501
      %v2503 = vpop.xlane.xlu0 %2502
      %v2504 = vrot.slane %v2503, 4
      %v2505 = vadd.f32 %v2503, %v2504
      %v2506 = vrot.slane %v2505, 2
      %v2507 = vadd.f32 %v2505, %v2506
      %v2508 = vrot.slane %v2507, 1
      %v2509 = vadd.f32 %v2507, %v2508
      %s2510 = vtos %v2509
      %v2511 = vld [vmem:[%s429] sm:$0xff]
      %v2512 = vld [vmem:[%s429 + $0x8] sm:$0xff]
      %v2513 = vld [vmem:[%s429 + $0x10] sm:$0xff]
      %v2514 = vld [vmem:[%s429 + $0x18] sm:$0xff]
      %v2515 = vld [vmem:[%s429 + $0x20] sm:$0xff]
      %v2516 = vld [vmem:[%s429 + $0x28] sm:$0xff]
      %v2517 = vld [vmem:[%s429 + $0x30] sm:$0xff]
      %v2518 = vld [vmem:[%s429 + $0x38] sm:$0xff]
      %v2519 = vld [vmem:[%s429 + $0x40] sm:$0xff]
      %v2520 = vld [vmem:[%s429 + $0x48] sm:$0xff]
      %v2521 = vld [vmem:[%s429 + $0x50] sm:$0xff]
      %v2522 = vld [vmem:[%s429 + $0x58] sm:$0xff]
      %v2523 = vld [vmem:[%s429 + $0x60] sm:$0xff]
      %v2524 = vld [vmem:[%s429 + $0x68] sm:$0xff]
      %v2525 = vld [vmem:[%s429 + $0x70] sm:$0xff]
      %v2526 = vld [vmem:[%s429 + $0x78] sm:$0xff]
      %v2527 = vld [vmem:[%s429 + $0x80] sm:$0xff]
      %v2528 = vld [vmem:[%s429 + $0x88] sm:$0xff]
      %v2529 = vld [vmem:[%s429 + $0x90] sm:$0xff]
      %v2530 = vld [vmem:[%s429 + $0x98] sm:$0xff]
      %v2531 = vld [vmem:[%s429 + $0xa0] sm:$0xff]
      %v2532 = vld [vmem:[%s429 + $0xa8] sm:$0xff]
      %v2533 = vld [vmem:[%s429 + $0xb0] sm:$0xff]
      %v2534 = vld [vmem:[%s429 + $0xb8] sm:$0xff]
      %v2535 = vld [vmem:[%s429 + $0xc0] sm:$0xff]
      %v2536 = vld [vmem:[%s429 + $0xc8] sm:$0xff]
      %v2537 = vld [vmem:[%s429 + $0xd0] sm:$0xff]
      %v2538 = vld [vmem:[%s429 + $0xd8] sm:$0xff]
      %v2539 = vld [vmem:[%s429 + $0xe0] sm:$0xff]
      %v2540 = vld [vmem:[%s429 + $0xe8] sm:$0xff]
      %v2541 = vld [vmem:[%s429 + $0xf0] sm:$0xff]
      %v2542 = vld [vmem:[%s429 + $0xf8] sm:$0xff]
      %v2543 = vld [vmem:[%s429 + $0x100] sm:$0xff]
      %v2544 = vld [vmem:[%s429 + $0x108] sm:$0xff]
      %v2545 = vld [vmem:[%s429 + $0x110] sm:$0xff]
      %v2546 = vld [vmem:[%s429 + $0x118] sm:$0xff]
      %v2547 = vld [vmem:[%s429 + $0x120] sm:$0xff]
      %v2548 = vld [vmem:[%s429 + $0x128] sm:$0xff]
      %v2549 = vld [vmem:[%s429 + $0x130] sm:$0xff]
      %v2550 = vld [vmem:[%s429 + $0x138] sm:$0xff]
      %v2551 = vld [vmem:[%s429 + $0x140] sm:$0xff]
      %v2552 = vld [vmem:[%s429 + $0x148] sm:$0xff]
      %v2553 = vld [vmem:[%s429 + $0x150] sm:$0xff]
      %v2554 = vld [vmem:[%s429 + $0x158] sm:$0xff]
      %v2555 = vld [vmem:[%s429 + $0x160] sm:$0xff]
      %v2556 = vld [vmem:[%s429 + $0x168] sm:$0xff]
      %v2557 = vld [vmem:[%s429 + $0x170] sm:$0xff]
      %v2558 = vld [vmem:[%s429 + $0x178] sm:$0xff]
      %v2559 = vld [vmem:[%s429 + $0x180] sm:$0xff]
      %v2560 = vld [vmem:[%s429 + $0x188] sm:$0xff]
      %v2561 = vld [vmem:[%s429 + $0x190] sm:$0xff]
      %v2562 = vld [vmem:[%s429 + $0x198] sm:$0xff]
      %v2563 = vld [vmem:[%s429 + $0x1a0] sm:$0xff]
      %v2564 = vld [vmem:[%s429 + $0x1a8] sm:$0xff]
      %v2565 = vld [vmem:[%s429 + $0x1b0] sm:$0xff]
      %v2566 = vld [vmem:[%s429 + $0x1b8] sm:$0xff]
      %v2567 = vld [vmem:[%s429 + $0x1c0] sm:$0xff]
      %v2568 = vld [vmem:[%s429 + $0x1c8] sm:$0xff]
      %v2569 = vld [vmem:[%s429 + $0x1d0] sm:$0xff]
      %v2570 = vld [vmem:[%s429 + $0x1d8] sm:$0xff]
      %v2571 = vld [vmem:[%s429 + $0x1e0] sm:$0xff]
      %v2572 = vld [vmem:[%s429 + $0x1e8] sm:$0xff]
      %v2573 = vld [vmem:[%s429 + $0x1f0] sm:$0xff]
      %v2574 = vld [vmem:[%s429 + $0x1f8] sm:$0xff]
      %v2575 = vld [vmem:[%s429 + $0x200] sm:$0xff]
      %v2576 = vld [vmem:[%s429 + $0x208] sm:$0xff]
      %v2577 = vld [vmem:[%s429 + $0x210] sm:$0xff]
      %v2578 = vld [vmem:[%s429 + $0x218] sm:$0xff]
      %v2579 = vld [vmem:[%s429 + $0x220] sm:$0xff]
      %v2580 = vld [vmem:[%s429 + $0x228] sm:$0xff]
      %v2581 = vld [vmem:[%s429 + $0x230] sm:$0xff]
      %v2582 = vld [vmem:[%s429 + $0x238] sm:$0xff]
      %v2583 = vld [vmem:[%s429 + $0x240] sm:$0xff]
      %v2584 = vld [vmem:[%s429 + $0x248] sm:$0xff]
      %v2585 = vld [vmem:[%s429 + $0x250] sm:$0xff]
      %v2586 = vld [vmem:[%s429 + $0x258] sm:$0xff]
      %v2587 = vld [vmem:[%s429 + $0x260] sm:$0xff]
      %v2588 = vld [vmem:[%s429 + $0x268] sm:$0xff]
      %v2589 = vld [vmem:[%s429 + $0x270] sm:$0xff]
      %v2590 = vld [vmem:[%s429 + $0x278] sm:$0xff]
      %vm2591 = vcmp.gt.f32.partialorder %v2511, 0.0
      %vm2592 = vcmp.gt.f32.partialorder %v2512, 0.0
      %vm2593 = vcmp.gt.f32.partialorder %v2513, 0.0
      %vm2594 = vcmp.gt.f32.partialorder %v2514, 0.0
      %vm2595 = vcmp.gt.f32.partialorder %v2515, 0.0
      %vm2596 = vcmp.gt.f32.partialorder %v2516, 0.0
      %vm2597 = vcmp.gt.f32.partialorder %v2517, 0.0
      %vm2598 = vcmp.gt.f32.partialorder %v2518, 0.0
      %vm2599 = vcmp.gt.f32.partialorder %v2519, 0.0
      %vm2600 = vcmp.gt.f32.partialorder %v2520, 0.0
      %vm2601 = vcmp.gt.f32.partialorder %v2521, 0.0
      %vm2602 = vcmp.gt.f32.partialorder %v2522, 0.0
      %vm2603 = vcmp.gt.f32.partialorder %v2523, 0.0
      %vm2604 = vcmp.gt.f32.partialorder %v2524, 0.0
      %vm2605 = vcmp.gt.f32.partialorder %v2525, 0.0
      %vm2606 = vcmp.gt.f32.partialorder %v2526, 0.0
      %vm2607 = vcmp.gt.f32.partialorder %v2527, 0.0
      %vm2608 = vcmp.gt.f32.partialorder %v2528, 0.0
      %vm2609 = vcmp.gt.f32.partialorder %v2529, 0.0
      %vm2610 = vcmp.gt.f32.partialorder %v2530, 0.0
      %vm2611 = vcmp.gt.f32.partialorder %v2531, 0.0
      %vm2612 = vcmp.gt.f32.partialorder %v2532, 0.0
      %vm2613 = vcmp.gt.f32.partialorder %v2533, 0.0
      %vm2614 = vcmp.gt.f32.partialorder %v2534, 0.0
      %vm2615 = vcmp.gt.f32.partialorder %v2535, 0.0
      %vm2616 = vcmp.gt.f32.partialorder %v2536, 0.0
      %vm2617 = vcmp.gt.f32.partialorder %v2537, 0.0
      %vm2618 = vcmp.gt.f32.partialorder %v2538, 0.0
      %vm2619 = vcmp.gt.f32.partialorder %v2539, 0.0
      %vm2620 = vcmp.gt.f32.partialorder %v2540, 0.0
      %vm2621 = vcmp.gt.f32.partialorder %v2541, 0.0
      %vm2622 = vcmp.gt.f32.partialorder %v2542, 0.0
      %vm2623 = vcmp.gt.f32.partialorder %v2543, 0.0
      %vm2624 = vcmp.gt.f32.partialorder %v2544, 0.0
      %vm2625 = vcmp.gt.f32.partialorder %v2545, 0.0
      %vm2626 = vcmp.gt.f32.partialorder %v2546, 0.0
      %vm2627 = vcmp.gt.f32.partialorder %v2547, 0.0
      %vm2628 = vcmp.gt.f32.partialorder %v2548, 0.0
      %vm2629 = vcmp.gt.f32.partialorder %v2549, 0.0
      %vm2630 = vcmp.gt.f32.partialorder %v2550, 0.0
      %vm2631 = vcmp.gt.f32.partialorder %v2551, 0.0
      %vm2632 = vcmp.gt.f32.partialorder %v2552, 0.0
      %vm2633 = vcmp.gt.f32.partialorder %v2553, 0.0
      %vm2634 = vcmp.gt.f32.partialorder %v2554, 0.0
      %vm2635 = vcmp.gt.f32.partialorder %v2555, 0.0
      %vm2636 = vcmp.gt.f32.partialorder %v2556, 0.0
      %vm2637 = vcmp.gt.f32.partialorder %v2557, 0.0
      %vm2638 = vcmp.gt.f32.partialorder %v2558, 0.0
      %vm2639 = vcmp.gt.f32.partialorder %v2559, 0.0
      %vm2640 = vcmp.gt.f32.partialorder %v2560, 0.0
      %vm2641 = vcmp.gt.f32.partialorder %v2561, 0.0
      %vm2642 = vcmp.gt.f32.partialorder %v2562, 0.0
      %vm2643 = vcmp.gt.f32.partialorder %v2563, 0.0
      %vm2644 = vcmp.gt.f32.partialorder %v2564, 0.0
      %vm2645 = vcmp.gt.f32.partialorder %v2565, 0.0
      %vm2646 = vcmp.gt.f32.partialorder %v2566, 0.0
      %vm2647 = vcmp.gt.f32.partialorder %v2567, 0.0
      %vm2648 = vcmp.gt.f32.partialorder %v2568, 0.0
      %vm2649 = vcmp.gt.f32.partialorder %v2569, 0.0
      %vm2650 = vcmp.gt.f32.partialorder %v2570, 0.0
      %vm2651 = vcmp.gt.f32.partialorder %v2571, 0.0
      %vm2652 = vcmp.gt.f32.partialorder %v2572, 0.0
      %vm2653 = vcmp.gt.f32.partialorder %v2573, 0.0
      %vm2654 = vcmp.gt.f32.partialorder %v2574, 0.0
      %vm2655 = vcmp.gt.f32.partialorder %v2575, 0.0
      %vm2656 = vcmp.gt.f32.partialorder %v2576, 0.0
      %vm2657 = vcmp.gt.f32.partialorder %v2577, 0.0
      %vm2658 = vcmp.gt.f32.partialorder %v2578, 0.0
      %vm2659 = vcmp.gt.f32.partialorder %v2579, 0.0
      %vm2660 = vcmp.gt.f32.partialorder %v2580, 0.0
      %vm2661 = vcmp.gt.f32.partialorder %v2581, 0.0
      %vm2662 = vcmp.gt.f32.partialorder %v2582, 0.0
      %vm2663 = vcmp.gt.f32.partialorder %v2583, 0.0
      %vm2664 = vcmp.gt.f32.partialorder %v2584, 0.0
      %vm2665 = vcmp.gt.f32.partialorder %v2585, 0.0
      %vm2666 = vcmp.gt.f32.partialorder %v2586, 0.0
      %vm2667 = vcmp.gt.f32.partialorder %v2587, 0.0
      %vm2668 = vcmp.gt.f32.partialorder %v2588, 0.0
      %vm2669 = vcmp.gt.f32.partialorder %v2589, 0.0
      %vm2670 = vcmp.gt.f32.partialorder %v2590, 0.0
      %v2671 = vsel %vm2591, %v2511, 1.0
      %v2672 = vsel %vm2592, %v2512, 1.0
      %v2673 = vsel %vm2593, %v2513, 1.0
      %v2674 = vsel %vm2594, %v2514, 1.0
      %v2675 = vsel %vm2595, %v2515, 1.0
      %v2676 = vsel %vm2596, %v2516, 1.0
      %v2677 = vsel %vm2597, %v2517, 1.0
      %v2678 = vsel %vm2598, %v2518, 1.0
      %v2679 = vsel %vm2599, %v2519, 1.0
      %v2680 = vsel %vm2600, %v2520, 1.0
      %v2681 = vsel %vm2601, %v2521, 1.0
      %v2682 = vsel %vm2602, %v2522, 1.0
      %v2683 = vsel %vm2603, %v2523, 1.0
      %v2684 = vsel %vm2604, %v2524, 1.0
      %v2685 = vsel %vm2605, %v2525, 1.0
      %v2686 = vsel %vm2606, %v2526, 1.0
      %v2687 = vsel %vm2607, %v2527, 1.0
      %v2688 = vsel %vm2608, %v2528, 1.0
      %v2689 = vsel %vm2609, %v2529, 1.0
      %v2690 = vsel %vm2610, %v2530, 1.0
      %v2691 = vsel %vm2611, %v2531, 1.0
      %v2692 = vsel %vm2612, %v2532, 1.0
      %v2693 = vsel %vm2613, %v2533, 1.0
      %v2694 = vsel %vm2614, %v2534, 1.0
      %v2695 = vsel %vm2615, %v2535, 1.0
      %v2696 = vsel %vm2616, %v2536, 1.0
      %v2697 = vsel %vm2617, %v2537, 1.0
      %v2698 = vsel %vm2618, %v2538, 1.0
      %v2699 = vsel %vm2619, %v2539, 1.0
      %v2700 = vsel %vm2620, %v2540, 1.0
      %v2701 = vsel %vm2621, %v2541, 1.0
      %v2702 = vsel %vm2622, %v2542, 1.0
      %v2703 = vsel %vm2623, %v2543, 1.0
      %v2704 = vsel %vm2624, %v2544, 1.0
      %v2705 = vsel %vm2625, %v2545, 1.0
      %v2706 = vsel %vm2626, %v2546, 1.0
      %v2707 = vsel %vm2627, %v2547, 1.0
      %v2708 = vsel %vm2628, %v2548, 1.0
      %v2709 = vsel %vm2629, %v2549, 1.0
      %v2710 = vsel %vm2630, %v2550, 1.0
      %v2711 = vsel %vm2631, %v2551, 1.0
      %v2712 = vsel %vm2632, %v2552, 1.0
      %v2713 = vsel %vm2633, %v2553, 1.0
      %v2714 = vsel %vm2634, %v2554, 1.0
      %v2715 = vsel %vm2635, %v2555, 1.0
      %v2716 = vsel %vm2636, %v2556, 1.0
      %v2717 = vsel %vm2637, %v2557, 1.0
      %v2718 = vsel %vm2638, %v2558, 1.0
      %v2719 = vsel %vm2639, %v2559, 1.0
      %v2720 = vsel %vm2640, %v2560, 1.0
      %v2721 = vsel %vm2641, %v2561, 1.0
      %v2722 = vsel %vm2642, %v2562, 1.0
      %v2723 = vsel %vm2643, %v2563, 1.0
      %v2724 = vsel %vm2644, %v2564, 1.0
      %v2725 = vsel %vm2645, %v2565, 1.0
      %v2726 = vsel %vm2646, %v2566, 1.0
      %v2727 = vsel %vm2647, %v2567, 1.0
      %v2728 = vsel %vm2648, %v2568, 1.0
      %v2729 = vsel %vm2649, %v2569, 1.0
      %v2730 = vsel %vm2650, %v2570, 1.0
      %v2731 = vsel %vm2651, %v2571, 1.0
      %v2732 = vsel %vm2652, %v2572, 1.0
      %v2733 = vsel %vm2653, %v2573, 1.0
      %v2734 = vsel %vm2654, %v2574, 1.0
      %v2735 = vsel %vm2655, %v2575, 1.0
      %v2736 = vsel %vm2656, %v2576, 1.0
      %v2737 = vsel %vm2657, %v2577, 1.0
      %v2738 = vsel %vm2658, %v2578, 1.0
      %v2739 = vsel %vm2659, %v2579, 1.0
      %v2740 = vsel %vm2660, %v2580, 1.0
      %v2741 = vsel %vm2661, %v2581, 1.0
      %v2742 = vsel %vm2662, %v2582, 1.0
      %v2743 = vsel %vm2663, %v2583, 1.0
      %v2744 = vsel %vm2664, %v2584, 1.0
      %v2745 = vsel %vm2665, %v2585, 1.0
      %v2746 = vsel %vm2666, %v2586, 1.0
      %v2747 = vsel %vm2667, %v2587, 1.0
      %v2748 = vsel %vm2668, %v2588, 1.0
      %v2749 = vsel %vm2669, %v2589, 1.0
      %v2750 = vsel %vm2670, %v2590, 1.0
      %v2751 = vlog2.pop %v2671
      %v2752 = vmul.f32 %v2751, 0.6931472
      %v2753 = vlog2.pop %v2672
      %v2754 = vmul.f32 %v2753, 0.6931472
      %v2755 = vlog2.pop %v2673
      %v2756 = vmul.f32 %v2755, 0.6931472
      %v2757 = vlog2.pop %v2674
      %v2758 = vmul.f32 %v2757, 0.6931472
      %v2759 = vlog2.pop %v2675
      %v2760 = vmul.f32 %v2759, 0.6931472
      %v2761 = vlog2.pop %v2676
      %v2762 = vmul.f32 %v2761, 0.6931472
      %v2763 = vlog2.pop %v2677
      %v2764 = vmul.f32 %v2763, 0.6931472
      %v2765 = vlog2.pop %v2678
      %v2766 = vmul.f32 %v2765, 0.6931472
      %v2767 = vlog2.pop %v2679
      %v2768 = vmul.f32 %v2767, 0.6931472
      %v2769 = vlog2.pop %v2680
      %v2770 = vmul.f32 %v2769, 0.6931472
      %v2771 = vlog2.pop %v2681
      %v2772 = vmul.f32 %v2771, 0.6931472
      %v2773 = vlog2.pop %v2682
      %v2774 = vmul.f32 %v2773, 0.6931472
      %v2775 = vlog2.pop %v2683
      %v2776 = vmul.f32 %v2775, 0.6931472
      %v2777 = vlog2.pop %v2684
      %v2778 = vmul.f32 %v2777, 0.6931472
      %v2779 = vlog2.pop %v2685
      %v2780 = vmul.f32 %v2779, 0.6931472
      %v2781 = vlog2.pop %v2686
      %v2782 = vmul.f32 %v2781, 0.6931472
      %v2783 = vlog2.pop %v2687
      %v2784 = vmul.f32 %v2783, 0.6931472
      %v2785 = vlog2.pop %v2688
      %v2786 = vmul.f32 %v2785, 0.6931472
      %v2787 = vlog2.pop %v2689
      %v2788 = vmul.f32 %v2787, 0.6931472
      %v2789 = vlog2.pop %v2690
      %v2790 = vmul.f32 %v2789, 0.6931472
      %v2791 = vlog2.pop %v2691
      %v2792 = vmul.f32 %v2791, 0.6931472
      %v2793 = vlog2.pop %v2692
      %v2794 = vmul.f32 %v2793, 0.6931472
      %v2795 = vlog2.pop %v2693
      %v2796 = vmul.f32 %v2795, 0.6931472
      %v2797 = vlog2.pop %v2694
      %v2798 = vmul.f32 %v2797, 0.6931472
      %v2799 = vlog2.pop %v2695
      %v2800 = vmul.f32 %v2799, 0.6931472
      %v2801 = vlog2.pop %v2696
      %v2802 = vmul.f32 %v2801, 0.6931472
      %v2803 = vlog2.pop %v2697
      %v2804 = vmul.f32 %v2803, 0.6931472
      %v2805 = vlog2.pop %v2698
      %v2806 = vmul.f32 %v2805, 0.6931472
      %v2807 = vlog2.pop %v2699
      %v2808 = vmul.f32 %v2807, 0.6931472
      %v2809 = vlog2.pop %v2700
      %v2810 = vmul.f32 %v2809, 0.6931472
      %v2811 = vlog2.pop %v2701
      %v2812 = vmul.f32 %v2811, 0.6931472
      %v2813 = vlog2.pop %v2702
      %v2814 = vmul.f32 %v2813, 0.6931472
      %v2815 = vlog2.pop %v2703
      %v2816 = vmul.f32 %v2815, 0.6931472
      %v2817 = vlog2.pop %v2704
      %v2818 = vmul.f32 %v2817, 0.6931472
      %v2819 = vlog2.pop %v2705
      %v2820 = vmul.f32 %v2819, 0.6931472
      %v2821 = vlog2.pop %v2706
      %v2822 = vmul.f32 %v2821, 0.6931472
      %v2823 = vlog2.pop %v2707
      %v2824 = vmul.f32 %v2823, 0.6931472
      %v2825 = vlog2.pop %v2708
      %v2826 = vmul.f32 %v2825, 0.6931472
      %v2827 = vlog2.pop %v2709
      %v2828 = vmul.f32 %v2827, 0.6931472
      %v2829 = vlog2.pop %v2710
      %v2830 = vmul.f32 %v2829, 0.6931472
      %v2831 = vlog2.pop %v2711
      %v2832 = vmul.f32 %v2831, 0.6931472
      %v2833 = vlog2.pop %v2712
      %v2834 = vmul.f32 %v2833, 0.6931472
      %v2835 = vlog2.pop %v2713
      %v2836 = vmul.f32 %v2835, 0.6931472
      %v2837 = vlog2.pop %v2714
      %v2838 = vmul.f32 %v2837, 0.6931472
      %v2839 = vlog2.pop %v2715
      %v2840 = vmul.f32 %v2839, 0.6931472
      %v2841 = vlog2.pop %v2716
      %v2842 = vmul.f32 %v2841, 0.6931472
      %v2843 = vlog2.pop %v2717
      %v2844 = vmul.f32 %v2843, 0.6931472
      %v2845 = vlog2.pop %v2718
      %v2846 = vmul.f32 %v2845, 0.6931472
      %v2847 = vlog2.pop %v2719
      %v2848 = vmul.f32 %v2847, 0.6931472
      %v2849 = vlog2.pop %v2720
      %v2850 = vmul.f32 %v2849, 0.6931472
      %v2851 = vlog2.pop %v2721
      %v2852 = vmul.f32 %v2851, 0.6931472
      %v2853 = vlog2.pop %v2722
      %v2854 = vmul.f32 %v2853, 0.6931472
      %v2855 = vlog2.pop %v2723
      %v2856 = vmul.f32 %v2855, 0.6931472
      %v2857 = vlog2.pop %v2724
      %v2858 = vmul.f32 %v2857, 0.6931472
      %v2859 = vlog2.pop %v2725
      %v2860 = vmul.f32 %v2859, 0.6931472
      %v2861 = vlog2.pop %v2726
      %v2862 = vmul.f32 %v2861, 0.6931472
      %v2863 = vlog2.pop %v2727
      %v2864 = vmul.f32 %v2863, 0.6931472
      %v2865 = vlog2.pop %v2728
      %v2866 = vmul.f32 %v2865, 0.6931472
      %v2867 = vlog2.pop %v2729
      %v2868 = vmul.f32 %v2867, 0.6931472
      %v2869 = vlog2.pop %v2730
      %v2870 = vmul.f32 %v2869, 0.6931472
      %v2871 = vlog2.pop %v2731
      %v2872 = vmul.f32 %v2871, 0.6931472
      %v2873 = vlog2.pop %v2732
      %v2874 = vmul.f32 %v2873, 0.6931472
      %v2875 = vlog2.pop %v2733
      %v2876 = vmul.f32 %v2875, 0.6931472
      %v2877 = vlog2.pop %v2734
      %v2878 = vmul.f32 %v2877, 0.6931472
      %v2879 = vlog2.pop %v2735
      %v2880 = vmul.f32 %v2879, 0.6931472
      %v2881 = vlog2.pop %v2736
      %v2882 = vmul.f32 %v2881, 0.6931472
      %v2883 = vlog2.pop %v2737
      %v2884 = vmul.f32 %v2883, 0.6931472
      %v2885 = vlog2.pop %v2738
      %v2886 = vmul.f32 %v2885, 0.6931472
      %v2887 = vlog2.pop %v2739
      %v2888 = vmul.f32 %v2887, 0.6931472
      %v2889 = vlog2.pop %v2740
      %v2890 = vmul.f32 %v2889, 0.6931472
      %v2891 = vlog2.pop %v2741
      %v2892 = vmul.f32 %v2891, 0.6931472
      %v2893 = vlog2.pop %v2742
      %v2894 = vmul.f32 %v2893, 0.6931472
      %v2895 = vlog2.pop %v2743
      %v2896 = vmul.f32 %v2895, 0.6931472
      %v2897 = vlog2.pop %v2744
      %v2898 = vmul.f32 %v2897, 0.6931472
      %v2899 = vlog2.pop %v2745
      %v2900 = vmul.f32 %v2899, 0.6931472
      %v2901 = vlog2.pop %v2746
      %v2902 = vmul.f32 %v2901, 0.6931472
      %v2903 = vlog2.pop %v2747
      %v2904 = vmul.f32 %v2903, 0.6931472
      %v2905 = vlog2.pop %v2748
      %v2906 = vmul.f32 %v2905, 0.6931472
      %v2907 = vlog2.pop %v2749
      %v2908 = vmul.f32 %v2907, 0.6931472
      %v2909 = vlog2.pop %v2750
      %v2910 = vmul.f32 %v2909, 0.6931472
      %v2911 = vmul.f32 %v2511, %v2752
      %v2912 = vmul.f32 %v2512, %v2754
      %v2913 = vmul.f32 %v2513, %v2756
      %v2914 = vmul.f32 %v2514, %v2758
      %v2915 = vmul.f32 %v2515, %v2760
      %v2916 = vmul.f32 %v2516, %v2762
      %v2917 = vmul.f32 %v2517, %v2764
      %v2918 = vmul.f32 %v2518, %v2766
      %v2919 = vmul.f32 %v2519, %v2768
      %v2920 = vmul.f32 %v2520, %v2770
      %v2921 = vmul.f32 %v2521, %v2772
      %v2922 = vmul.f32 %v2522, %v2774
      %v2923 = vmul.f32 %v2523, %v2776
      %v2924 = vmul.f32 %v2524, %v2778
      %v2925 = vmul.f32 %v2525, %v2780
      %v2926 = vmul.f32 %v2526, %v2782
      %v2927 = vmul.f32 %v2527, %v2784
      %v2928 = vmul.f32 %v2528, %v2786
      %v2929 = vmul.f32 %v2529, %v2788
      %v2930 = vmul.f32 %v2530, %v2790
      %v2931 = vmul.f32 %v2531, %v2792
      %v2932 = vmul.f32 %v2532, %v2794
      %v2933 = vmul.f32 %v2533, %v2796
      %v2934 = vmul.f32 %v2534, %v2798
      %v2935 = vmul.f32 %v2535, %v2800
      %v2936 = vmul.f32 %v2536, %v2802
      %v2937 = vmul.f32 %v2537, %v2804
      %v2938 = vmul.f32 %v2538, %v2806
      %v2939 = vmul.f32 %v2539, %v2808
      %v2940 = vmul.f32 %v2540, %v2810
      %v2941 = vmul.f32 %v2541, %v2812
      %v2942 = vmul.f32 %v2542, %v2814
      %v2943 = vmul.f32 %v2543, %v2816
      %v2944 = vmul.f32 %v2544, %v2818
      %v2945 = vmul.f32 %v2545, %v2820
      %v2946 = vmul.f32 %v2546, %v2822
      %v2947 = vmul.f32 %v2547, %v2824
      %v2948 = vmul.f32 %v2548, %v2826
      %v2949 = vmul.f32 %v2549, %v2828
      %v2950 = vmul.f32 %v2550, %v2830
      %v2951 = vmul.f32 %v2551, %v2832
      %v2952 = vmul.f32 %v2552, %v2834
      %v2953 = vmul.f32 %v2553, %v2836
      %v2954 = vmul.f32 %v2554, %v2838
      %v2955 = vmul.f32 %v2555, %v2840
      %v2956 = vmul.f32 %v2556, %v2842
      %v2957 = vmul.f32 %v2557, %v2844
      %v2958 = vmul.f32 %v2558, %v2846
      %v2959 = vmul.f32 %v2559, %v2848
      %v2960 = vmul.f32 %v2560, %v2850
      %v2961 = vmul.f32 %v2561, %v2852
      %v2962 = vmul.f32 %v2562, %v2854
      %v2963 = vmul.f32 %v2563, %v2856
      %v2964 = vmul.f32 %v2564, %v2858
      %v2965 = vmul.f32 %v2565, %v2860
      %v2966 = vmul.f32 %v2566, %v2862
      %v2967 = vmul.f32 %v2567, %v2864
      %v2968 = vmul.f32 %v2568, %v2866
      %v2969 = vmul.f32 %v2569, %v2868
      %v2970 = vmul.f32 %v2570, %v2870
      %v2971 = vmul.f32 %v2571, %v2872
      %v2972 = vmul.f32 %v2572, %v2874
      %v2973 = vmul.f32 %v2573, %v2876
      %v2974 = vmul.f32 %v2574, %v2878
      %v2975 = vmul.f32 %v2575, %v2880
      %v2976 = vmul.f32 %v2576, %v2882
      %v2977 = vmul.f32 %v2577, %v2884
      %v2978 = vmul.f32 %v2578, %v2886
      %v2979 = vmul.f32 %v2579, %v2888
      %v2980 = vmul.f32 %v2580, %v2890
      %v2981 = vmul.f32 %v2581, %v2892
      %v2982 = vmul.f32 %v2582, %v2894
      %v2983 = vmul.f32 %v2583, %v2896
      %v2984 = vmul.f32 %v2584, %v2898
      %v2985 = vmul.f32 %v2585, %v2900
      %v2986 = vmul.f32 %v2586, %v2902
      %v2987 = vmul.f32 %v2587, %v2904
      %v2988 = vmul.f32 %v2588, %v2906
      %v2989 = vmul.f32 %v2589, %v2908
      %v2990 = vmul.f32 %v2590, %v2910
      %v2991 = vsel %vm2591, %v2911, 0.0
      %v2992 = vsel %vm2592, %v2912, 0.0
      %v2993 = vsel %vm2593, %v2913, 0.0
      %v2994 = vsel %vm2594, %v2914, 0.0
      %v2995 = vsel %vm2595, %v2915, 0.0
      %v2996 = vsel %vm2596, %v2916, 0.0
      %v2997 = vsel %vm2597, %v2917, 0.0
      %v2998 = vsel %vm2598, %v2918, 0.0
      %v2999 = vsel %vm2599, %v2919, 0.0
      %v3000 = vsel %vm2600, %v2920, 0.0
      %v3001 = vsel %vm2601, %v2921, 0.0
      %v3002 = vsel %vm2602, %v2922, 0.0
      %v3003 = vsel %vm2603, %v2923, 0.0
      %v3004 = vsel %vm2604, %v2924, 0.0
      %v3005 = vsel %vm2605, %v2925, 0.0
      %v3006 = vsel %vm2606, %v2926, 0.0
      %v3007 = vsel %vm2607, %v2927, 0.0
      %v3008 = vsel %vm2608, %v2928, 0.0
      %v3009 = vsel %vm2609, %v2929, 0.0
      %v3010 = vsel %vm2610, %v2930, 0.0
      %v3011 = vsel %vm2611, %v2931, 0.0
      %v3012 = vsel %vm2612, %v2932, 0.0
      %v3013 = vsel %vm2613, %v2933, 0.0
      %v3014 = vsel %vm2614, %v2934, 0.0
      %v3015 = vsel %vm2615, %v2935, 0.0
      %v3016 = vsel %vm2616, %v2936, 0.0
      %v3017 = vsel %vm2617, %v2937, 0.0
      %v3018 = vsel %vm2618, %v2938, 0.0
      %v3019 = vsel %vm2619, %v2939, 0.0
      %v3020 = vsel %vm2620, %v2940, 0.0
      %v3021 = vsel %vm2621, %v2941, 0.0
      %v3022 = vsel %vm2622, %v2942, 0.0
      %v3023 = vsel %vm2623, %v2943, 0.0
      %v3024 = vsel %vm2624, %v2944, 0.0
      %v3025 = vsel %vm2625, %v2945, 0.0
      %v3026 = vsel %vm2626, %v2946, 0.0
      %v3027 = vsel %vm2627, %v2947, 0.0
      %v3028 = vsel %vm2628, %v2948, 0.0
      %v3029 = vsel %vm2629, %v2949, 0.0
      %v3030 = vsel %vm2630, %v2950, 0.0
      %v3031 = vsel %vm2631, %v2951, 0.0
      %v3032 = vsel %vm2632, %v2952, 0.0
      %v3033 = vsel %vm2633, %v2953, 0.0
      %v3034 = vsel %vm2634, %v2954, 0.0
      %v3035 = vsel %vm2635, %v2955, 0.0
      %v3036 = vsel %vm2636, %v2956, 0.0
      %v3037 = vsel %vm2637, %v2957, 0.0
      %v3038 = vsel %vm2638, %v2958, 0.0
      %v3039 = vsel %vm2639, %v2959, 0.0
      %v3040 = vsel %vm2640, %v2960, 0.0
      %v3041 = vsel %vm2641, %v2961, 0.0
      %v3042 = vsel %vm2642, %v2962, 0.0
      %v3043 = vsel %vm2643, %v2963, 0.0
      %v3044 = vsel %vm2644, %v2964, 0.0
      %v3045 = vsel %vm2645, %v2965, 0.0
      %v3046 = vsel %vm2646, %v2966, 0.0
      %v3047 = vsel %vm2647, %v2967, 0.0
      %v3048 = vsel %vm2648, %v2968, 0.0
      %v3049 = vsel %vm2649, %v2969, 0.0
      %v3050 = vsel %vm2650, %v2970, 0.0
      %v3051 = vsel %vm2651, %v2971, 0.0
      %v3052 = vsel %vm2652, %v2972, 0.0
      %v3053 = vsel %vm2653, %v2973, 0.0
      %v3054 = vsel %vm2654, %v2974, 0.0
      %v3055 = vsel %vm2655, %v2975, 0.0
      %v3056 = vsel %vm2656, %v2976, 0.0
      %v3057 = vsel %vm2657, %v2977, 0.0
      %v3058 = vsel %vm2658, %v2978, 0.0
      %v3059 = vsel %vm2659, %v2979, 0.0
      %v3060 = vsel %vm2660, %v2980, 0.0
      %v3061 = vsel %vm2661, %v2981, 0.0
      %v3062 = vsel %vm2662, %v2982, 0.0
      %v3063 = vsel %vm2663, %v2983, 0.0
      %v3064 = vsel %vm2664, %v2984, 0.0
      %v3065 = vsel %vm2665, %v2985, 0.0
      %v3066 = vsel %vm2666, %v2986, 0.0
      %v3067 = vsel %vm2667, %v2987, 0.0
      %v3068 = vsel %vm2668, %v2988, 0.0
      %v3069 = vsel %vm2669, %v2989, 0.0
      %v3070 = vsel %vm2670, %v2990, 0.0
      %v3071 = vmul.f32 %v2511, %v1181
      %v3072 = vmul.f32 %v2512, %v1182
      %v3073 = vmul.f32 %v2513, %v1183
      %v3074 = vmul.f32 %v2514, %v1184
      %v3075 = vmul.f32 %v2515, %v1185
      %v3076 = vmul.f32 %v2516, %v1186
      %v3077 = vmul.f32 %v2517, %v1187
      %v3078 = vmul.f32 %v2518, %v1188
      %v3079 = vmul.f32 %v2519, %v1189
      %v3080 = vmul.f32 %v2520, %v1190
      %v3081 = vmul.f32 %v2521, %v1191
      %v3082 = vmul.f32 %v2522, %v1192
      %v3083 = vmul.f32 %v2523, %v1193
      %v3084 = vmul.f32 %v2524, %v1194
      %v3085 = vmul.f32 %v2525, %v1195
      %v3086 = vmul.f32 %v2526, %v1196
      %v3087 = vmul.f32 %v2527, %v1197
      %v3088 = vmul.f32 %v2528, %v1198
      %v3089 = vmul.f32 %v2529, %v1199
      %v3090 = vmul.f32 %v2530, %v1200
      %v3091 = vmul.f32 %v2531, %v1201
      %v3092 = vmul.f32 %v2532, %v1202
      %v3093 = vmul.f32 %v2533, %v1203
      %v3094 = vmul.f32 %v2534, %v1204
      %v3095 = vmul.f32 %v2535, %v1205
      %v3096 = vmul.f32 %v2536, %v1206
      %v3097 = vmul.f32 %v2537, %v1207
      %v3098 = vmul.f32 %v2538, %v1208
      %v3099 = vmul.f32 %v2539, %v1209
      %v3100 = vmul.f32 %v2540, %v1210
      %v3101 = vmul.f32 %v2541, %v1211
      %v3102 = vmul.f32 %v2542, %v1212
      %v3103 = vmul.f32 %v2543, %v1213
      %v3104 = vmul.f32 %v2544, %v1214
      %v3105 = vmul.f32 %v2545, %v1215
      %v3106 = vmul.f32 %v2546, %v1216
      %v3107 = vmul.f32 %v2547, %v1217
      %v3108 = vmul.f32 %v2548, %v1218
      %v3109 = vmul.f32 %v2549, %v1219
      %v3110 = vmul.f32 %v2550, %v1220
      %v3111 = vmul.f32 %v2551, %v1221
      %v3112 = vmul.f32 %v2552, %v1222
      %v3113 = vmul.f32 %v2553, %v1223
      %v3114 = vmul.f32 %v2554, %v1224
      %v3115 = vmul.f32 %v2555, %v1225
      %v3116 = vmul.f32 %v2556, %v1226
      %v3117 = vmul.f32 %v2557, %v1227
      %v3118 = vmul.f32 %v2558, %v1228
      %v3119 = vmul.f32 %v2559, %v1229
      %v3120 = vmul.f32 %v2560, %v1230
      %v3121 = vmul.f32 %v2561, %v1231
      %v3122 = vmul.f32 %v2562, %v1232
      %v3123 = vmul.f32 %v2563, %v1233
      %v3124 = vmul.f32 %v2564, %v1234
      %v3125 = vmul.f32 %v2565, %v1235
      %v3126 = vmul.f32 %v2566, %v1236
      %v3127 = vmul.f32 %v2567, %v1237
      %v3128 = vmul.f32 %v2568, %v1238
      %v3129 = vmul.f32 %v2569, %v1239
      %v3130 = vmul.f32 %v2570, %v1240
      %v3131 = vmul.f32 %v2571, %v1241
      %v3132 = vmul.f32 %v2572, %v1242
      %v3133 = vmul.f32 %v2573, %v1243
      %v3134 = vmul.f32 %v2574, %v1244
      %v3135 = vmul.f32 %v2575, %v1245
      %v3136 = vmul.f32 %v2576, %v1246
      %v3137 = vmul.f32 %v2577, %v1247
      %v3138 = vmul.f32 %v2578, %v1248
      %v3139 = vmul.f32 %v2579, %v1249
      %v3140 = vmul.f32 %v2580, %v1250
      %v3141 = vmul.f32 %v2581, %v1251
      %v3142 = vmul.f32 %v2582, %v1252
      %v3143 = vmul.f32 %v2583, %v1253
      %v3144 = vmul.f32 %v2584, %v1254
      %v3145 = vmul.f32 %v2585, %v1255
      %v3146 = vmul.f32 %v2586, %v1256
      %v3147 = vmul.f32 %v2587, %v1257
      %v3148 = vmul.f32 %v2588, %v1258
      %v3149 = vmul.f32 %v2589, %v1259
      %v3150 = vmul.f32 %v2590, %v1260
      %v3151 = vsub.f32 %v2991, %v3071
      %v3152 = vsub.f32 %v2992, %v3072
      %v3153 = vsub.f32 %v2993, %v3073
      %v3154 = vsub.f32 %v2994, %v3074
      %v3155 = vsub.f32 %v2995, %v3075
      %v3156 = vsub.f32 %v2996, %v3076
      %v3157 = vsub.f32 %v2997, %v3077
      %v3158 = vsub.f32 %v2998, %v3078
      %v3159 = vsub.f32 %v2999, %v3079
      %v3160 = vsub.f32 %v3000, %v3080
      %v3161 = vsub.f32 %v3001, %v3081
      %v3162 = vsub.f32 %v3002, %v3082
      %v3163 = vsub.f32 %v3003, %v3083
      %v3164 = vsub.f32 %v3004, %v3084
      %v3165 = vsub.f32 %v3005, %v3085
      %v3166 = vsub.f32 %v3006, %v3086
      %v3167 = vsub.f32 %v3007, %v3087
      %v3168 = vsub.f32 %v3008, %v3088
      %v3169 = vsub.f32 %v3009, %v3089
      %v3170 = vsub.f32 %v3010, %v3090
      %v3171 = vsub.f32 %v3011, %v3091
      %v3172 = vsub.f32 %v3012, %v3092
      %v3173 = vsub.f32 %v3013, %v3093
      %v3174 = vsub.f32 %v3014, %v3094
      %v3175 = vsub.f32 %v3015, %v3095
      %v3176 = vsub.f32 %v3016, %v3096
      %v3177 = vsub.f32 %v3017, %v3097
      %v3178 = vsub.f32 %v3018, %v3098
      %v3179 = vsub.f32 %v3019, %v3099
      %v3180 = vsub.f32 %v3020, %v3100
      %v3181 = vsub.f32 %v3021, %v3101
      %v3182 = vsub.f32 %v3022, %v3102
      %v3183 = vsub.f32 %v3023, %v3103
      %v3184 = vsub.f32 %v3024, %v3104
      %v3185 = vsub.f32 %v3025, %v3105
      %v3186 = vsub.f32 %v3026, %v3106
      %v3187 = vsub.f32 %v3027, %v3107
      %v3188 = vsub.f32 %v3028, %v3108
      %v3189 = vsub.f32 %v3029, %v3109
      %v3190 = vsub.f32 %v3030, %v3110
      %v3191 = vsub.f32 %v3031, %v3111
      %v3192 = vsub.f32 %v3032, %v3112
      %v3193 = vsub.f32 %v3033, %v3113
      %v3194 = vsub.f32 %v3034, %v3114
      %v3195 = vsub.f32 %v3035, %v3115
      %v3196 = vsub.f32 %v3036, %v3116
      %v3197 = vsub.f32 %v3037, %v3117
      %v3198 = vsub.f32 %v3038, %v3118
      %v3199 = vsub.f32 %v3039, %v3119
      %v3200 = vsub.f32 %v3040, %v3120
      %v3201 = vsub.f32 %v3041, %v3121
      %v3202 = vsub.f32 %v3042, %v3122
      %v3203 = vsub.f32 %v3043, %v3123
      %v3204 = vsub.f32 %v3044, %v3124
      %v3205 = vsub.f32 %v3045, %v3125
      %v3206 = vsub.f32 %v3046, %v3126
      %v3207 = vsub.f32 %v3047, %v3127
      %v3208 = vsub.f32 %v3048, %v3128
      %v3209 = vsub.f32 %v3049, %v3129
      %v3210 = vsub.f32 %v3050, %v3130
      %v3211 = vsub.f32 %v3051, %v3131
      %v3212 = vsub.f32 %v3052, %v3132
      %v3213 = vsub.f32 %v3053, %v3133
      %v3214 = vsub.f32 %v3054, %v3134
      %v3215 = vsub.f32 %v3055, %v3135
      %v3216 = vsub.f32 %v3056, %v3136
      %v3217 = vsub.f32 %v3057, %v3137
      %v3218 = vsub.f32 %v3058, %v3138
      %v3219 = vsub.f32 %v3059, %v3139
      %v3220 = vsub.f32 %v3060, %v3140
      %v3221 = vsub.f32 %v3061, %v3141
      %v3222 = vsub.f32 %v3062, %v3142
      %v3223 = vsub.f32 %v3063, %v3143
      %v3224 = vsub.f32 %v3064, %v3144
      %v3225 = vsub.f32 %v3065, %v3145
      %v3226 = vsub.f32 %v3066, %v3146
      %v3227 = vsub.f32 %v3067, %v3147
      %v3228 = vsub.f32 %v3068, %v3148
      %v3229 = vsub.f32 %v3069, %v3149
      %v3230 = vsub.f32 %v3070, %v3150
      %v3231 = vadd.f32 %v3151, %v3152
      %v3232 = vadd.f32 %v3231, %v3153
      %v3233 = vadd.f32 %v3232, %v3154
      %v3234 = vadd.f32 %v3233, %v3155
      %v3235 = vadd.f32 %v3234, %v3156
      %v3236 = vadd.f32 %v3235, %v3157
      %v3237 = vadd.f32 %v3236, %v3158
      %v3238 = vadd.f32 %v3237, %v3159
      %v3239 = vsel %vm548, %v3160, 0.0
      %v3240 = vadd.f32 %v3238, %v3239
      %v3241 = vadd.f32 %v3240, %v3161
      %v3242 = vadd.f32 %v3241, %v3162
      %v3243 = vadd.f32 %v3242, %v3163
      %v3244 = vadd.f32 %v3243, %v3164
      %v3245 = vadd.f32 %v3244, %v3165
      %v3246 = vadd.f32 %v3245, %v3166
      %v3247 = vadd.f32 %v3246, %v3167
      %v3248 = vadd.f32 %v3247, %v3168
      %v3249 = vadd.f32 %v3248, %v3169
      %v3250 = vsel %vm548, %v3170, 0.0
      %v3251 = vadd.f32 %v3249, %v3250
      %v3252 = vadd.f32 %v3251, %v3171
      %v3253 = vadd.f32 %v3252, %v3172
      %v3254 = vadd.f32 %v3253, %v3173
      %v3255 = vadd.f32 %v3254, %v3174
      %v3256 = vadd.f32 %v3255, %v3175
      %v3257 = vadd.f32 %v3256, %v3176
      %v3258 = vadd.f32 %v3257, %v3177
      %v3259 = vadd.f32 %v3258, %v3178
      %v3260 = vadd.f32 %v3259, %v3179
      %v3261 = vsel %vm548, %v3180, 0.0
      %v3262 = vadd.f32 %v3260, %v3261
      %v3263 = vadd.f32 %v3262, %v3181
      %v3264 = vadd.f32 %v3263, %v3182
      %v3265 = vadd.f32 %v3264, %v3183
      %v3266 = vadd.f32 %v3265, %v3184
      %v3267 = vadd.f32 %v3266, %v3185
      %v3268 = vadd.f32 %v3267, %v3186
      %v3269 = vadd.f32 %v3268, %v3187
      %v3270 = vadd.f32 %v3269, %v3188
      %v3271 = vadd.f32 %v3270, %v3189
      %v3272 = vsel %vm548, %v3190, 0.0
      %v3273 = vadd.f32 %v3271, %v3272
      %v3274 = vadd.f32 %v3273, %v3191
      %v3275 = vadd.f32 %v3274, %v3192
      %v3276 = vadd.f32 %v3275, %v3193
      %v3277 = vadd.f32 %v3276, %v3194
      %v3278 = vadd.f32 %v3277, %v3195
      %v3279 = vadd.f32 %v3278, %v3196
      %v3280 = vadd.f32 %v3279, %v3197
      %v3281 = vadd.f32 %v3280, %v3198
      %v3282 = vadd.f32 %v3281, %v3199
      %v3283 = vsel %vm548, %v3200, 0.0
      %v3284 = vadd.f32 %v3282, %v3283
      %v3285 = vadd.f32 %v3284, %v3201
      %v3286 = vadd.f32 %v3285, %v3202
      %v3287 = vadd.f32 %v3286, %v3203
      %v3288 = vadd.f32 %v3287, %v3204
      %v3289 = vadd.f32 %v3288, %v3205
      %v3290 = vadd.f32 %v3289, %v3206
      %v3291 = vadd.f32 %v3290, %v3207
      %v3292 = vadd.f32 %v3291, %v3208
      %v3293 = vadd.f32 %v3292, %v3209
      %v3294 = vsel %vm548, %v3210, 0.0
      %v3295 = vadd.f32 %v3293, %v3294
      %v3296 = vadd.f32 %v3295, %v3211
      %v3297 = vadd.f32 %v3296, %v3212
      %v3298 = vadd.f32 %v3297, %v3213
      %v3299 = vadd.f32 %v3298, %v3214
      %v3300 = vadd.f32 %v3299, %v3215
      %v3301 = vadd.f32 %v3300, %v3216
      %v3302 = vadd.f32 %v3301, %v3217
      %v3303 = vadd.f32 %v3302, %v3218
      %v3304 = vadd.f32 %v3303, %v3219
      %v3305 = vsel %vm548, %v3220, 0.0
      %v3306 = vadd.f32 %v3304, %v3305
      %v3307 = vadd.f32 %v3306, %v3221
      %v3308 = vadd.f32 %v3307, %v3222
      %v3309 = vadd.f32 %v3308, %v3223
      %v3310 = vadd.f32 %v3309, %v3224
      %v3311 = vadd.f32 %v3310, %v3225
      %v3312 = vadd.f32 %v3311, %v3226
      %v3313 = vadd.f32 %v3312, %v3227
      %v3314 = vadd.f32 %v3313, %v3228
      %v3315 = vadd.f32 %v3314, %v3229
      %v3316 = vsel %vm548, %v3230, 0.0
      %v3317 = vadd.f32 %v3315, %v3316
      %3318 = vadd.xlane.f32.xlu0 %v3317
      %v3319 = vpop.xlane.xlu0 %3318
      %v3320 = vrot.slane %v3319, 4
      %v3321 = vadd.f32 %v3319, %v3320
      %v3322 = vrot.slane %v3321, 2
      %v3323 = vadd.f32 %v3321, %v3322
      %v3324 = vrot.slane %v3323, 1
      %v3325 = vadd.f32 %v3323, %v3324
      %s3326 = vtos %v3325
      %v3327 = vld [vmem:[%s6] sm:$0xff]
      %v3328 = vld [vmem:[%s6 + $0x8] sm:$0xff]
      %v3329 = vld [vmem:[%s6 + $0x10] sm:$0xff]
      %v3330 = vld [vmem:[%s6 + $0x18] sm:$0xff]
      %v3331 = vld [vmem:[%s6 + $0x20] sm:$0xff]
      %v3332 = vld [vmem:[%s6 + $0x28] sm:$0xff]
      %v3333 = vld [vmem:[%s6 + $0x30] sm:$0xff]
      %v3334 = vld [vmem:[%s6 + $0x38] sm:$0xff]
      %v3335 = vld [vmem:[%s6 + $0x40] sm:$0xff]
      %v3336 = vld [vmem:[%s6 + $0x48] sm:$0xff]
      %v3337 = vld [vmem:[%s6 + $0x50] sm:$0xff]
      %v3338 = vld [vmem:[%s6 + $0x58] sm:$0xff]
      %v3339 = vld [vmem:[%s6 + $0x60] sm:$0xff]
      %v3340 = vld [vmem:[%s6 + $0x68] sm:$0xff]
      %v3341 = vld [vmem:[%s6 + $0x70] sm:$0xff]
      %v3342 = vld [vmem:[%s6 + $0x78] sm:$0xff]
      %v3343 = vld [vmem:[%s6 + $0x80] sm:$0xff]
      %v3344 = vld [vmem:[%s6 + $0x88] sm:$0xff]
      %v3345 = vld [vmem:[%s6 + $0x90] sm:$0xff]
      %v3346 = vld [vmem:[%s6 + $0x98] sm:$0xff]
      %v3347 = vld [vmem:[%s6 + $0xa0] sm:$0xff]
      %v3348 = vld [vmem:[%s6 + $0xa8] sm:$0xff]
      %v3349 = vld [vmem:[%s6 + $0xb0] sm:$0xff]
      %v3350 = vld [vmem:[%s6 + $0xb8] sm:$0xff]
      %v3351 = vld [vmem:[%s6 + $0xc0] sm:$0xff]
      %v3352 = vld [vmem:[%s6 + $0xc8] sm:$0xff]
      %v3353 = vld [vmem:[%s6 + $0xd0] sm:$0xff]
      %v3354 = vld [vmem:[%s6 + $0xd8] sm:$0xff]
      %v3355 = vld [vmem:[%s6 + $0xe0] sm:$0xff]
      %v3356 = vld [vmem:[%s6 + $0xe8] sm:$0xff]
      %v3357 = vld [vmem:[%s6 + $0xf0] sm:$0xff]
      %v3358 = vld [vmem:[%s6 + $0xf8] sm:$0xff]
      %v3359 = vld [vmem:[%s6 + $0x100] sm:$0xff]
      %v3360 = vld [vmem:[%s6 + $0x108] sm:$0xff]
      %v3361 = vld [vmem:[%s6 + $0x110] sm:$0xff]
      %v3362 = vld [vmem:[%s6 + $0x118] sm:$0xff]
      %v3363 = vld [vmem:[%s6 + $0x120] sm:$0xff]
      %v3364 = vld [vmem:[%s6 + $0x128] sm:$0xff]
      %v3365 = vld [vmem:[%s6 + $0x130] sm:$0xff]
      %v3366 = vld [vmem:[%s6 + $0x138] sm:$0xff]
      %v3367 = vld [vmem:[%s6 + $0x140] sm:$0xff]
      %v3368 = vld [vmem:[%s6 + $0x148] sm:$0xff]
      %v3369 = vld [vmem:[%s6 + $0x150] sm:$0xff]
      %v3370 = vld [vmem:[%s6 + $0x158] sm:$0xff]
      %v3371 = vld [vmem:[%s6 + $0x160] sm:$0xff]
      %v3372 = vld [vmem:[%s6 + $0x168] sm:$0xff]
      %v3373 = vld [vmem:[%s6 + $0x170] sm:$0xff]
      %v3374 = vld [vmem:[%s6 + $0x178] sm:$0xff]
      %v3375 = vld [vmem:[%s6 + $0x180] sm:$0xff]
      %v3376 = vld [vmem:[%s6 + $0x188] sm:$0xff]
      %v3377 = vld [vmem:[%s6 + $0x190] sm:$0xff]
      %v3378 = vld [vmem:[%s6 + $0x198] sm:$0xff]
      %v3379 = vld [vmem:[%s6 + $0x1a0] sm:$0xff]
      %v3380 = vld [vmem:[%s6 + $0x1a8] sm:$0xff]
      %v3381 = vld [vmem:[%s6 + $0x1b0] sm:$0xff]
      %v3382 = vld [vmem:[%s6 + $0x1b8] sm:$0xff]
      %v3383 = vld [vmem:[%s6 + $0x1c0] sm:$0xff]
      %v3384 = vld [vmem:[%s6 + $0x1c8] sm:$0xff]
      %v3385 = vld [vmem:[%s6 + $0x1d0] sm:$0xff]
      %v3386 = vld [vmem:[%s6 + $0x1d8] sm:$0xff]
      %v3387 = vld [vmem:[%s6 + $0x1e0] sm:$0xff]
      %v3388 = vld [vmem:[%s6 + $0x1e8] sm:$0xff]
      %v3389 = vld [vmem:[%s6 + $0x1f0] sm:$0xff]
      %v3390 = vld [vmem:[%s6 + $0x1f8] sm:$0xff]
      %v3391 = vld [vmem:[%s6 + $0x200] sm:$0xff]
      %v3392 = vld [vmem:[%s6 + $0x208] sm:$0xff]
      %v3393 = vld [vmem:[%s6 + $0x210] sm:$0xff]
      %v3394 = vld [vmem:[%s6 + $0x218] sm:$0xff]
      %v3395 = vld [vmem:[%s6 + $0x220] sm:$0xff]
      %v3396 = vld [vmem:[%s6 + $0x228] sm:$0xff]
      %v3397 = vld [vmem:[%s6 + $0x230] sm:$0xff]
      %v3398 = vld [vmem:[%s6 + $0x238] sm:$0xff]
      %v3399 = vld [vmem:[%s6 + $0x240] sm:$0xff]
      %v3400 = vld [vmem:[%s6 + $0x248] sm:$0xff]
      %v3401 = vld [vmem:[%s6 + $0x250] sm:$0xff]
      %v3402 = vld [vmem:[%s6 + $0x258] sm:$0xff]
      %v3403 = vld [vmem:[%s6 + $0x260] sm:$0xff]
      %v3404 = vld [vmem:[%s6 + $0x268] sm:$0xff]
      %v3405 = vld [vmem:[%s6 + $0x270] sm:$0xff]
      %v3406 = vld [vmem:[%s6 + $0x278] sm:$0xff]
      %v3407 = vld [vmem:[%s6 + $0x280] sm:$0xff]
      %v3408 = vld [vmem:[%s6 + $0x288] sm:$0xff]
      %v3409 = vld [vmem:[%s6 + $0x290] sm:$0xff]
      %v3410 = vld [vmem:[%s6 + $0x298] sm:$0xff]
      %v3411 = vld [vmem:[%s6 + $0x2a0] sm:$0xff]
      %v3412 = vld [vmem:[%s6 + $0x2a8] sm:$0xff]
      %v3413 = vld [vmem:[%s6 + $0x2b0] sm:$0xff]
      %v3414 = vld [vmem:[%s6 + $0x2b8] sm:$0xff]
      %v3415 = vld [vmem:[%s6 + $0x2c0] sm:$0xff]
      %v3416 = vld [vmem:[%s6 + $0x2c8] sm:$0xff]
      %v3417 = vld [vmem:[%s6 + $0x2d0] sm:$0xff]
      %v3418 = vld [vmem:[%s6 + $0x2d8] sm:$0xff]
      %v3419 = vld [vmem:[%s6 + $0x2e0] sm:$0xff]
      %v3420 = vld [vmem:[%s6 + $0x2e8] sm:$0xff]
      %v3421 = vld [vmem:[%s6 + $0x2f0] sm:$0xff]
      %v3422 = vld [vmem:[%s6 + $0x2f8] sm:$0xff]
      %v3423 = vld [vmem:[%s6 + $0x300] sm:$0xff]
      %v3424 = vld [vmem:[%s6 + $0x308] sm:$0xff]
      %v3425 = vld [vmem:[%s6 + $0x310] sm:$0xff]
      %v3426 = vld [vmem:[%s6 + $0x318] sm:$0xff]
      %v3427 = vld [vmem:[%s6 + $0x320] sm:$0xff]
      %v3428 = vld [vmem:[%s6 + $0x328] sm:$0xff]
      %v3429 = vld [vmem:[%s6 + $0x330] sm:$0xff]
      %v3430 = vld [vmem:[%s6 + $0x338] sm:$0xff]
      %v3431 = vld [vmem:[%s6 + $0x340] sm:$0xff]
      %v3432 = vld [vmem:[%s6 + $0x348] sm:$0xff]
      %v3433 = vld [vmem:[%s6 + $0x350] sm:$0xff]
      %v3434 = vld [vmem:[%s6 + $0x358] sm:$0xff]
      %v3435 = vld [vmem:[%s6 + $0x360] sm:$0xff]
      %v3436 = vld [vmem:[%s6 + $0x368] sm:$0xff]
      %v3437 = vld [vmem:[%s6 + $0x370] sm:$0xff]
      %v3438 = vld [vmem:[%s6 + $0x378] sm:$0xff]
      %v3439 = vld [vmem:[%s6 + $0x380] sm:$0xff]
      %v3440 = vld [vmem:[%s6 + $0x388] sm:$0xff]
      %v3441 = vld [vmem:[%s6 + $0x390] sm:$0xff]
      %v3442 = vld [vmem:[%s6 + $0x398] sm:$0xff]
      %v3443 = vld [vmem:[%s6 + $0x3a0] sm:$0xff]
      %v3444 = vld [vmem:[%s6 + $0x3a8] sm:$0xff]
      %v3445 = vld [vmem:[%s6 + $0x3b0] sm:$0xff]
      %v3446 = vld [vmem:[%s6 + $0x3b8] sm:$0xff]
      %v3447 = vld [vmem:[%s6 + $0x3c0] sm:$0xff]
      %v3448 = vld [vmem:[%s6 + $0x3c8] sm:$0xff]
      %v3449 = vld [vmem:[%s6 + $0x3d0] sm:$0xff]
      %v3450 = vld [vmem:[%s6 + $0x3d8] sm:$0xff]
      %v3451 = vld [vmem:[%s6 + $0x3e0] sm:$0xff]
      %v3452 = vld [vmem:[%s6 + $0x3e8] sm:$0xff]
      %v3453 = vld [vmem:[%s6 + $0x3f0] sm:$0xff]
      %v3454 = vld [vmem:[%s6 + $0x3f8] sm:$0xff]
      %v3455 = vld [vmem:[%s6 + $0x400] sm:$0xff]
      %v3456 = vld [vmem:[%s6 + $0x408] sm:$0xff]
      %v3457 = vld [vmem:[%s6 + $0x410] sm:$0xff]
      %v3458 = vld [vmem:[%s6 + $0x418] sm:$0xff]
      %v3459 = vld [vmem:[%s6 + $0x420] sm:$0xff]
      %v3460 = vld [vmem:[%s6 + $0x428] sm:$0xff]
      %v3461 = vld [vmem:[%s6 + $0x430] sm:$0xff]
      %v3462 = vld [vmem:[%s6 + $0x438] sm:$0xff]
      %v3463 = vld [vmem:[%s6 + $0x440] sm:$0xff]
      %v3464 = vld [vmem:[%s6 + $0x448] sm:$0xff]
      %v3465 = vld [vmem:[%s6 + $0x450] sm:$0xff]
      %v3466 = vld [vmem:[%s6 + $0x458] sm:$0xff]
      %v3467 = vld [vmem:[%s6 + $0x460] sm:$0xff]
      %v3468 = vld [vmem:[%s6 + $0x468] sm:$0xff]
      %v3469 = vld [vmem:[%s6 + $0x470] sm:$0xff]
      %v3470 = vld [vmem:[%s6 + $0x478] sm:$0xff]
      %v3471 = vld [vmem:[%s6 + $0x480] sm:$0xff]
      %v3472 = vld [vmem:[%s6 + $0x488] sm:$0xff]
      %v3473 = vld [vmem:[%s6 + $0x490] sm:$0xff]
      %v3474 = vld [vmem:[%s6 + $0x498] sm:$0xff]
      %v3475 = vld [vmem:[%s6 + $0x4a0] sm:$0xff]
      %v3476 = vld [vmem:[%s6 + $0x4a8] sm:$0xff]
      %v3477 = vld [vmem:[%s6 + $0x4b0] sm:$0xff]
      %v3478 = vld [vmem:[%s6 + $0x4b8] sm:$0xff]
      %v3479 = vld [vmem:[%s6 + $0x4c0] sm:$0xf]
      %v3480 = vld [vmem:[%s449] sm:$0xff]
      %v3481 = vld [vmem:[%s449 + $0x8] sm:$0xff]
      %v3482 = vld [vmem:[%s449 + $0x10] sm:$0xff]
      %v3483 = vld [vmem:[%s449 + $0x18] sm:$0xff]
      %v3484 = vld [vmem:[%s449 + $0x20] sm:$0xff]
      %v3485 = vld [vmem:[%s449 + $0x28] sm:$0xff]
      %v3486 = vld [vmem:[%s449 + $0x30] sm:$0xff]
      %v3487 = vld [vmem:[%s449 + $0x38] sm:$0xff]
      %v3488 = vld [vmem:[%s449 + $0x40] sm:$0xff]
      %v3489 = vld [vmem:[%s449 + $0x48] sm:$0xff]
      %v3490 = vld [vmem:[%s449 + $0x50] sm:$0xff]
      %v3491 = vld [vmem:[%s449 + $0x58] sm:$0xff]
      %v3492 = vld [vmem:[%s449 + $0x60] sm:$0xff]
      %v3493 = vld [vmem:[%s449 + $0x68] sm:$0xff]
      %v3494 = vld [vmem:[%s449 + $0x70] sm:$0xff]
      %v3495 = vld [vmem:[%s449 + $0x78] sm:$0xff]
      %v3496 = vld [vmem:[%s449 + $0x80] sm:$0xff]
      %v3497 = vld [vmem:[%s449 + $0x88] sm:$0xff]
      %v3498 = vld [vmem:[%s449 + $0x90] sm:$0xff]
      %v3499 = vld [vmem:[%s449 + $0x98] sm:$0xff]
      %v3500 = vld [vmem:[%s449 + $0xa0] sm:$0xff]
      %v3501 = vld [vmem:[%s449 + $0xa8] sm:$0xff]
      %v3502 = vld [vmem:[%s449 + $0xb0] sm:$0xff]
      %v3503 = vld [vmem:[%s449 + $0xb8] sm:$0xff]
      %v3504 = vld [vmem:[%s449 + $0xc0] sm:$0xff]
      %v3505 = vld [vmem:[%s449 + $0xc8] sm:$0xff]
      %v3506 = vld [vmem:[%s449 + $0xd0] sm:$0xff]
      %v3507 = vld [vmem:[%s449 + $0xd8] sm:$0xff]
      %v3508 = vld [vmem:[%s449 + $0xe0] sm:$0xff]
      %v3509 = vld [vmem:[%s449 + $0xe8] sm:$0xff]
      %v3510 = vld [vmem:[%s449 + $0xf0] sm:$0xff]
      %v3511 = vld [vmem:[%s449 + $0xf8] sm:$0xff]
      %v3512 = vld [vmem:[%s449 + $0x100] sm:$0xff]
      %v3513 = vld [vmem:[%s449 + $0x108] sm:$0xff]
      %v3514 = vld [vmem:[%s449 + $0x110] sm:$0xff]
      %v3515 = vld [vmem:[%s449 + $0x118] sm:$0xff]
      %v3516 = vld [vmem:[%s449 + $0x120] sm:$0xff]
      %v3517 = vld [vmem:[%s449 + $0x128] sm:$0xff]
      %v3518 = vld [vmem:[%s449 + $0x130] sm:$0xff]
      %v3519 = vld [vmem:[%s449 + $0x138] sm:$0xff]
      %v3520 = vld [vmem:[%s449 + $0x140] sm:$0xff]
      %v3521 = vld [vmem:[%s449 + $0x148] sm:$0xff]
      %v3522 = vld [vmem:[%s449 + $0x150] sm:$0xff]
      %v3523 = vld [vmem:[%s449 + $0x158] sm:$0xff]
      %v3524 = vld [vmem:[%s449 + $0x160] sm:$0xff]
      %v3525 = vld [vmem:[%s449 + $0x168] sm:$0xff]
      %v3526 = vld [vmem:[%s449 + $0x170] sm:$0xff]
      %v3527 = vld [vmem:[%s449 + $0x178] sm:$0xff]
      %v3528 = vld [vmem:[%s449 + $0x180] sm:$0xff]
      %v3529 = vld [vmem:[%s449 + $0x188] sm:$0xff]
      %v3530 = vld [vmem:[%s449 + $0x190] sm:$0xff]
      %v3531 = vld [vmem:[%s449 + $0x198] sm:$0xff]
      %v3532 = vld [vmem:[%s449 + $0x1a0] sm:$0xff]
      %v3533 = vld [vmem:[%s449 + $0x1a8] sm:$0xff]
      %v3534 = vld [vmem:[%s449 + $0x1b0] sm:$0xff]
      %v3535 = vld [vmem:[%s449 + $0x1b8] sm:$0xff]
      %v3536 = vld [vmem:[%s449 + $0x1c0] sm:$0xff]
      %v3537 = vld [vmem:[%s449 + $0x1c8] sm:$0xff]
      %v3538 = vld [vmem:[%s449 + $0x1d0] sm:$0xff]
      %v3539 = vld [vmem:[%s449 + $0x1d8] sm:$0xff]
      %v3540 = vld [vmem:[%s449 + $0x1e0] sm:$0xff]
      %v3541 = vld [vmem:[%s449 + $0x1e8] sm:$0xff]
      %v3542 = vld [vmem:[%s449 + $0x1f0] sm:$0xff]
      %v3543 = vld [vmem:[%s449 + $0x1f8] sm:$0xff]
      %v3544 = vld [vmem:[%s449 + $0x200] sm:$0xff]
      %v3545 = vld [vmem:[%s449 + $0x208] sm:$0xff]
      %v3546 = vld [vmem:[%s449 + $0x210] sm:$0xff]
      %v3547 = vld [vmem:[%s449 + $0x218] sm:$0xff]
      %v3548 = vld [vmem:[%s449 + $0x220] sm:$0xff]
      %v3549 = vld [vmem:[%s449 + $0x228] sm:$0xff]
      %v3550 = vld [vmem:[%s449 + $0x230] sm:$0xff]
      %v3551 = vld [vmem:[%s449 + $0x238] sm:$0xff]
      %v3552 = vld [vmem:[%s449 + $0x240] sm:$0xff]
      %v3553 = vld [vmem:[%s449 + $0x248] sm:$0xff]
      %v3554 = vld [vmem:[%s449 + $0x250] sm:$0xff]
      %v3555 = vld [vmem:[%s449 + $0x258] sm:$0xff]
      %v3556 = vld [vmem:[%s449 + $0x260] sm:$0xff]
      %v3557 = vld [vmem:[%s449 + $0x268] sm:$0xff]
      %v3558 = vld [vmem:[%s449 + $0x270] sm:$0xff]
      %v3559 = vld [vmem:[%s449 + $0x278] sm:$0xff]
      %v3560 = vld [vmem:[%s449 + $0x280] sm:$0xff]
      %v3561 = vld [vmem:[%s449 + $0x288] sm:$0xff]
      %v3562 = vld [vmem:[%s449 + $0x290] sm:$0xff]
      %v3563 = vld [vmem:[%s449 + $0x298] sm:$0xff]
      %v3564 = vld [vmem:[%s449 + $0x2a0] sm:$0xff]
      %v3565 = vld [vmem:[%s449 + $0x2a8] sm:$0xff]
      %v3566 = vld [vmem:[%s449 + $0x2b0] sm:$0xff]
      %v3567 = vld [vmem:[%s449 + $0x2b8] sm:$0xff]
      %v3568 = vld [vmem:[%s449 + $0x2c0] sm:$0xff]
      %v3569 = vld [vmem:[%s449 + $0x2c8] sm:$0xff]
      %v3570 = vld [vmem:[%s449 + $0x2d0] sm:$0xff]
      %v3571 = vld [vmem:[%s449 + $0x2d8] sm:$0xff]
      %v3572 = vld [vmem:[%s449 + $0x2e0] sm:$0xff]
      %v3573 = vld [vmem:[%s449 + $0x2e8] sm:$0xff]
      %v3574 = vld [vmem:[%s449 + $0x2f0] sm:$0xff]
      %v3575 = vld [vmem:[%s449 + $0x2f8] sm:$0xff]
      %v3576 = vld [vmem:[%s449 + $0x300] sm:$0xff]
      %v3577 = vld [vmem:[%s449 + $0x308] sm:$0xff]
      %v3578 = vld [vmem:[%s449 + $0x310] sm:$0xff]
      %v3579 = vld [vmem:[%s449 + $0x318] sm:$0xff]
      %v3580 = vld [vmem:[%s449 + $0x320] sm:$0xff]
      %v3581 = vld [vmem:[%s449 + $0x328] sm:$0xff]
      %v3582 = vld [vmem:[%s449 + $0x330] sm:$0xff]
      %v3583 = vld [vmem:[%s449 + $0x338] sm:$0xff]
      %v3584 = vld [vmem:[%s449 + $0x340] sm:$0xff]
      %v3585 = vld [vmem:[%s449 + $0x348] sm:$0xff]
      %v3586 = vld [vmem:[%s449 + $0x350] sm:$0xff]
      %v3587 = vld [vmem:[%s449 + $0x358] sm:$0xff]
      %v3588 = vld [vmem:[%s449 + $0x360] sm:$0xff]
      %v3589 = vld [vmem:[%s449 + $0x368] sm:$0xff]
      %v3590 = vld [vmem:[%s449 + $0x370] sm:$0xff]
      %v3591 = vld [vmem:[%s449 + $0x378] sm:$0xff]
      %v3592 = vld [vmem:[%s449 + $0x380] sm:$0xff]
      %v3593 = vld [vmem:[%s449 + $0x388] sm:$0xff]
      %v3594 = vld [vmem:[%s449 + $0x390] sm:$0xff]
      %v3595 = vld [vmem:[%s449 + $0x398] sm:$0xff]
      %v3596 = vld [vmem:[%s449 + $0x3a0] sm:$0xff]
      %v3597 = vld [vmem:[%s449 + $0x3a8] sm:$0xff]
      %v3598 = vld [vmem:[%s449 + $0x3b0] sm:$0xff]
      %v3599 = vld [vmem:[%s449 + $0x3b8] sm:$0xff]
      %v3600 = vld [vmem:[%s449 + $0x3c0] sm:$0xff]
      %v3601 = vld [vmem:[%s449 + $0x3c8] sm:$0xff]
      %v3602 = vld [vmem:[%s449 + $0x3d0] sm:$0xff]
      %v3603 = vld [vmem:[%s449 + $0x3d8] sm:$0xff]
      %v3604 = vld [vmem:[%s449 + $0x3e0] sm:$0xff]
      %v3605 = vld [vmem:[%s449 + $0x3e8] sm:$0xff]
      %v3606 = vld [vmem:[%s449 + $0x3f0] sm:$0xff]
      %v3607 = vld [vmem:[%s449 + $0x3f8] sm:$0xff]
      %v3608 = vld [vmem:[%s449 + $0x400] sm:$0xff]
      %v3609 = vld [vmem:[%s449 + $0x408] sm:$0xff]
      %v3610 = vld [vmem:[%s449 + $0x410] sm:$0xff]
      %v3611 = vld [vmem:[%s449 + $0x418] sm:$0xff]
      %v3612 = vld [vmem:[%s449 + $0x420] sm:$0xff]
      %v3613 = vld [vmem:[%s449 + $0x428] sm:$0xff]
      %v3614 = vld [vmem:[%s449 + $0x430] sm:$0xff]
      %v3615 = vld [vmem:[%s449 + $0x438] sm:$0xff]
      %v3616 = vld [vmem:[%s449 + $0x440] sm:$0xff]
      %v3617 = vld [vmem:[%s449 + $0x448] sm:$0xff]
      %v3618 = vld [vmem:[%s449 + $0x450] sm:$0xff]
      %v3619 = vld [vmem:[%s449 + $0x458] sm:$0xff]
      %v3620 = vld [vmem:[%s449 + $0x460] sm:$0xff]
      %v3621 = vld [vmem:[%s449 + $0x468] sm:$0xff]
      %v3622 = vld [vmem:[%s449 + $0x470] sm:$0xff]
      %v3623 = vld [vmem:[%s449 + $0x478] sm:$0xff]
      %v3624 = vld [vmem:[%s449 + $0x480] sm:$0xff]
      %v3625 = vld [vmem:[%s449 + $0x488] sm:$0xff]
      %v3626 = vld [vmem:[%s449 + $0x490] sm:$0xff]
      %v3627 = vld [vmem:[%s449 + $0x498] sm:$0xff]
      %v3628 = vld [vmem:[%s449 + $0x4a0] sm:$0xff]
      %v3629 = vld [vmem:[%s449 + $0x4a8] sm:$0xff]
      %v3630 = vld [vmem:[%s449 + $0x4b0] sm:$0xff]
      %v3631 = vld [vmem:[%s449 + $0x4b8] sm:$0xff]
      %v3632 = vld [vmem:[%s449 + $0x4c0] sm:$0xf]
      %v3633 = vsub.f32 %v1567, %v3480
      %v3634 = vsub.f32 %v1568, %v3481
      %v3635 = vsub.f32 %v1569, %v3482
      %v3636 = vsub.f32 %v1570, %v3483
      %v3637 = vsub.f32 %v1571, %v3484
      %v3638 = vsub.f32 %v1572, %v3485
      %v3639 = vsub.f32 %v1573, %v3486
      %v3640 = vsub.f32 %v1574, %v3487
      %v3641 = vsub.f32 %v1575, %v3488
      %v3642 = vsub.f32 %v1576, %v3489
      %v3643 = vsub.f32 %v1577, %v3490
      %v3644 = vsub.f32 %v1578, %v3491
      %v3645 = vsub.f32 %v1579, %v3492
      %v3646 = vsub.f32 %v1580, %v3493
      %v3647 = vsub.f32 %v1581, %v3494
      %v3648 = vsub.f32 %v1582, %v3495
      %v3649 = vsub.f32 %v1583, %v3496
      %v3650 = vsub.f32 %v1584, %v3497
      %v3651 = vsub.f32 %v1585, %v3498
      %v3652 = vsub.f32 %v1586, %v3499
      %v3653 = vsub.f32 %v1587, %v3500
      %v3654 = vsub.f32 %v1588, %v3501
      %v3655 = vsub.f32 %v1589, %v3502
      %v3656 = vsub.f32 %v1590, %v3503
      %v3657 = vsub.f32 %v1591, %v3504
      %v3658 = vsub.f32 %v1592, %v3505
      %v3659 = vsub.f32 %v1593, %v3506
      %v3660 = vsub.f32 %v1594, %v3507
      %v3661 = vsub.f32 %v1595, %v3508
      %v3662 = vsub.f32 %v1596, %v3509
      %v3663 = vsub.f32 %v1597, %v3510
      %v3664 = vsub.f32 %v1598, %v3511
      %v3665 = vsub.f32 %v1599, %v3512
      %v3666 = vsub.f32 %v1600, %v3513
      %v3667 = vsub.f32 %v1601, %v3514
      %v3668 = vsub.f32 %v1602, %v3515
      %v3669 = vsub.f32 %v1603, %v3516
      %v3670 = vsub.f32 %v1604, %v3517
      %v3671 = vsub.f32 %v1605, %v3518
      %v3672 = vsub.f32 %v1606, %v3519
      %v3673 = vsub.f32 %v1607, %v3520
      %v3674 = vsub.f32 %v1608, %v3521
      %v3675 = vsub.f32 %v1609, %v3522
      %v3676 = vsub.f32 %v1610, %v3523
      %v3677 = vsub.f32 %v1611, %v3524
      %v3678 = vsub.f32 %v1612, %v3525
      %v3679 = vsub.f32 %v1613, %v3526
      %v3680 = vsub.f32 %v1614, %v3527
      %v3681 = vsub.f32 %v1615, %v3528
      %v3682 = vsub.f32 %v1616, %v3529
      %v3683 = vsub.f32 %v1617, %v3530
      %v3684 = vsub.f32 %v1618, %v3531
      %v3685 = vsub.f32 %v1619, %v3532
      %v3686 = vsub.f32 %v1620, %v3533
      %v3687 = vsub.f32 %v1621, %v3534
      %v3688 = vsub.f32 %v1622, %v3535
      %v3689 = vsub.f32 %v1623, %v3536
      %v3690 = vsub.f32 %v1624, %v3537
      %v3691 = vsub.f32 %v1625, %v3538
      %v3692 = vsub.f32 %v1626, %v3539
      %v3693 = vsub.f32 %v1627, %v3540
      %v3694 = vsub.f32 %v1628, %v3541
      %v3695 = vsub.f32 %v1629, %v3542
      %v3696 = vsub.f32 %v1630, %v3543
      %v3697 = vsub.f32 %v1631, %v3544
      %v3698 = vsub.f32 %v1632, %v3545
      %v3699 = vsub.f32 %v1633, %v3546
      %v3700 = vsub.f32 %v1634, %v3547
      %v3701 = vsub.f32 %v1635, %v3548
      %v3702 = vsub.f32 %v1636, %v3549
      %v3703 = vsub.f32 %v1637, %v3550
      %v3704 = vsub.f32 %v1638, %v3551
      %v3705 = vsub.f32 %v1639, %v3552
      %v3706 = vsub.f32 %v1640, %v3553
      %v3707 = vsub.f32 %v1641, %v3554
      %v3708 = vsub.f32 %v1642, %v3555
      %v3709 = vsub.f32 %v1643, %v3556
      %v3710 = vsub.f32 %v1644, %v3557
      %v3711 = vsub.f32 %v1645, %v3558
      %v3712 = vsub.f32 %v1646, %v3559
      %v3713 = vsub.f32 %v1647, %v3560
      %v3714 = vsub.f32 %v1648, %v3561
      %v3715 = vsub.f32 %v1649, %v3562
      %v3716 = vsub.f32 %v1650, %v3563
      %v3717 = vsub.f32 %v1651, %v3564
      %v3718 = vsub.f32 %v1652, %v3565
      %v3719 = vsub.f32 %v1653, %v3566
      %v3720 = vsub.f32 %v1654, %v3567
      %v3721 = vsub.f32 %v1655, %v3568
      %v3722 = vsub.f32 %v1656, %v3569
      %v3723 = vsub.f32 %v1657, %v3570
      %v3724 = vsub.f32 %v1658, %v3571
      %v3725 = vsub.f32 %v1659, %v3572
      %v3726 = vsub.f32 %v1660, %v3573
      %v3727 = vsub.f32 %v1661, %v3574
      %v3728 = vsub.f32 %v1662, %v3575
      %v3729 = vsub.f32 %v1663, %v3576
      %v3730 = vsub.f32 %v1664, %v3577
      %v3731 = vsub.f32 %v1665, %v3578
      %v3732 = vsub.f32 %v1666, %v3579
      %v3733 = vsub.f32 %v1667, %v3580
      %v3734 = vsub.f32 %v1668, %v3581
      %v3735 = vsub.f32 %v1669, %v3582
      %v3736 = vsub.f32 %v1670, %v3583
      %v3737 = vsub.f32 %v1671, %v3584
      %v3738 = vsub.f32 %v1672, %v3585
      %v3739 = vsub.f32 %v1673, %v3586
      %v3740 = vsub.f32 %v1674, %v3587
      %v3741 = vsub.f32 %v1675, %v3588
      %v3742 = vsub.f32 %v1676, %v3589
      %v3743 = vsub.f32 %v1677, %v3590
      %v3744 = vsub.f32 %v1678, %v3591
      %v3745 = vsub.f32 %v1679, %v3592
      %v3746 = vsub.f32 %v1680, %v3593
      %v3747 = vsub.f32 %v1681, %v3594
      %v3748 = vsub.f32 %v1682, %v3595
      %v3749 = vsub.f32 %v1683, %v3596
      %v3750 = vsub.f32 %v1684, %v3597
      %v3751 = vsub.f32 %v1685, %v3598
      %v3752 = vsub.f32 %v1686, %v3599
      %v3753 = vsub.f32 %v1687, %v3600
      %v3754 = vsub.f32 %v1688, %v3601
      %v3755 = vsub.f32 %v1689, %v3602
      %v3756 = vsub.f32 %v1690, %v3603
      %v3757 = vsub.f32 %v1691, %v3604
      %v3758 = vsub.f32 %v1692, %v3605
      %v3759 = vsub.f32 %v1693, %v3606
      %v3760 = vsub.f32 %v1694, %v3607
      %v3761 = vsub.f32 %v1695, %v3608
      %v3762 = vsub.f32 %v1696, %v3609
      %v3763 = vsub.f32 %v1697, %v3610
      %v3764 = vsub.f32 %v1698, %v3611
      %v3765 = vsub.f32 %v1699, %v3612
      %v3766 = vsub.f32 %v1700, %v3613
      %v3767 = vsub.f32 %v1701, %v3614
      %v3768 = vsub.f32 %v1702, %v3615
      %v3769 = vsub.f32 %v1703, %v3616
      %v3770 = vsub.f32 %v1704, %v3617
      %v3771 = vsub.f32 %v1705, %v3618
      %v3772 = vsub.f32 %v1706, %v3619
      %v3773 = vsub.f32 %v1707, %v3620
      %v3774 = vsub.f32 %v1708, %v3621
      %v3775 = vsub.f32 %v1709, %v3622
      %v3776 = vsub.f32 %v1710, %v3623
      %v3777 = vsub.f32 %v1711, %v3624
      %v3778 = vsub.f32 %v1712, %v3625
      %v3779 = vsub.f32 %v1713, %v3626
      %v3780 = vsub.f32 %v1714, %v3627
      %v3781 = vsub.f32 %v1715, %v3628
      %v3782 = vsub.f32 %v1716, %v3629
      %v3783 = vsub.f32 %v1717, %v3630
      %v3784 = vsub.f32 %v1718, %v3631
      %v3785 = vsub.f32 %v1719, %v3632
      %v3786 = vand.u32 2147483647, %v3633
      %v3787 = vand.u32 2147483647, %v3634
      %v3788 = vand.u32 2147483647, %v3635
      %v3789 = vand.u32 2147483647, %v3636
      %v3790 = vand.u32 2147483647, %v3637
      %v3791 = vand.u32 2147483647, %v3638
      %v3792 = vand.u32 2147483647, %v3639
      %v3793 = vand.u32 2147483647, %v3640
      %v3794 = vand.u32 2147483647, %v3641
      %v3795 = vand.u32 2147483647, %v3642
      %v3796 = vand.u32 2147483647, %v3643
      %v3797 = vand.u32 2147483647, %v3644
      %v3798 = vand.u32 2147483647, %v3645
      %v3799 = vand.u32 2147483647, %v3646
      %v3800 = vand.u32 2147483647, %v3647
      %v3801 = vand.u32 2147483647, %v3648
      %v3802 = vand.u32 2147483647, %v3649
      %v3803 = vand.u32 2147483647, %v3650
      %v3804 = vand.u32 2147483647, %v3651
      %v3805 = vand.u32 2147483647, %v3652
      %v3806 = vand.u32 2147483647, %v3653
      %v3807 = vand.u32 2147483647, %v3654
      %v3808 = vand.u32 2147483647, %v3655
      %v3809 = vand.u32 2147483647, %v3656
      %v3810 = vand.u32 2147483647, %v3657
      %v3811 = vand.u32 2147483647, %v3658
      %v3812 = vand.u32 2147483647, %v3659
      %v3813 = vand.u32 2147483647, %v3660
      %v3814 = vand.u32 2147483647, %v3661
      %v3815 = vand.u32 2147483647, %v3662
      %v3816 = vand.u32 2147483647, %v3663
      %v3817 = vand.u32 2147483647, %v3664
      %v3818 = vand.u32 2147483647, %v3665
      %v3819 = vand.u32 2147483647, %v3666
      %v3820 = vand.u32 2147483647, %v3667
      %v3821 = vand.u32 2147483647, %v3668
      %v3822 = vand.u32 2147483647, %v3669
      %v3823 = vand.u32 2147483647, %v3670
      %v3824 = vand.u32 2147483647, %v3671
      %v3825 = vand.u32 2147483647, %v3672
      %v3826 = vand.u32 2147483647, %v3673
      %v3827 = vand.u32 2147483647, %v3674
      %v3828 = vand.u32 2147483647, %v3675
      %v3829 = vand.u32 2147483647, %v3676
      %v3830 = vand.u32 2147483647, %v3677
      %v3831 = vand.u32 2147483647, %v3678
      %v3832 = vand.u32 2147483647, %v3679
      %v3833 = vand.u32 2147483647, %v3680
      %v3834 = vand.u32 2147483647, %v3681
      %v3835 = vand.u32 2147483647, %v3682
      %v3836 = vand.u32 2147483647, %v3683
      %v3837 = vand.u32 2147483647, %v3684
      %v3838 = vand.u32 2147483647, %v3685
      %v3839 = vand.u32 2147483647, %v3686
      %v3840 = vand.u32 2147483647, %v3687
      %v3841 = vand.u32 2147483647, %v3688
      %v3842 = vand.u32 2147483647, %v3689
      %v3843 = vand.u32 2147483647, %v3690
      %v3844 = vand.u32 2147483647, %v3691
      %v3845 = vand.u32 2147483647, %v3692
      %v3846 = vand.u32 2147483647, %v3693
      %v3847 = vand.u32 2147483647, %v3694
      %v3848 = vand.u32 2147483647, %v3695
      %v3849 = vand.u32 2147483647, %v3696
      %v3850 = vand.u32 2147483647, %v3697
      %v3851 = vand.u32 2147483647, %v3698
      %v3852 = vand.u32 2147483647, %v3699
      %v3853 = vand.u32 2147483647, %v3700
      %v3854 = vand.u32 2147483647, %v3701
      %v3855 = vand.u32 2147483647, %v3702
      %v3856 = vand.u32 2147483647, %v3703
      %v3857 = vand.u32 2147483647, %v3704
      %v3858 = vand.u32 2147483647, %v3705
      %v3859 = vand.u32 2147483647, %v3706
      %v3860 = vand.u32 2147483647, %v3707
      %v3861 = vand.u32 2147483647, %v3708
      %v3862 = vand.u32 2147483647, %v3709
      %v3863 = vand.u32 2147483647, %v3710
      %v3864 = vand.u32 2147483647, %v3711
      %v3865 = vand.u32 2147483647, %v3712
      %v3866 = vand.u32 2147483647, %v3713
      %v3867 = vand.u32 2147483647, %v3714
      %v3868 = vand.u32 2147483647, %v3715
      %v3869 = vand.u32 2147483647, %v3716
      %v3870 = vand.u32 2147483647, %v3717
      %v3871 = vand.u32 2147483647, %v3718
      %v3872 = vand.u32 2147483647, %v3719
      %v3873 = vand.u32 2147483647, %v3720
      %v3874 = vand.u32 2147483647, %v3721
      %v3875 = vand.u32 2147483647, %v3722
      %v3876 = vand.u32 2147483647, %v3723
      %v3877 = vand.u32 2147483647, %v3724
      %v3878 = vand.u32 2147483647, %v3725
      %v3879 = vand.u32 2147483647, %v3726
      %v3880 = vand.u32 2147483647, %v3727
      %v3881 = vand.u32 2147483647, %v3728
      %v3882 = vand.u32 2147483647, %v3729
      %v3883 = vand.u32 2147483647, %v3730
      %v3884 = vand.u32 2147483647, %v3731
      %v3885 = vand.u32 2147483647, %v3732
      %v3886 = vand.u32 2147483647, %v3733
      %v3887 = vand.u32 2147483647, %v3734
      %v3888 = vand.u32 2147483647, %v3735
      %v3889 = vand.u32 2147483647, %v3736
      %v3890 = vand.u32 2147483647, %v3737
      %v3891 = vand.u32 2147483647, %v3738
      %v3892 = vand.u32 2147483647, %v3739
      %v3893 = vand.u32 2147483647, %v3740
      %v3894 = vand.u32 2147483647, %v3741
      %v3895 = vand.u32 2147483647, %v3742
      %v3896 = vand.u32 2147483647, %v3743
      %v3897 = vand.u32 2147483647, %v3744
      %v3898 = vand.u32 2147483647, %v3745
      %v3899 = vand.u32 2147483647, %v3746
      %v3900 = vand.u32 2147483647, %v3747
      %v3901 = vand.u32 2147483647, %v3748
      %v3902 = vand.u32 2147483647, %v3749
      %v3903 = vand.u32 2147483647, %v3750
      %v3904 = vand.u32 2147483647, %v3751
      %v3905 = vand.u32 2147483647, %v3752
      %v3906 = vand.u32 2147483647, %v3753
      %v3907 = vand.u32 2147483647, %v3754
      %v3908 = vand.u32 2147483647, %v3755
      %v3909 = vand.u32 2147483647, %v3756
      %v3910 = vand.u32 2147483647, %v3757
      %v3911 = vand.u32 2147483647, %v3758
      %v3912 = vand.u32 2147483647, %v3759
      %v3913 = vand.u32 2147483647, %v3760
      %v3914 = vand.u32 2147483647, %v3761
      %v3915 = vand.u32 2147483647, %v3762
      %v3916 = vand.u32 2147483647, %v3763
      %v3917 = vand.u32 2147483647, %v3764
      %v3918 = vand.u32 2147483647, %v3765
      %v3919 = vand.u32 2147483647, %v3766
      %v3920 = vand.u32 2147483647, %v3767
      %v3921 = vand.u32 2147483647, %v3768
      %v3922 = vand.u32 2147483647, %v3769
      %v3923 = vand.u32 2147483647, %v3770
      %v3924 = vand.u32 2147483647, %v3771
      %v3925 = vand.u32 2147483647, %v3772
      %v3926 = vand.u32 2147483647, %v3773
      %v3927 = vand.u32 2147483647, %v3774
      %v3928 = vand.u32 2147483647, %v3775
      %v3929 = vand.u32 2147483647, %v3776
      %v3930 = vand.u32 2147483647, %v3777
      %v3931 = vand.u32 2147483647, %v3778
      %v3932 = vand.u32 2147483647, %v3779
      %v3933 = vand.u32 2147483647, %v3780
      %v3934 = vand.u32 2147483647, %v3781
      %v3935 = vand.u32 2147483647, %v3782
      %v3936 = vand.u32 2147483647, %v3783
      %v3937 = vand.u32 2147483647, %v3784
      %v3938 = vand.u32 2147483647, %v3785
      %v3939 = vmul.f32 %v3327, %v3786
      %v3940 = vmul.f32 %v3328, %v3787
      %v3941 = vmul.f32 %v3329, %v3788
      %v3942 = vmul.f32 %v3330, %v3789
      %v3943 = vmul.f32 %v3331, %v3790
      %v3944 = vmul.f32 %v3332, %v3791
      %v3945 = vmul.f32 %v3333, %v3792
      %v3946 = vmul.f32 %v3334, %v3793
      %v3947 = vmul.f32 %v3335, %v3794
      %v3948 = vmul.f32 %v3336, %v3795
      %v3949 = vmul.f32 %v3337, %v3796
      %v3950 = vmul.f32 %v3338, %v3797
      %v3951 = vmul.f32 %v3339, %v3798
      %v3952 = vmul.f32 %v3340, %v3799
      %v3953 = vmul.f32 %v3341, %v3800
      %v3954 = vmul.f32 %v3342, %v3801
      %v3955 = vmul.f32 %v3343, %v3802
      %v3956 = vmul.f32 %v3344, %v3803
      %v3957 = vmul.f32 %v3345, %v3804
      %v3958 = vmul.f32 %v3346, %v3805
      %v3959 = vmul.f32 %v3347, %v3806
      %v3960 = vmul.f32 %v3348, %v3807
      %v3961 = vmul.f32 %v3349, %v3808
      %v3962 = vmul.f32 %v3350, %v3809
      %v3963 = vmul.f32 %v3351, %v3810
      %v3964 = vmul.f32 %v3352, %v3811
      %v3965 = vmul.f32 %v3353, %v3812
      %v3966 = vmul.f32 %v3354, %v3813
      %v3967 = vmul.f32 %v3355, %v3814
      %v3968 = vmul.f32 %v3356, %v3815
      %v3969 = vmul.f32 %v3357, %v3816
      %v3970 = vmul.f32 %v3358, %v3817
      %v3971 = vmul.f32 %v3359, %v3818
      %v3972 = vmul.f32 %v3360, %v3819
      %v3973 = vmul.f32 %v3361, %v3820
      %v3974 = vmul.f32 %v3362, %v3821
      %v3975 = vmul.f32 %v3363, %v3822
      %v3976 = vmul.f32 %v3364, %v3823
      %v3977 = vmul.f32 %v3365, %v3824
      %v3978 = vmul.f32 %v3366, %v3825
      %v3979 = vmul.f32 %v3367, %v3826
      %v3980 = vmul.f32 %v3368, %v3827
      %v3981 = vmul.f32 %v3369, %v3828
      %v3982 = vmul.f32 %v3370, %v3829
      %v3983 = vmul.f32 %v3371, %v3830
      %v3984 = vmul.f32 %v3372, %v3831
      %v3985 = vmul.f32 %v3373, %v3832
      %v3986 = vmul.f32 %v3374, %v3833
      %v3987 = vmul.f32 %v3375, %v3834
      %v3988 = vmul.f32 %v3376, %v3835
      %v3989 = vmul.f32 %v3377, %v3836
      %v3990 = vmul.f32 %v3378, %v3837
      %v3991 = vmul.f32 %v3379, %v3838
      %v3992 = vmul.f32 %v3380, %v3839
      %v3993 = vmul.f32 %v3381, %v3840
      %v3994 = vmul.f32 %v3382, %v3841
      %v3995 = vmul.f32 %v3383, %v3842
      %v3996 = vmul.f32 %v3384, %v3843
      %v3997 = vmul.f32 %v3385, %v3844
      %v3998 = vmul.f32 %v3386, %v3845
      %v3999 = vmul.f32 %v3387, %v3846
      %v4000 = vmul.f32 %v3388, %v3847
      %v4001 = vmul.f32 %v3389, %v3848
      %v4002 = vmul.f32 %v3390, %v3849
      %v4003 = vmul.f32 %v3391, %v3850
      %v4004 = vmul.f32 %v3392, %v3851
      %v4005 = vmul.f32 %v3393, %v3852
      %v4006 = vmul.f32 %v3394, %v3853
      %v4007 = vmul.f32 %v3395, %v3854
      %v4008 = vmul.f32 %v3396, %v3855
      %v4009 = vmul.f32 %v3397, %v3856
      %v4010 = vmul.f32 %v3398, %v3857
      %v4011 = vmul.f32 %v3399, %v3858
      %v4012 = vmul.f32 %v3400, %v3859
      %v4013 = vmul.f32 %v3401, %v3860
      %v4014 = vmul.f32 %v3402, %v3861
      %v4015 = vmul.f32 %v3403, %v3862
      %v4016 = vmul.f32 %v3404, %v3863
      %v4017 = vmul.f32 %v3405, %v3864
      %v4018 = vmul.f32 %v3406, %v3865
      %v4019 = vmul.f32 %v3407, %v3866
      %v4020 = vmul.f32 %v3408, %v3867
      %v4021 = vmul.f32 %v3409, %v3868
      %v4022 = vmul.f32 %v3410, %v3869
      %v4023 = vmul.f32 %v3411, %v3870
      %v4024 = vmul.f32 %v3412, %v3871
      %v4025 = vmul.f32 %v3413, %v3872
      %v4026 = vmul.f32 %v3414, %v3873
      %v4027 = vmul.f32 %v3415, %v3874
      %v4028 = vmul.f32 %v3416, %v3875
      %v4029 = vmul.f32 %v3417, %v3876
      %v4030 = vmul.f32 %v3418, %v3877
      %v4031 = vmul.f32 %v3419, %v3878
      %v4032 = vmul.f32 %v3420, %v3879
      %v4033 = vmul.f32 %v3421, %v3880
      %v4034 = vmul.f32 %v3422, %v3881
      %v4035 = vmul.f32 %v3423, %v3882
      %v4036 = vmul.f32 %v3424, %v3883
      %v4037 = vmul.f32 %v3425, %v3884
      %v4038 = vmul.f32 %v3426, %v3885
      %v4039 = vmul.f32 %v3427, %v3886
      %v4040 = vmul.f32 %v3428, %v3887
      %v4041 = vmul.f32 %v3429, %v3888
      %v4042 = vmul.f32 %v3430, %v3889
      %v4043 = vmul.f32 %v3431, %v3890
      %v4044 = vmul.f32 %v3432, %v3891
      %v4045 = vmul.f32 %v3433, %v3892
      %v4046 = vmul.f32 %v3434, %v3893
      %v4047 = vmul.f32 %v3435, %v3894
      %v4048 = vmul.f32 %v3436, %v3895
      %v4049 = vmul.f32 %v3437, %v3896
      %v4050 = vmul.f32 %v3438, %v3897
      %v4051 = vmul.f32 %v3439, %v3898
      %v4052 = vmul.f32 %v3440, %v3899
      %v4053 = vmul.f32 %v3441, %v3900
      %v4054 = vmul.f32 %v3442, %v3901
      %v4055 = vmul.f32 %v3443, %v3902
      %v4056 = vmul.f32 %v3444, %v3903
      %v4057 = vmul.f32 %v3445, %v3904
      %v4058 = vmul.f32 %v3446, %v3905
      %v4059 = vmul.f32 %v3447, %v3906
      %v4060 = vmul.f32 %v3448, %v3907
      %v4061 = vmul.f32 %v3449, %v3908
      %v4062 = vmul.f32 %v3450, %v3909
      %v4063 = vmul.f32 %v3451, %v3910
      %v4064 = vmul.f32 %v3452, %v3911
      %v4065 = vmul.f32 %v3453, %v3912
      %v4066 = vmul.f32 %v3454, %v3913
      %v4067 = vmul.f32 %v3455, %v3914
      %v4068 = vmul.f32 %v3456, %v3915
      %v4069 = vmul.f32 %v3457, %v3916
      %v4070 = vmul.f32 %v3458, %v3917
      %v4071 = vmul.f32 %v3459, %v3918
      %v4072 = vmul.f32 %v3460, %v3919
      %v4073 = vmul.f32 %v3461, %v3920
      %v4074 = vmul.f32 %v3462, %v3921
      %v4075 = vmul.f32 %v3463, %v3922
      %v4076 = vmul.f32 %v3464, %v3923
      %v4077 = vmul.f32 %v3465, %v3924
      %v4078 = vmul.f32 %v3466, %v3925
      %v4079 = vmul.f32 %v3467, %v3926
      %v4080 = vmul.f32 %v3468, %v3927
      %v4081 = vmul.f32 %v3469, %v3928
      %v4082 = vmul.f32 %v3470, %v3929
      %v4083 = vmul.f32 %v3471, %v3930
      %v4084 = vmul.f32 %v3472, %v3931
      %v4085 = vmul.f32 %v3473, %v3932
      %v4086 = vmul.f32 %v3474, %v3933
      %v4087 = vmul.f32 %v3475, %v3934
      %v4088 = vmul.f32 %v3476, %v3935
      %v4089 = vmul.f32 %v3477, %v3936
      %v4090 = vmul.f32 %v3478, %v3937
      %v4091 = vmul.f32 %v3479, %v3938
      %v4092 = vsel %vm2230, %v3939, 0.0
      %v4093 = vsel %vm2230, %v3940, 0.0
      %v4094 = vadd.f32 %v4092, %v4093
      %v4095 = vsel %vm2230, %v3941, 0.0
      %v4096 = vadd.f32 %v4094, %v4095
      %v4097 = vsel %vm2230, %v3942, 0.0
      %v4098 = vadd.f32 %v4096, %v4097
      %v4099 = vsel %vm2230, %v3943, 0.0
      %v4100 = vadd.f32 %v4098, %v4099
      %v4101 = vsel %vm2230, %v3944, 0.0
      %v4102 = vadd.f32 %v4100, %v4101
      %v4103 = vsel %vm2230, %v3945, 0.0
      %v4104 = vadd.f32 %v4102, %v4103
      %v4105 = vsel %vm2230, %v3946, 0.0
      %v4106 = vadd.f32 %v4104, %v4105
      %v4107 = vsel %vm2230, %v3947, 0.0
      %v4108 = vadd.f32 %v4106, %v4107
      %v4109 = vsel %vm2230, %v3948, 0.0
      %v4110 = vadd.f32 %v4108, %v4109
      %v4111 = vsel %vm2230, %v3949, 0.0
      %v4112 = vadd.f32 %v4110, %v4111
      %v4113 = vsel %vm2230, %v3950, 0.0
      %v4114 = vadd.f32 %v4112, %v4113
      %v4115 = vsel %vm2230, %v3951, 0.0
      %v4116 = vadd.f32 %v4114, %v4115
      %v4117 = vsel %vm2230, %v3952, 0.0
      %v4118 = vadd.f32 %v4116, %v4117
      %v4119 = vsel %vm2230, %v3953, 0.0
      %v4120 = vadd.f32 %v4118, %v4119
      %v4121 = vsel %vm2230, %v3954, 0.0
      %v4122 = vadd.f32 %v4120, %v4121
      %v4123 = vsel %vm2230, %v3955, 0.0
      %v4124 = vadd.f32 %v4122, %v4123
      %v4125 = vsel %vm2230, %v3956, 0.0
      %v4126 = vadd.f32 %v4124, %v4125
      %v4127 = vsel %vm2230, %v3957, 0.0
      %v4128 = vadd.f32 %v4126, %v4127
      %v4129 = vsel %vm2230, %v3958, 0.0
      %v4130 = vadd.f32 %v4128, %v4129
      %v4131 = vsel %vm2230, %v3959, 0.0
      %v4132 = vadd.f32 %v4130, %v4131
      %v4133 = vsel %vm2230, %v3960, 0.0
      %v4134 = vadd.f32 %v4132, %v4133
      %v4135 = vsel %vm2230, %v3961, 0.0
      %v4136 = vadd.f32 %v4134, %v4135
      %v4137 = vsel %vm2230, %v3962, 0.0
      %v4138 = vadd.f32 %v4136, %v4137
      %v4139 = vsel %vm2230, %v3963, 0.0
      %v4140 = vadd.f32 %v4138, %v4139
      %v4141 = vsel %vm2230, %v3964, 0.0
      %v4142 = vadd.f32 %v4140, %v4141
      %v4143 = vsel %vm2230, %v3965, 0.0
      %v4144 = vadd.f32 %v4142, %v4143
      %v4145 = vsel %vm2230, %v3966, 0.0
      %v4146 = vadd.f32 %v4144, %v4145
      %v4147 = vsel %vm2230, %v3967, 0.0
      %v4148 = vadd.f32 %v4146, %v4147
      %v4149 = vsel %vm2230, %v3968, 0.0
      %v4150 = vadd.f32 %v4148, %v4149
      %v4151 = vsel %vm2230, %v3969, 0.0
      %v4152 = vadd.f32 %v4150, %v4151
      %v4153 = vsel %vm2230, %v3970, 0.0
      %v4154 = vadd.f32 %v4152, %v4153
      %v4155 = vsel %vm2230, %v3971, 0.0
      %v4156 = vadd.f32 %v4154, %v4155
      %v4157 = vsel %vm2230, %v3972, 0.0
      %v4158 = vadd.f32 %v4156, %v4157
      %v4159 = vsel %vm2230, %v3973, 0.0
      %v4160 = vadd.f32 %v4158, %v4159
      %v4161 = vsel %vm2230, %v3974, 0.0
      %v4162 = vadd.f32 %v4160, %v4161
      %v4163 = vsel %vm2230, %v3975, 0.0
      %v4164 = vadd.f32 %v4162, %v4163
      %v4165 = vsel %vm2230, %v3976, 0.0
      %v4166 = vadd.f32 %v4164, %v4165
      %v4167 = vsel %vm2230, %v3977, 0.0
      %v4168 = vadd.f32 %v4166, %v4167
      %v4169 = vsel %vm2230, %v3978, 0.0
      %v4170 = vadd.f32 %v4168, %v4169
      %v4171 = vsel %vm2230, %v3979, 0.0
      %v4172 = vadd.f32 %v4170, %v4171
      %v4173 = vsel %vm2230, %v3980, 0.0
      %v4174 = vadd.f32 %v4172, %v4173
      %v4175 = vsel %vm2230, %v3981, 0.0
      %v4176 = vadd.f32 %v4174, %v4175
      %v4177 = vsel %vm2230, %v3982, 0.0
      %v4178 = vadd.f32 %v4176, %v4177
      %v4179 = vsel %vm2230, %v3983, 0.0
      %v4180 = vadd.f32 %v4178, %v4179
      %v4181 = vsel %vm2230, %v3984, 0.0
      %v4182 = vadd.f32 %v4180, %v4181
      %v4183 = vsel %vm2230, %v3985, 0.0
      %v4184 = vadd.f32 %v4182, %v4183
      %v4185 = vsel %vm2230, %v3986, 0.0
      %v4186 = vadd.f32 %v4184, %v4185
      %v4187 = vsel %vm2230, %v3987, 0.0
      %v4188 = vadd.f32 %v4186, %v4187
      %v4189 = vsel %vm2230, %v3988, 0.0
      %v4190 = vadd.f32 %v4188, %v4189
      %v4191 = vsel %vm2230, %v3989, 0.0
      %v4192 = vadd.f32 %v4190, %v4191
      %v4193 = vsel %vm2230, %v3990, 0.0
      %v4194 = vadd.f32 %v4192, %v4193
      %v4195 = vsel %vm2230, %v3991, 0.0
      %v4196 = vadd.f32 %v4194, %v4195
      %v4197 = vsel %vm2230, %v3992, 0.0
      %v4198 = vadd.f32 %v4196, %v4197
      %v4199 = vsel %vm2230, %v3993, 0.0
      %v4200 = vadd.f32 %v4198, %v4199
      %v4201 = vsel %vm2230, %v3994, 0.0
      %v4202 = vadd.f32 %v4200, %v4201
      %v4203 = vsel %vm2230, %v3995, 0.0
      %v4204 = vadd.f32 %v4202, %v4203
      %v4205 = vsel %vm2230, %v3996, 0.0
      %v4206 = vadd.f32 %v4204, %v4205
      %v4207 = vsel %vm2230, %v3997, 0.0
      %v4208 = vadd.f32 %v4206, %v4207
      %v4209 = vsel %vm2230, %v3998, 0.0
      %v4210 = vadd.f32 %v4208, %v4209
      %v4211 = vsel %vm2230, %v3999, 0.0
      %v4212 = vadd.f32 %v4210, %v4211
      %v4213 = vsel %vm2230, %v4000, 0.0
      %v4214 = vadd.f32 %v4212, %v4213
      %v4215 = vsel %vm2230, %v4001, 0.0
      %v4216 = vadd.f32 %v4214, %v4215
      %v4217 = vsel %vm2230, %v4002, 0.0
      %v4218 = vadd.f32 %v4216, %v4217
      %v4219 = vsel %vm2230, %v4003, 0.0
      %v4220 = vadd.f32 %v4218, %v4219
      %v4221 = vsel %vm2230, %v4004, 0.0
      %v4222 = vadd.f32 %v4220, %v4221
      %v4223 = vsel %vm2230, %v4005, 0.0
      %v4224 = vadd.f32 %v4222, %v4223
      %v4225 = vsel %vm2230, %v4006, 0.0
      %v4226 = vadd.f32 %v4224, %v4225
      %v4227 = vsel %vm2230, %v4007, 0.0
      %v4228 = vadd.f32 %v4226, %v4227
      %v4229 = vsel %vm2230, %v4008, 0.0
      %v4230 = vadd.f32 %v4228, %v4229
      %v4231 = vsel %vm2230, %v4009, 0.0
      %v4232 = vadd.f32 %v4230, %v4231
      %v4233 = vsel %vm2230, %v4010, 0.0
      %v4234 = vadd.f32 %v4232, %v4233
      %v4235 = vsel %vm2230, %v4011, 0.0
      %v4236 = vadd.f32 %v4234, %v4235
      %v4237 = vsel %vm2230, %v4012, 0.0
      %v4238 = vadd.f32 %v4236, %v4237
      %v4239 = vsel %vm2230, %v4013, 0.0
      %v4240 = vadd.f32 %v4238, %v4239
      %v4241 = vsel %vm2230, %v4014, 0.0
      %v4242 = vadd.f32 %v4240, %v4241
      %v4243 = vsel %vm2230, %v4015, 0.0
      %v4244 = vadd.f32 %v4242, %v4243
      %v4245 = vsel %vm2230, %v4016, 0.0
      %v4246 = vadd.f32 %v4244, %v4245
      %v4247 = vsel %vm2230, %v4017, 0.0
      %v4248 = vadd.f32 %v4246, %v4247
      %v4249 = vsel %vm2230, %v4018, 0.0
      %v4250 = vadd.f32 %v4248, %v4249
      %v4251 = vsel %vm2230, %v4019, 0.0
      %v4252 = vadd.f32 %v4250, %v4251
      %v4253 = vsel %vm2230, %v4020, 0.0
      %v4254 = vadd.f32 %v4252, %v4253
      %v4255 = vsel %vm2230, %v4021, 0.0
      %v4256 = vadd.f32 %v4254, %v4255
      %v4257 = vsel %vm2230, %v4022, 0.0
      %v4258 = vadd.f32 %v4256, %v4257
      %v4259 = vsel %vm2230, %v4023, 0.0
      %v4260 = vadd.f32 %v4258, %v4259
      %v4261 = vsel %vm2230, %v4024, 0.0
      %v4262 = vadd.f32 %v4260, %v4261
      %v4263 = vsel %vm2230, %v4025, 0.0
      %v4264 = vadd.f32 %v4262, %v4263
      %v4265 = vsel %vm2230, %v4026, 0.0
      %v4266 = vadd.f32 %v4264, %v4265
      %v4267 = vsel %vm2230, %v4027, 0.0
      %v4268 = vadd.f32 %v4266, %v4267
      %v4269 = vsel %vm2230, %v4028, 0.0
      %v4270 = vadd.f32 %v4268, %v4269
      %v4271 = vsel %vm2230, %v4029, 0.0
      %v4272 = vadd.f32 %v4270, %v4271
      %v4273 = vsel %vm2230, %v4030, 0.0
      %v4274 = vadd.f32 %v4272, %v4273
      %v4275 = vsel %vm2230, %v4031, 0.0
      %v4276 = vadd.f32 %v4274, %v4275
      %v4277 = vsel %vm2230, %v4032, 0.0
      %v4278 = vadd.f32 %v4276, %v4277
      %v4279 = vsel %vm2230, %v4033, 0.0
      %v4280 = vadd.f32 %v4278, %v4279
      %v4281 = vsel %vm2230, %v4034, 0.0
      %v4282 = vadd.f32 %v4280, %v4281
      %v4283 = vsel %vm2230, %v4035, 0.0
      %v4284 = vadd.f32 %v4282, %v4283
      %v4285 = vsel %vm2230, %v4036, 0.0
      %v4286 = vadd.f32 %v4284, %v4285
      %v4287 = vsel %vm2230, %v4037, 0.0
      %v4288 = vadd.f32 %v4286, %v4287
      %v4289 = vsel %vm2230, %v4038, 0.0
      %v4290 = vadd.f32 %v4288, %v4289
      %v4291 = vsel %vm2230, %v4039, 0.0
      %v4292 = vadd.f32 %v4290, %v4291
      %v4293 = vsel %vm2230, %v4040, 0.0
      %v4294 = vadd.f32 %v4292, %v4293
      %v4295 = vsel %vm2230, %v4041, 0.0
      %v4296 = vadd.f32 %v4294, %v4295
      %v4297 = vsel %vm2230, %v4042, 0.0
      %v4298 = vadd.f32 %v4296, %v4297
      %v4299 = vsel %vm2230, %v4043, 0.0
      %v4300 = vadd.f32 %v4298, %v4299
      %v4301 = vsel %vm2230, %v4044, 0.0
      %v4302 = vadd.f32 %v4300, %v4301
      %v4303 = vsel %vm2230, %v4045, 0.0
      %v4304 = vadd.f32 %v4302, %v4303
      %v4305 = vsel %vm2230, %v4046, 0.0
      %v4306 = vadd.f32 %v4304, %v4305
      %v4307 = vsel %vm2230, %v4047, 0.0
      %v4308 = vadd.f32 %v4306, %v4307
      %v4309 = vsel %vm2230, %v4048, 0.0
      %v4310 = vadd.f32 %v4308, %v4309
      %v4311 = vsel %vm2230, %v4049, 0.0
      %v4312 = vadd.f32 %v4310, %v4311
      %v4313 = vsel %vm2230, %v4050, 0.0
      %v4314 = vadd.f32 %v4312, %v4313
      %v4315 = vsel %vm2230, %v4051, 0.0
      %v4316 = vadd.f32 %v4314, %v4315
      %v4317 = vsel %vm2230, %v4052, 0.0
      %v4318 = vadd.f32 %v4316, %v4317
      %v4319 = vsel %vm2230, %v4053, 0.0
      %v4320 = vadd.f32 %v4318, %v4319
      %v4321 = vsel %vm2230, %v4054, 0.0
      %v4322 = vadd.f32 %v4320, %v4321
      %v4323 = vsel %vm2230, %v4055, 0.0
      %v4324 = vadd.f32 %v4322, %v4323
      %v4325 = vsel %vm2230, %v4056, 0.0
      %v4326 = vadd.f32 %v4324, %v4325
      %v4327 = vsel %vm2230, %v4057, 0.0
      %v4328 = vadd.f32 %v4326, %v4327
      %v4329 = vsel %vm2230, %v4058, 0.0
      %v4330 = vadd.f32 %v4328, %v4329
      %v4331 = vsel %vm2230, %v4059, 0.0
      %v4332 = vadd.f32 %v4330, %v4331
      %v4333 = vsel %vm2230, %v4060, 0.0
      %v4334 = vadd.f32 %v4332, %v4333
      %v4335 = vsel %vm2230, %v4061, 0.0
      %v4336 = vadd.f32 %v4334, %v4335
      %v4337 = vsel %vm2230, %v4062, 0.0
      %v4338 = vadd.f32 %v4336, %v4337
      %v4339 = vsel %vm2230, %v4063, 0.0
      %v4340 = vadd.f32 %v4338, %v4339
      %v4341 = vsel %vm2230, %v4064, 0.0
      %v4342 = vadd.f32 %v4340, %v4341
      %v4343 = vsel %vm2230, %v4065, 0.0
      %v4344 = vadd.f32 %v4342, %v4343
      %v4345 = vsel %vm2230, %v4066, 0.0
      %v4346 = vadd.f32 %v4344, %v4345
      %v4347 = vsel %vm2230, %v4067, 0.0
      %v4348 = vadd.f32 %v4346, %v4347
      %v4349 = vsel %vm2230, %v4068, 0.0
      %v4350 = vadd.f32 %v4348, %v4349
      %v4351 = vsel %vm2230, %v4069, 0.0
      %v4352 = vadd.f32 %v4350, %v4351
      %v4353 = vsel %vm2230, %v4070, 0.0
      %v4354 = vadd.f32 %v4352, %v4353
      %v4355 = vsel %vm2230, %v4071, 0.0
      %v4356 = vadd.f32 %v4354, %v4355
      %v4357 = vsel %vm2230, %v4072, 0.0
      %v4358 = vadd.f32 %v4356, %v4357
      %v4359 = vsel %vm2230, %v4073, 0.0
      %v4360 = vadd.f32 %v4358, %v4359
      %v4361 = vsel %vm2230, %v4074, 0.0
      %v4362 = vadd.f32 %v4360, %v4361
      %v4363 = vsel %vm2230, %v4075, 0.0
      %v4364 = vadd.f32 %v4362, %v4363
      %v4365 = vsel %vm2230, %v4076, 0.0
      %v4366 = vadd.f32 %v4364, %v4365
      %v4367 = vsel %vm2230, %v4077, 0.0
      %v4368 = vadd.f32 %v4366, %v4367
      %v4369 = vsel %vm2230, %v4078, 0.0
      %v4370 = vadd.f32 %v4368, %v4369
      %v4371 = vsel %vm2230, %v4079, 0.0
      %v4372 = vadd.f32 %v4370, %v4371
      %v4373 = vsel %vm2230, %v4080, 0.0
      %v4374 = vadd.f32 %v4372, %v4373
      %v4375 = vsel %vm2230, %v4081, 0.0
      %v4376 = vadd.f32 %v4374, %v4375
      %v4377 = vsel %vm2230, %v4082, 0.0
      %v4378 = vadd.f32 %v4376, %v4377
      %v4379 = vsel %vm2230, %v4083, 0.0
      %v4380 = vadd.f32 %v4378, %v4379
      %v4381 = vsel %vm2230, %v4084, 0.0
      %v4382 = vadd.f32 %v4380, %v4381
      %v4383 = vsel %vm2230, %v4085, 0.0
      %v4384 = vadd.f32 %v4382, %v4383
      %v4385 = vsel %vm2230, %v4086, 0.0
      %v4386 = vadd.f32 %v4384, %v4385
      %v4387 = vsel %vm2230, %v4087, 0.0
      %v4388 = vadd.f32 %v4386, %v4387
      %v4389 = vsel %vm2230, %v4088, 0.0
      %v4390 = vadd.f32 %v4388, %v4389
      %v4391 = vsel %vm2230, %v4089, 0.0
      %v4392 = vadd.f32 %v4390, %v4391
      %v4393 = vsel %vm2230, %v4090, 0.0
      %v4394 = vadd.f32 %v4392, %v4393
      %vm4395 = vcmask 19456
      %v4396 = vsel %vm4395, %v4091, 0.0
      %v4397 = vadd.f32 %v4394, %v4396
      %4398 = vadd.xlane.f32.xlu0 %v4397
      %v4399 = vpop.xlane.xlu0 %4398
      %v4400 = vrot.slane %v4399, 4
      %v4401 = vadd.f32 %v4399, %v4400
      %v4402 = vrot.slane %v4401, 2
      %v4403 = vadd.f32 %v4401, %v4402
      %v4404 = vrot.slane %v4403, 1
      %v4405 = vadd.f32 %v4403, %v4404
      %s4406 = vtos %v4405
      %v4407 = vld [vmem:[%s453] sm:$0x3f]
      %vm4408 = vcmask 521216
      %v4409 = vsel %vm4408, %v4407, -inf
      %v4410 = vrot.slane %v4409, 4
      %v4411 = vmax.f32 %v4409, %v4410
      %v4412 = vrot.slane %v4411, 2
      %v4413 = vmax.f32 %v4411, %v4412
      %v4414 = vrot.slane %v4413, 1
      %v4415 = vmax.f32 %v4413, %v4414
      %v4416 = vsub.f32 %v4407, %v4415
      %v4417 = vmul.f32 %v4416, 1.442695
      %v4418 = vpow.pop %v4417
      %v4419 = vsel %vm4408, %v4418, 0.0
      %v4420 = vrot.slane %v4419, 4
      %v4421 = vadd.f32 %v4419, %v4420
      %v4422 = vrot.slane %v4421, 2
      %v4423 = vadd.f32 %v4421, %v4422
      %v4424 = vrot.slane %v4423, 1
      %v4425 = vadd.f32 %v4423, %v4424
      %v4426 = vlog2.pop %v4425
      %v4427 = vmul.f32 %v4426, 0.6931472
      %v4428 = vsub.f32 %v4416, %v4427
      %v4429 = vld [vmem:[%s456] sm:$0x1]
      %v4430 = vlaneseq
      %v4431 = vshrl.u32 %v4430, 7
      %v4432 = vperm.slane %v4429, 0
      %vm4433 = vcmp.eq.s32.totalorder %v4431, %v4432
      %v4434 = vsub.f32 0.0, %v4428
      %v4435 = vsel %vm4433, %v4434, 0.0
      %v4436 = vsel %vm4408, %v4435, 0.0
      %4437 = vadd.xlane.f32.xlu0 %v4436
      %v4438 = vpop.xlane.xlu0 %4437
      %v4439 = vrot.slane %v4438, 4
      %v4440 = vadd.f32 %v4438, %v4439
      %v4441 = vrot.slane %v4440, 2
      %v4442 = vadd.f32 %v4440, %v4441
      %v4443 = vrot.slane %v4442, 1
      %v4444 = vadd.f32 %v4442, %v4443
      %s4445 = vtos %v4444
      %v4446 = vlaneseq
      %v4447 = vand.u32 %v4446, 127
      %vm4448 = vcmp.eq.s32.totalorder %v4447, 0
      %v4449 = vstv %s2254
      %v4450 = vsel %vm4448, %v4449, 0.0
      %vm4451 = vcmp.eq.s32.totalorder %v4447, 1
      %v4452 = vstv %s2510
      %v4453 = vsel %vm4451, %v4452, 0.0
      %v4454 = vadd.f32 %v4450, %v4453
      %vm4455 = vcmp.eq.s32.totalorder %v4447, 2
      %v4456 = vstv %s3326
      %v4457 = vsel %vm4455, %v4456, 0.0
      %v4458 = vadd.f32 %v4454, %v4457
      %vm4459 = vcmp.eq.s32.totalorder %v4447, 3
      %v4460 = vstv %s4445
      %v4461 = vsel %vm4459, %v4460, 0.0
      %v4462 = vadd.f32 %v4458, %v4461
      %vm4463 = vcmp.eq.s32.totalorder %v4447, 4
      %v4464 = vstv %s4406
      %v4465 = vsel %vm4463, %v4464, 0.0
      %v4466 = vadd.f32 %v4462, %v4465
      %4467 = vst [vmem:[%s459] sm:$0x1] %v4466
      %p4468 = scmp.lt.s32.totalorder %s20, 1
      %s4469 = scalar_select %p4468, %s20, 1
      %s4470 = scalar_lea.vmem %s9, %s4469
      // Predicated region
      $region57: #{loss6_forward.1} parent=55 // pred_check
        %p4471 = pneg %p267
      $region58: #{loss6_forward.1} parent=55 // pred_check_branch
        %4473 = sbr.rel (%p4471) target = $region60
      $region59: #{loss6_forward.1} parent=55 // pred_region
        _
      $region60: #{loss6_forward.1} parent=55 // pred_fallthru
        _
    $region56: #{loss6_forward.1} parent=5 // pred_fallthru
      _
    %p4474 = scmp.le.s32.totalorder 2, %s15
    // Predicated region
    $region61: #{loss6_forward.1} parent=5 // pred_check
      %p4475 = pneg %p4474
    $region62: #{loss6_forward.1} parent=5 // pred_check_branch
      %4477 = sbr.rel (%p4475) target = $region64
    $region63: #{loss6_forward.1} parent=5 // pred_region
      %s4478 = ssub.s32 %s15, 2
      // Predicated region
      $region65: #{loss6_forward.1} parent=63 // pred_check
        %p4479 = pneg %p273
      $region66: #{loss6_forward.1} parent=63 // pred_check_branch
        %4481 = sbr.rel (%p4479) target = $region68
      $region67: #{loss6_forward.1} parent=63 // pred_region
        %p4482 = scmp.lt.s32.totalorder %s21, 1
        %s4483 = scalar_select %p4482, %s21, 1
        %s4484 = scalar_lea.vmem %s9, %s4483
      $region68: #{loss6_forward.1} parent=63 // pred_fallthru
        _
    $region64: #{loss6_forward.1} parent=5 // pred_fallthru
      _
  $region6: #{loss6_forward.1} parent=0 // loop_footer
    %s19 = sadd.s32 1, %s15
  $region7: #{loss6_forward.1} parent=0 // loop_footer_branch
    %14 = sbr.rel target = $region3
  $region8: #{loss6_forward.1} parent=0 // loop_exit
    _

</llo_original>
